<compile_context>
chip_gen: v7x
topology: tpu7x:2x2x1
jax: 0.10.0
libtpu: 0.0.40
codegen_flags: <defaults>
</compile_context>

<pallas_src>
import jax
import jax.numpy as jnp
from jax import lax
from jax.experimental import pallas as pl
from jax.experimental.pallas import tpu as pltpu


def _round_up(x, m):
    return (x + m - 1) // m * m


def _pick_time_tile(T, Bp, H, din_total, budget_bytes=8 * 1024 * 1024, max_unroll=64):
    """Largest divisor of T whose per-block VMEM footprint stays under budget (capped unroll)."""
    per_step = 2 * Bp * 4 * H * 4            # gate scratch (both dirs), f32
    per_step += 2 * 2 * Bp * din_total * 2   # x blocks (fwd + bwd views), double-buffered, bf16
    per_step += 2 * 2 * Bp * H * 2           # hidden output blocks, double-buffered, bf16
    tt_max = max(1, min(budget_bytes // max(per_step, 1), max_unroll))
    tt = 1
    for d in range(1, T + 1):
        if T % d == 0 and d <= tt_max:
            tt = d
    return tt


# ----------------------------- Pallas kernels ------------------------------ #

def _lstm_cell(gates, h_prev, c_prev, whh):
    """One LSTM cell update.  gates: (Bp, 4H) f32 pre-activation (input part + biases already
    included); h_prev/c_prev: (Bp, H) f32; whh: (H, 4H) bf16.  PyTorch gate order [i, f, g, o]."""
    H = h_prev.shape[-1]
    g = gates + jnp.dot(h_prev.astype(jnp.bfloat16), whh,
                        preferred_element_type=jnp.float32)
    i = jax.nn.sigmoid(g[:, 0 * H:1 * H])
    f = jax.nn.sigmoid(g[:, 1 * H:2 * H])
    gg = jnp.tanh(g[:, 2 * H:3 * H])
    o = jax.nn.sigmoid(g[:, 3 * H:4 * H])
    c_new = f * c_prev + i * gg
    h_new = o * jnp.tanh(c_new)
    return h_new, c_new


def _make_bilstm_layer_kernel(n_parts, Tt, T, head):
    """Fused (input-projection + fwd/bwd recurrence [+ mean + fc]) kernel over a time block."""

    def kernel(*args):
        idx = 0
        xs_f = args[idx:idx + n_parts]; idx += n_parts        # fwd-order x blocks
        xs_b = args[idx:idx + n_parts]; idx += n_parts        # bwd-order x blocks
        wih_f = args[idx:idx + n_parts]; idx += n_parts       # (d_p, 4H) per part
        wih_b = args[idx:idx + n_parts]; idx += n_parts
        bias_f_ref, bias_b_ref, whh_f_ref, whh_b_ref = args[idx:idx + 4]; idx += 4
        if head:
            wfc_ref, bfc_ref = args[idx:idx + 2]; idx += 2
            out_ref = args[idx]; idx += 1
            gf_s, gb_s, hf_s, cf_s, hb_s, cb_s, sf_s, sb_s = args[idx:]
        else:
            hf_out_ref, hb_out_ref = args[idx:idx + 2]; idx += 2
            gf_s, gb_s, hf_s, cf_s, hb_s, cb_s = args[idx:]

        blk = pl.program_id(0)
        nblk = pl.num_programs(0)
        Bp = hf_s.shape[0]

        @pl.when(blk == 0)
        def _():
            hf_s[...] = jnp.zeros_like(hf_s)
            cf_s[...] = jnp.zeros_like(cf_s)
            hb_s[...] = jnp.zeros_like(hb_s)
            cb_s[...] = jnp.zeros_like(cb_s)
            if head:
                sf_s[...] = jnp.zeros_like(sf_s)
                sb_s[...] = jnp.zeros_like(sb_s)

        # --- fused input projection for this time block (gates never touch HBM) ---
        def project(xs, wih, bias_ref, g_scratch):
            acc = None
            for xp, wp in zip(xs, wih):
                d = xp.shape[-1]
                lhs = xp[...].reshape(Tt * Bp, d)                       # bf16
                contrib = jnp.dot(lhs, wp[...], preferred_element_type=jnp.float32)
                acc = contrib if acc is None else acc + contrib
            acc = acc + bias_ref[...]                                   # (1, 4H) broadcast
            g_scratch[...] = acc.reshape(g_scratch.shape)

        project(xs_f, wih_f, bias_f_ref, gf_s)
        project(xs_b, wih_b, bias_b_ref, gb_s)

        whh_f = whh_f_ref[...]
        whh_b = whh_b_ref[...]

        if head:
            init = (hf_s[...], cf_s[...], hb_s[...], cb_s[...], sf_s[...], sb_s[...])
        else:
            init = (hf_s[...], cf_s[...], hb_s[...], cb_s[...])

        def body(t, carry):
            h_f, c_f, h_b, c_b = carry[:4]
            h_f, c_f = _lstm_cell(gf_s[t], h_f, c_f, whh_f)
            h_b, c_b = _lstm_cell(gb_s[Tt - 1 - t], h_b, c_b, whh_b)
            if head:
                s_f, s_b = carry[4:]
                return (h_f, c_f, h_b, c_b, s_f + h_f, s_b + h_b)
            hf_out_ref[t] = h_f.astype(hf_out_ref.dtype)
            hb_out_ref[Tt - 1 - t] = h_b.astype(hb_out_ref.dtype)
            return (h_f, c_f, h_b, c_b)

        carry = lax.fori_loop(0, Tt, body, init, unroll=True)
        hf_s[...] = carry[0]
        cf_s[...] = carry[1]
        hb_s[...] = carry[2]
        cb_s[...] = carry[3]

        if head:
            sf_s[...] = carry[4]
            sb_s[...] = carry[5]

            @pl.when(blk == nblk - 1)
            def _():
                mean = jnp.concatenate([sf_s[...], sb_s[...]], axis=-1) * (1.0 / T)
                logits = (jnp.dot(mean.astype(jnp.bfloat16), wfc_ref[...],
                                  preferred_element_type=jnp.float32)
                          + bfc_ref[...])
                out_ref[...] = logits.astype(out_ref.dtype)

    return kernel


# ----------------------------- wrappers ------------------------------------ #

def _bilstm_layer(x_parts, wih_parts_f, wih_parts_b, bias_f, bias_b, whh_f, whh_b,
                  head=False, wfc=None, bfc=None):
    """One fused BiLSTM layer.  x_parts: list of (T, Bp, d_p) bf16 whose concat along the last
    dim is the layer input.  Returns (h_fwd, h_bwd) each (T, Bp, H) bf16, or padded logits."""
    T, Bp, _ = x_parts[0].shape
    H, G4 = whh_f.shape
    din_total = sum(p.shape[-1] for p in x_parts)
    Tt = _pick_time_tile(T, Bp, H, din_total)
    nb = T // Tt
    n_parts = len(x_parts)

    x_spec_f = [pl.BlockSpec((Tt, Bp, p.shape[-1]), lambda i: (i, 0, 0)) for p in x_parts]
    x_spec_b = [pl.BlockSpec((Tt, Bp, p.shape[-1]), lambda i: (nb - 1 - i, 0, 0)) for p in x_parts]
    wih_spec = [pl.BlockSpec((p.shape[-1], G4), lambda i: (0, 0)) for p in x_parts]
    bias_spec = pl.BlockSpec((1, G4), lambda i: (0, 0))
    whh_spec = pl.BlockSpec((H, G4), lambda i: (0, 0))

    in_specs = (x_spec_f + x_spec_b + wih_spec + wih_spec
                + [bias_spec, bias_spec, whh_spec, whh_spec])
    operands = (list(x_parts) + list(x_parts) + list(wih_parts_f) + list(wih_parts_b)
                + [bias_f, bias_b, whh_f, whh_b])

    scratch = ([pltpu.VMEM((Tt, Bp, G4), jnp.float32)] * 2          # gate blocks, both dirs
               + [pltpu.VMEM((Bp, H), jnp.float32)] * 4)            # h/c carries, both dirs

    if head:
        Cp = wfc.shape[1]
        in_specs += [pl.BlockSpec((2 * H, Cp), lambda i: (0, 0)),
                     pl.BlockSpec((1, Cp), lambda i: (0, 0))]
        operands += [wfc, bfc]
        out_specs = pl.BlockSpec((Bp, Cp), lambda i: (0, 0))
        out_shape = jax.ShapeDtypeStruct((Bp, Cp), jnp.float32)
        scratch += [pltpu.VMEM((Bp, H), jnp.float32)] * 2           # running sums, both dirs
    else:
        out_specs = [pl.BlockSpec((Tt, Bp, H), lambda i: (i, 0, 0)),
                     pl.BlockSpec((Tt, Bp, H), lambda i: (nb - 1 - i, 0, 0))]
        out_shape = (jax.ShapeDtypeStruct((T, Bp, H), jnp.bfloat16),
                     jax.ShapeDtypeStruct((T, Bp, H), jnp.bfloat16))

    kernel = _make_bilstm_layer_kernel(n_parts, Tt, T, head)
    return pl.pallas_call(
        kernel,
        grid=(nb,),
        in_specs=in_specs,
        out_specs=out_specs,
        out_shape=out_shape,
        scratch_shapes=scratch,
        compiler_params=pltpu.CompilerParams(dimension_semantics=("arbitrary",)),
    )(*operands)


def init_params(key, vocab_size, embedding_size, hidden_size, num_layers, num_classes):
    """Deterministic parameter init mirroring the PyTorch module's shapes."""
    ks = iter(jax.random.split(key, 4 + num_layers * 16))
    params = {}
    params["embedding"] = jax.random.normal(
        next(ks), (vocab_size, embedding_size), jnp.float32) * 0.1

    stdv = 1.0 / jnp.sqrt(hidden_size)
    layers = []
    for layer in range(num_layers):
        in_dim = embedding_size if layer == 0 else 2 * hidden_size

        def u(k, shape):
            return jax.random.uniform(k, shape, jnp.float32, -stdv, stdv)

        layer_p = {}
        for dname in ("fwd", "bwd"):
            layer_p[dname] = (
                u(next(ks), (4 * hidden_size, in_dim)),       # weight_ih
                u(next(ks), (4 * hidden_size, hidden_size)),  # weight_hh
                u(next(ks), (4 * hidden_size,)),              # bias_ih
                u(next(ks), (4 * hidden_size,)),              # bias_hh
            )
        layers.append(layer_p)
    params["lstm"] = layers

    fc_stdv = 1.0 / jnp.sqrt(2 * hidden_size)
    params["fc_w"] = jax.random.uniform(
        next(ks), (num_classes, 2 * hidden_size), jnp.float32, -fc_stdv, fc_stdv)
    params["fc_b"] = jax.random.uniform(
        next(ks), (num_classes,), jnp.float32, -fc_stdv, fc_stdv)
    return params


def bilstm_softmax_forward(params, token_ids, seq_lens):
    """embedding -> stacked BiLSTM -> mean over time -> Linear.  Returns (B, C) logits."""
    # TODO(synk): pack_padded_sequence masking for variable seq_lens not implemented; the
    # full-length padded sequence is processed and the mean divides by T.
    del seq_lens
    B, T = token_ids.shape
    num_layers = len(params["lstm"])
    H = params["lstm"][0]["fwd"][1].shape[1]
    C = params["fc_w"].shape[0]

    Bp = _round_up(B, 8)      # fill sublanes / MXU rows
    Cp = _round_up(C, 128)    # lane-dense fc output

    tok_p = jnp.pad(token_ids, ((0, Bp - B), (0, 0)))
    emb = params["embedding"][tok_p]                                  # (Bp, T, E)  XLA gather
    x_parts = [jnp.transpose(emb, (1, 0, 2)).astype(jnp.bfloat16)]    # [(T, Bp, E)]

    wfc = jnp.pad(params["fc_w"].T, ((0, 0), (0, Cp - C))).astype(jnp.bfloat16)   # (2H, Cp)
    bfc = jnp.pad(params["fc_b"], (0, Cp - C)).reshape(1, Cp).astype(jnp.float32)

    logits_p = None
    for l, layer_p in enumerate(params["lstm"]):
        w_ih_f, w_hh_f, b_ih_f, b_hh_f = layer_p["fwd"]
        w_ih_b, w_hh_b, b_ih_b, b_hh_b = layer_p["bwd"]

        # Split W_ih columns to match the x parts so the [h_fwd ; h_bwd] concat never
        # materializes in HBM for layers > 0.
        splits, off = [], 0
        for p in x_parts:
            d = p.shape[-1]
            splits.append((off, off + d))
            off += d
        wih_parts_f = [w_ih_f[:, a:b].T.astype(jnp.bfloat16) for a, b in splits]  # (d_p, 4H)
        wih_parts_b = [w_ih_b[:, a:b].T.astype(jnp.bfloat16) for a, b in splits]
        bias_f = (b_ih_f + b_hh_f).reshape(1, -1).astype(jnp.float32)             # (1, 4H)
        bias_b = (b_ih_b + b_hh_b).reshape(1, -1).astype(jnp.float32)
        whh_f = w_hh_f.T.astype(jnp.bfloat16)                                     # (H, 4H)
        whh_b = w_hh_b.T.astype(jnp.bfloat16)

        if l < num_layers - 1:
            h_f_seq, h_b_seq = _bilstm_layer(x_parts, wih_parts_f, wih_parts_b,
                                             bias_f, bias_b, whh_f, whh_b, head=False)
            x_parts = [h_f_seq, h_b_seq]
        else:
            logits_p = _bilstm_layer(x_parts, wih_parts_f, wih_parts_b,
                                     bias_f, bias_b, whh_f, whh_b,
                                     head=True, wfc=wfc, bfc=bfc)

    return logits_p[:B, :C]


if __name__ == "__main__":
    vocab_size, embedding_size, hidden_size = 50, 16, 32
    num_layers, num_classes = 2, 4
    B, T = 2, 8

    key = jax.random.PRNGKey(0)
    k_param, k_tok, k_len = jax.random.split(key, 3)

    params = init_params(k_param, vocab_size, embedding_size,
                         hidden_size, num_layers, num_classes)
    token_ids = jax.random.randint(k_tok, (B, T), 0, vocab_size, jnp.int32)
    seq_lens = jax.random.randint(k_len, (B,), 1, T + 1, jnp.int32)

    logits = jax.jit(bilstm_softmax_forward)(params, token_ids, seq_lens)
    logits = jax.block_until_ready(logits)
    assert logits.shape == (B, num_classes)
    assert bool(jnp.all(jnp.isfinite(logits)))
    print("KERNEL_OK")
</pallas_src>

<mosaic_0001>
module attributes {stable_mosaic.version = 11 : i64} {
  func.func @kernel(%arg0: i32, %arg1: memref<8x8x16xbf16, #tpu.memory_space<vmem>>, %arg2: memref<8x8x16xbf16, #tpu.memory_space<vmem>>, %arg3: memref<16x128xbf16, #tpu.memory_space<vmem>>, %arg4: memref<16x128xbf16, #tpu.memory_space<vmem>>, %arg5: memref<1x128xf32, #tpu.memory_space<vmem>>, %arg6: memref<1x128xf32, #tpu.memory_space<vmem>>, %arg7: memref<32x128xbf16, #tpu.memory_space<vmem>>, %arg8: memref<32x128xbf16, #tpu.memory_space<vmem>>, %arg9: memref<8x8x32xbf16, #tpu.memory_space<vmem>>, %arg10: memref<8x8x32xbf16, #tpu.memory_space<vmem>>, %arg11: memref<8x8x128xf32, #tpu.memory_space<vmem>>, %arg12: memref<8x8x128xf32, #tpu.memory_space<vmem>>, %arg13: memref<8x32xf32, #tpu.memory_space<vmem>>, %arg14: memref<8x32xf32, #tpu.memory_space<vmem>>, %arg15: memref<8x32xf32, #tpu.memory_space<vmem>>, %arg16: memref<8x32xf32, #tpu.memory_space<vmem>>) attributes {dimension_semantics = [#tpu.dimension_semantics<arbitrary>], iteration_bounds = array<i64: 1>, scalar_prefetch = 0 : i64, scratch_operands = 6 : i64, tpu.core_type = #tpu.core_type<tc>, window_params = [{transform_indices = @transform_0, window_bounds = array<i64: 8, 8, 16>}, {transform_indices = @transform_1, window_bounds = array<i64: 8, 8, 16>}, {pipeline_mode = #tpu.pipeline_mode<synchronous>, transform_indices = @transform_2, window_bounds = array<i64: 16, 128>}, {pipeline_mode = #tpu.pipeline_mode<synchronous>, transform_indices = @transform_3, window_bounds = array<i64: 16, 128>}, {pipeline_mode = #tpu.pipeline_mode<synchronous>, transform_indices = @transform_4, window_bounds = array<i64: 1, 128>}, {pipeline_mode = #tpu.pipeline_mode<synchronous>, transform_indices = @transform_5, window_bounds = array<i64: 1, 128>}, {pipeline_mode = #tpu.pipeline_mode<synchronous>, transform_indices = @transform_6, window_bounds = array<i64: 32, 128>}, {pipeline_mode = #tpu.pipeline_mode<synchronous>, transform_indices = @transform_7, window_bounds = array<i64: 32, 128>}, {transform_indices = @transform_8, window_bounds = array<i64: 8, 8, 32>}, {transform_indices = @transform_9, window_bounds = array<i64: 8, 8, 32>}]} {
    %c0_i32 = arith.constant 0 : i32
    %0 = arith.cmpi eq, %arg0, %c0_i32 : i32
    %1 = arith.extui %0 : i1 to i32
    %c0_i32_0 = arith.constant 0 : i32
    %2 = arith.cmpi ne, %1, %c0_i32_0 : i32
    scf.if %2 {
      %cst_186 = arith.constant 0.000000e+00 : f32
      %623 = vector.broadcast %cst_186 : f32 to vector<8x32xf32>
      %c0_187 = arith.constant 0 : index
      %c0_188 = arith.constant 0 : index
      %624 = vector.load %arg13[%c0_187, %c0_188] : memref<8x32xf32, #tpu.memory_space<vmem>>, vector<8x32xf32>
      tpu.vector_store %arg13[%c0_187, %c0_188], %623 {strides = array<i32>} : memref<8x32xf32, #tpu.memory_space<vmem>>, vector<8x32xf32>,
      %cst_189 = arith.constant 0.000000e+00 : f32
      %625 = vector.broadcast %cst_189 : f32 to vector<8x32xf32>
      %c0_190 = arith.constant 0 : index
      %c0_191 = arith.constant 0 : index
      %626 = vector.load %arg14[%c0_190, %c0_191] : memref<8x32xf32, #tpu.memory_space<vmem>>, vector<8x32xf32>
      tpu.vector_store %arg14[%c0_190, %c0_191], %625 {strides = array<i32>} : memref<8x32xf32, #tpu.memory_space<vmem>>, vector<8x32xf32>,
      %cst_192 = arith.constant 0.000000e+00 : f32
      %627 = vector.broadcast %cst_192 : f32 to vector<8x32xf32>
      %c0_193 = arith.constant 0 : index
      %c0_194 = arith.constant 0 : index
      %628 = vector.load %arg15[%c0_193, %c0_194] : memref<8x32xf32, #tpu.memory_space<vmem>>, vector<8x32xf32>
      tpu.vector_store %arg15[%c0_193, %c0_194], %627 {strides = array<i32>} : memref<8x32xf32, #tpu.memory_space<vmem>>, vector<8x32xf32>,
      %cst_195 = arith.constant 0.000000e+00 : f32
      %629 = vector.broadcast %cst_195 : f32 to vector<8x32xf32>
      %c0_196 = arith.constant 0 : index
      %c0_197 = arith.constant 0 : index
      %630 = vector.load %arg16[%c0_196, %c0_197] : memref<8x32xf32, #tpu.memory_space<vmem>>, vector<8x32xf32>
      tpu.vector_store %arg16[%c0_196, %c0_197], %629 {strides = array<i32>} : memref<8x32xf32, #tpu.memory_space<vmem>>, vector<8x32xf32>,
    } else {
    }
    %c0 = arith.constant 0 : index
    %c0_1 = arith.constant 0 : index
    %c0_2 = arith.constant 0 : index
    %3 = vector.load %arg1[%c0, %c0_1, %c0_2] : memref<8x8x16xbf16, #tpu.memory_space<vmem>>, vector<8x8x16xbf16>
    %4 = vector.shape_cast %3 : vector<8x8x16xbf16> to vector<64x16xbf16>
    %c0_3 = arith.constant 0 : index
    %c0_4 = arith.constant 0 : index
    %5 = vector.load %arg3[%c0_3, %c0_4] : memref<16x128xbf16, #tpu.memory_space<vmem>>, vector<16x128xbf16>
    %cst = arith.constant dense<0.000000e+00> : vector<64x128xf32>
    %6 = tpu.matmul %4, %5, %cst {dimension_numbers = #tpu.dot_dimension_numbers<[1], [0], [0], [1], [0, 0, 1, 1], [], []>} : vector<64x16xbf16>, vector<16x128xbf16>, vector<64x128xf32> -> vector<64x128xf32>
    %c0_5 = arith.constant 0 : index
    %c0_6 = arith.constant 0 : index
    %7 = vector.load %arg5[%c0_5, %c0_6] : memref<1x128xf32, #tpu.memory_space<vmem>>, vector<1x128xf32>
    %8 = vector.broadcast %7 : vector<1x128xf32> to vector<64x128xf32>
    %9 = arith.addf %6, %8 : vector<64x128xf32>
    %10 = vector.shape_cast %9 : vector<64x128xf32> to vector<8x8x128xf32>
    %c0_7 = arith.constant 0 : index
    %c0_8 = arith.constant 0 : index
    %c0_9 = arith.constant 0 : index
    %11 = vector.load %arg11[%c0_7, %c0_8, %c0_9] : memref<8x8x128xf32, #tpu.memory_space<vmem>>, vector<8x8x128xf32>
    tpu.vector_store %arg11[%c0_7, %c0_8, %c0_9], %10 {strides = array<i32>} : memref<8x8x128xf32, #tpu.memory_space<vmem>>, vector<8x8x128xf32>,
    %c0_10 = arith.constant 0 : index
    %c0_11 = arith.constant 0 : index
    %c0_12 = arith.constant 0 : index
    %12 = vector.load %arg2[%c0_10, %c0_11, %c0_12] : memref<8x8x16xbf16, #tpu.memory_space<vmem>>, vector<8x8x16xbf16>
    %13 = vector.shape_cast %12 : vector<8x8x16xbf16> to vector<64x16xbf16>
    %c0_13 = arith.constant 0 : index
    %c0_14 = arith.constant 0 : index
    %14 = vector.load %arg4[%c0_13, %c0_14] : memref<16x128xbf16, #tpu.memory_space<vmem>>, vector<16x128xbf16>
    %cst_15 = arith.constant dense<0.000000e+00> : vector<64x128xf32>
    %15 = tpu.matmul %13, %14, %cst_15 {dimension_numbers = #tpu.dot_dimension_numbers<[1], [0], [0], [1], [0, 0, 1, 1], [], []>} : vector<64x16xbf16>, vector<16x128xbf16>, vector<64x128xf32> -> vector<64x128xf32>
    %c0_16 = arith.constant 0 : index
    %c0_17 = arith.constant 0 : index
    %16 = vector.load %arg6[%c0_16, %c0_17] : memref<1x128xf32, #tpu.memory_space<vmem>>, vector<1x128xf32>
    %17 = vector.broadcast %16 : vector<1x128xf32> to vector<64x128xf32>
    %18 = arith.addf %15, %17 : vector<64x128xf32>
    %19 = vector.shape_cast %18 : vector<64x128xf32> to vector<8x8x128xf32>
    %c0_18 = arith.constant 0 : index
    %c0_19 = arith.constant 0 : index
    %c0_20 = arith.constant 0 : index
    %20 = vector.load %arg12[%c0_18, %c0_19, %c0_20] : memref<8x8x128xf32, #tpu.memory_space<vmem>>, vector<8x8x128xf32>
    tpu.vector_store %arg12[%c0_18, %c0_19, %c0_20], %19 {strides = array<i32>} : memref<8x8x128xf32, #tpu.memory_space<vmem>>, vector<8x8x128xf32>,
    %c0_21 = arith.constant 0 : index
    %c0_22 = arith.constant 0 : index
    %21 = vector.load %arg7[%c0_21, %c0_22] : memref<32x128xbf16, #tpu.memory_space<vmem>>, vector<32x128xbf16>
    %c0_23 = arith.constant 0 : index
    %c0_24 = arith.constant 0 : index
    %22 = vector.load %arg8[%c0_23, %c0_24] : memref<32x128xbf16, #tpu.memory_space<vmem>>, vector<32x128xbf16>
    %c0_25 = arith.constant 0 : index
    %c0_26 = arith.constant 0 : index
    %23 = vector.load %arg13[%c0_25, %c0_26] : memref<8x32xf32, #tpu.memory_space<vmem>>, vector<8x32xf32>
    %c0_27 = arith.constant 0 : index
    %c0_28 = arith.constant 0 : index
    %24 = vector.load %arg14[%c0_27, %c0_28] : memref<8x32xf32, #tpu.memory_space<vmem>>, vector<8x32xf32>
    %c0_29 = arith.constant 0 : index
    %c0_30 = arith.constant 0 : index
    %25 = vector.load %arg15[%c0_29, %c0_30] : memref<8x32xf32, #tpu.memory_space<vmem>>, vector<8x32xf32>
    %c0_31 = arith.constant 0 : index
    %c0_32 = arith.constant 0 : index
    %26 = vector.load %arg16[%c0_31, %c0_32] : memref<8x32xf32, #tpu.memory_space<vmem>>, vector<8x32xf32>
    %c0_i32_33 = arith.constant 0 : i32
    %27 = arith.index_cast %c0_i32_33 : i32 to index
    %c0_34 = arith.constant 0 : index
    %c0_35 = arith.constant 0 : index
    %28 = vector.load %arg11[%27, %c0_34, %c0_35] : memref<8x8x128xf32, #tpu.memory_space<vmem>>, vector<1x8x128xf32>
    %29 = vector.shape_cast %28 : vector<1x8x128xf32> to vector<8x128xf32>
    %30 = arith.truncf %23 : vector<8x32xf32> to vector<8x32xbf16>
    %cst_36 = arith.constant dense<0.000000e+00> : vector<8x128xf32>
    %31 = tpu.matmul %30, %21, %cst_36 {dimension_numbers = #tpu.dot_dimension_numbers<[1], [0], [0], [1], [0, 0, 1, 1], [], []>} : vector<8x32xbf16>, vector<32x128xbf16>, vector<8x128xf32> -> vector<8x128xf32>
    %32 = arith.addf %29, %31 : vector<8x128xf32>
    %33 = vector.extract_strided_slice %32 {offsets = [0, 0], sizes = [8, 32], strides = [1, 1]} : vector<8x128xf32> to vector<8x32xf32>
    %34 = arith.negf %33 : vector<8x32xf32>
    %35 = math.exp %34 : vector<8x32xf32>
    %cst_37 = arith.constant 1.000000e+00 : f32
    %36 = vector.broadcast %cst_37 : f32 to vector<8x32xf32>
    %37 = arith.addf %36, %35 : vector<8x32xf32>
    %38 = arith.divf %36, %37 : vector<8x32xf32>
    %39 = vector.extract_strided_slice %32 {offsets = [0, 32], sizes = [8, 32], strides = [1, 1]} : vector<8x128xf32> to vector<8x32xf32>
    %40 = arith.negf %39 : vector<8x32xf32>
    %41 = math.exp %40 : vector<8x32xf32>
    %cst_38 = arith.constant 1.000000e+00 : f32
    %42 = vector.broadcast %cst_38 : f32 to vector<8x32xf32>
    %43 = arith.addf %42, %41 : vector<8x32xf32>
    %44 = arith.divf %42, %43 : vector<8x32xf32>
    %45 = vector.extract_strided_slice %32 {offsets = [0, 64], sizes = [8, 32], strides = [1, 1]} : vector<8x128xf32> to vector<8x32xf32>
    %46 = math.tanh %45 : vector<8x32xf32>
    %47 = vector.extract_strided_slice %32 {offsets = [0, 96], sizes = [8, 32], strides = [1, 1]} : vector<8x128xf32> to vector<8x32xf32>
    %48 = arith.negf %47 : vector<8x32xf32>
    %49 = math.exp %48 : vector<8x32xf32>
    %cst_39 = arith.constant 1.000000e+00 : f32
    %50 = vector.broadcast %cst_39 : f32 to vector<8x32xf32>
    %51 = arith.addf %50, %49 : vector<8x32xf32>
    %52 = arith.divf %50, %51 : vector<8x32xf32>
    %53 = arith.mulf %44, %24 : vector<8x32xf32>
    %54 = arith.mulf %38, %46 : vector<8x32xf32>
    %55 = arith.addf %53, %54 : vector<8x32xf32>
    %56 = math.tanh %55 : vector<8x32xf32>
    %57 = arith.mulf %52, %56 : vector<8x32xf32>
    %c7_i32 = arith.constant 7 : i32
    %58 = arith.subi %c7_i32, %c0_i32_33 : i32
    %59 = arith.index_cast %58 : i32 to index
    %c0_40 = arith.constant 0 : index
    %c0_41 = arith.constant 0 : index
    %60 = vector.load %arg12[%59, %c0_40, %c0_41] : memref<8x8x128xf32, #tpu.memory_space<vmem>>, vector<1x8x128xf32>
    %61 = vector.shape_cast %60 : vector<1x8x128xf32> to vector<8x128xf32>
    %62 = arith.truncf %25 : vector<8x32xf32> to vector<8x32xbf16>
    %cst_42 = arith.constant dense<0.000000e+00> : vector<8x128xf32>
    %63 = tpu.matmul %62, %22, %cst_42 {dimension_numbers = #tpu.dot_dimension_numbers<[1], [0], [0], [1], [0, 0, 1, 1], [], []>} : vector<8x32xbf16>, vector<32x128xbf16>, vector<8x128xf32> -> vector<8x128xf32>
    %64 = arith.addf %61, %63 : vector<8x128xf32>
    %65 = vector.extract_strided_slice %64 {offsets = [0, 0], sizes = [8, 32], strides = [1, 1]} : vector<8x128xf32> to vector<8x32xf32>
    %66 = arith.negf %65 : vector<8x32xf32>
    %67 = math.exp %66 : vector<8x32xf32>
    %cst_43 = arith.constant 1.000000e+00 : f32
    %68 = vector.broadcast %cst_43 : f32 to vector<8x32xf32>
    %69 = arith.addf %68, %67 : vector<8x32xf32>
    %70 = arith.divf %68, %69 : vector<8x32xf32>
    %71 = vector.extract_strided_slice %64 {offsets = [0, 32], sizes = [8, 32], strides = [1, 1]} : vector<8x128xf32> to vector<8x32xf32>
    %72 = arith.negf %71 : vector<8x32xf32>
    %73 = math.exp %72 : vector<8x32xf32>
    %cst_44 = arith.constant 1.000000e+00 : f32
    %74 = vector.broadcast %cst_44 : f32 to vector<8x32xf32>
    %75 = arith.addf %74, %73 : vector<8x32xf32>
    %76 = arith.divf %74, %75 : vector<8x32xf32>
    %77 = vector.extract_strided_slice %64 {offsets = [0, 64], sizes = [8, 32], strides = [1, 1]} : vector<8x128xf32> to vector<8x32xf32>
    %78 = math.tanh %77 : vector<8x32xf32>
    %79 = vector.extract_strided_slice %64 {offsets = [0, 96], sizes = [8, 32], strides = [1, 1]} : vector<8x128xf32> to vector<8x32xf32>
    %80 = arith.negf %79 : vector<8x32xf32>
    %81 = math.exp %80 : vector<8x32xf32>
    %cst_45 = arith.constant 1.000000e+00 : f32
    %82 = vector.broadcast %cst_45 : f32 to vector<8x32xf32>
    %83 = arith.addf %82, %81 : vector<8x32xf32>
    %84 = arith.divf %82, %83 : vector<8x32xf32>
    %85 = arith.mulf %76, %26 : vector<8x32xf32>
    %86 = arith.mulf %70, %78 : vector<8x32xf32>
    %87 = arith.addf %85, %86 : vector<8x32xf32>
    %88 = math.tanh %87 : vector<8x32xf32>
    %89 = arith.mulf %84, %88 : vector<8x32xf32>
    %90 = arith.truncf %57 : vector<8x32xf32> to vector<8x32xbf16>
    %91 = arith.index_cast %c0_i32_33 : i32 to index
    %c0_46 = arith.constant 0 : index
    %c0_47 = arith.constant 0 : index
    %92 = vector.load %arg9[%91, %c0_46, %c0_47] : memref<8x8x32xbf16, #tpu.memory_space<vmem>>, vector<1x8x32xbf16>
    %93 = vector.shape_cast %92 : vector<1x8x32xbf16> to vector<8x32xbf16>
    %94 = vector.shape_cast %90 : vector<8x32xbf16> to vector<1x8x32xbf16>
    tpu.vector_store %arg9[%91, %c0_46, %c0_47], %94 {strides = array<i32>} : memref<8x8x32xbf16, #tpu.memory_space<vmem>>, vector<1x8x32xbf16>,
    %95 = arith.truncf %89 : vector<8x32xf32> to vector<8x32xbf16>
    %c7_i32_48 = arith.constant 7 : i32
    %96 = arith.subi %c7_i32_48, %c0_i32_33 : i32
    %97 = arith.index_cast %96 : i32 to index
    %c0_49 = arith.constant 0 : index
    %c0_50 = arith.constant 0 : index
    %98 = vector.load %arg10[%97, %c0_49, %c0_50] : memref<8x8x32xbf16, #tpu.memory_space<vmem>>, vector<1x8x32xbf16>
    %99 = vector.shape_cast %98 : vector<1x8x32xbf16> to vector<8x32xbf16>
    %100 = vector.shape_cast %95 : vector<8x32xbf16> to vector<1x8x32xbf16>
    tpu.vector_store %arg10[%97, %c0_49, %c0_50], %100 {strides = array<i32>} : memref<8x8x32xbf16, #tpu.memory_space<vmem>>, vector<1x8x32xbf16>,
    %c1_i32 = arith.constant 1 : i32
    %101 = arith.index_cast %c1_i32 : i32 to index
    %c0_51 = arith.constant 0 : index
    %c0_52 = arith.constant 0 : index
    %102 = vector.load %arg11[%101, %c0_51, %c0_52] : memref<8x8x128xf32, #tpu.memory_space<vmem>>, vector<1x8x128xf32>
    %103 = vector.shape_cast %102 : vector<1x8x128xf32> to vector<8x128xf32>
    %104 = arith.truncf %57 : vector<8x32xf32> to vector<8x32xbf16>
    %cst_53 = arith.constant dense<0.000000e+00> : vector<8x128xf32>
    %105 = tpu.matmul %104, %21, %cst_53 {dimension_numbers = #tpu.dot_dimension_numbers<[1], [0], [0], [1], [0, 0, 1, 1], [], []>} : vector<8x32xbf16>, vector<32x128xbf16>, vector<8x128xf32> -> vector<8x128xf32>
    %106 = arith.addf %103, %105 : vector<8x128xf32>
    %107 = vector.extract_strided_slice %106 {offsets = [0, 0], sizes = [8, 32], strides = [1, 1]} : vector<8x128xf32> to vector<8x32xf32>
    %108 = arith.negf %107 : vector<8x32xf32>
    %109 = math.exp %108 : vector<8x32xf32>
    %cst_54 = arith.constant 1.000000e+00 : f32
    %110 = vector.broadcast %cst_54 : f32 to vector<8x32xf32>
    %111 = arith.addf %110, %109 : vector<8x32xf32>
    %112 = arith.divf %110, %111 : vector<8x32xf32>
    %113 = vector.extract_strided_slice %106 {offsets = [0, 32], sizes = [8, 32], strides = [1, 1]} : vector<8x128xf32> to vector<8x32xf32>
    %114 = arith.negf %113 : vector<8x32xf32>
    %115 = math.exp %114 : vector<8x32xf32>
    %cst_55 = arith.constant 1.000000e+00 : f32
    %116 = vector.broadcast %cst_55 : f32 to vector<8x32xf32>
    %117 = arith.addf %116, %115 : vector<8x32xf32>
    %118 = arith.divf %116, %117 : vector<8x32xf32>
    %119 = vector.extract_strided_slice %106 {offsets = [0, 64], sizes = [8, 32], strides = [1, 1]} : vector<8x128xf32> to vector<8x32xf32>
    %120 = math.tanh %119 : vector<8x32xf32>
    %121 = vector.extract_strided_slice %106 {offsets = [0, 96], sizes = [8, 32], strides = [1, 1]} : vector<8x128xf32> to vector<8x32xf32>
    %122 = arith.negf %121 : vector<8x32xf32>
    %123 = math.exp %122 : vector<8x32xf32>
    %cst_56 = arith.constant 1.000000e+00 : f32
    %124 = vector.broadcast %cst_56 : f32 to vector<8x32xf32>
    %125 = arith.addf %124, %123 : vector<8x32xf32>
    %126 = arith.divf %124, %125 : vector<8x32xf32>
    %127 = arith.mulf %118, %55 : vector<8x32xf32>
    %128 = arith.mulf %112, %120 : vector<8x32xf32>
    %129 = arith.addf %127, %128 : vector<8x32xf32>
    %130 = math.tanh %129 : vector<8x32xf32>
    %131 = arith.mulf %126, %130 : vector<8x32xf32>
    %c7_i32_57 = arith.constant 7 : i32
    %132 = arith.subi %c7_i32_57, %c1_i32 : i32
    %133 = arith.index_cast %132 : i32 to index
    %c0_58 = arith.constant 0 : index
    %c0_59 = arith.constant 0 : index
    %134 = vector.load %arg12[%133, %c0_58, %c0_59] : memref<8x8x128xf32, #tpu.memory_space<vmem>>, vector<1x8x128xf32>
    %135 = vector.shape_cast %134 : vector<1x8x128xf32> to vector<8x128xf32>
    %136 = arith.truncf %89 : vector<8x32xf32> to vector<8x32xbf16>
    %cst_60 = arith.constant dense<0.000000e+00> : vector<8x128xf32>
    %137 = tpu.matmul %136, %22, %cst_60 {dimension_numbers = #tpu.dot_dimension_numbers<[1], [0], [0], [1], [0, 0, 1, 1], [], []>} : vector<8x32xbf16>, vector<32x128xbf16>, vector<8x128xf32> -> vector<8x128xf32>
    %138 = arith.addf %135, %137 : vector<8x128xf32>
    %139 = vector.extract_strided_slice %138 {offsets = [0, 0], sizes = [8, 32], strides = [1, 1]} : vector<8x128xf32> to vector<8x32xf32>
    %140 = arith.negf %139 : vector<8x32xf32>
    %141 = math.exp %140 : vector<8x32xf32>
    %cst_61 = arith.constant 1.000000e+00 : f32
    %142 = vector.broadcast %cst_61 : f32 to vector<8x32xf32>
    %143 = arith.addf %142, %141 : vector<8x32xf32>
    %144 = arith.divf %142, %143 : vector<8x32xf32>
    %145 = vector.extract_strided_slice %138 {offsets = [0, 32], sizes = [8, 32], strides = [1, 1]} : vector<8x128xf32> to vector<8x32xf32>
    %146 = arith.negf %145 : vector<8x32xf32>
    %147 = math.exp %146 : vector<8x32xf32>
    %cst_62 = arith.constant 1.000000e+00 : f32
    %148 = vector.broadcast %cst_62 : f32 to vector<8x32xf32>
    %149 = arith.addf %148, %147 : vector<8x32xf32>
    %150 = arith.divf %148, %149 : vector<8x32xf32>
    %151 = vector.extract_strided_slice %138 {offsets = [0, 64], sizes = [8, 32], strides = [1, 1]} : vector<8x128xf32> to vector<8x32xf32>
    %152 = math.tanh %151 : vector<8x32xf32>
    %153 = vector.extract_strided_slice %138 {offsets = [0, 96], sizes = [8, 32], strides = [1, 1]} : vector<8x128xf32> to vector<8x32xf32>
    %154 = arith.negf %153 : vector<8x32xf32>
    %155 = math.exp %154 : vector<8x32xf32>
    %cst_63 = arith.constant 1.000000e+00 : f32
    %156 = vector.broadcast %cst_63 : f32 to vector<8x32xf32>
    %157 = arith.addf %156, %155 : vector<8x32xf32>
    %158 = arith.divf %156, %157 : vector<8x32xf32>
    %159 = arith.mulf %150, %87 : vector<8x32xf32>
    %160 = arith.mulf %144, %152 : vector<8x32xf32>
    %161 = arith.addf %159, %160 : vector<8x32xf32>
    %162 = math.tanh %161 : vector<8x32xf32>
    %163 = arith.mulf %158, %162 : vector<8x32xf32>
    %164 = arith.truncf %131 : vector<8x32xf32> to vector<8x32xbf16>
    %165 = arith.index_cast %c1_i32 : i32 to index
    %c0_64 = arith.constant 0 : index
    %c0_65 = arith.constant 0 : index
    %166 = vector.load %arg9[%165, %c0_64, %c0_65] : memref<8x8x32xbf16, #tpu.memory_space<vmem>>, vector<1x8x32xbf16>
    %167 = vector.shape_cast %166 : vector<1x8x32xbf16> to vector<8x32xbf16>
    %168 = vector.shape_cast %164 : vector<8x32xbf16> to vector<1x8x32xbf16>
    tpu.vector_store %arg9[%165, %c0_64, %c0_65], %168 {strides = array<i32>} : memref<8x8x32xbf16, #tpu.memory_space<vmem>>, vector<1x8x32xbf16>,
    %169 = arith.truncf %163 : vector<8x32xf32> to vector<8x32xbf16>
    %c7_i32_66 = arith.constant 7 : i32
    %170 = arith.subi %c7_i32_66, %c1_i32 : i32
    %171 = arith.index_cast %170 : i32 to index
    %c0_67 = arith.constant 0 : index
    %c0_68 = arith.constant 0 : index
    %172 = vector.load %arg10[%171, %c0_67, %c0_68] : memref<8x8x32xbf16, #tpu.memory_space<vmem>>, vector<1x8x32xbf16>
    %173 = vector.shape_cast %172 : vector<1x8x32xbf16> to vector<8x32xbf16>
    %174 = vector.shape_cast %169 : vector<8x32xbf16> to vector<1x8x32xbf16>
    tpu.vector_store %arg10[%171, %c0_67, %c0_68], %174 {strides = array<i32>} : memref<8x8x32xbf16, #tpu.memory_space<vmem>>, vector<1x8x32xbf16>,
    %c2_i32 = arith.constant 2 : i32
    %175 = arith.index_cast %c2_i32 : i32 to index
    %c0_69 = arith.constant 0 : index
    %c0_70 = arith.constant 0 : index
    %176 = vector.load %arg11[%175, %c0_69, %c0_70] : memref<8x8x128xf32, #tpu.memory_space<vmem>>, vector<1x8x128xf32>
    %177 = vector.shape_cast %176 : vector<1x8x128xf32> to vector<8x128xf32>
    %178 = arith.truncf %131 : vector<8x32xf32> to vector<8x32xbf16>
    %cst_71 = arith.constant dense<0.000000e+00> : vector<8x128xf32>
    %179 = tpu.matmul %178, %21, %cst_71 {dimension_numbers = #tpu.dot_dimension_numbers<[1], [0], [0], [1], [0, 0, 1, 1], [], []>} : vector<8x32xbf16>, vector<32x128xbf16>, vector<8x128xf32> -> vector<8x128xf32>
    %180 = arith.addf %177, %179 : vector<8x128xf32>
    %181 = vector.extract_strided_slice %180 {offsets = [0, 0], sizes = [8, 32], strides = [1, 1]} : vector<8x128xf32> to vector<8x32xf32>
    %182 = arith.negf %181 : vector<8x32xf32>
    %183 = math.exp %182 : vector<8x32xf32>
    %cst_72 = arith.constant 1.000000e+00 : f32
    %184 = vector.broadcast %cst_72 : f32 to vector<8x32xf32>
    %185 = arith.addf %184, %183 : vector<8x32xf32>
    %186 = arith.divf %184, %185 : vector<8x32xf32>
    %187 = vector.extract_strided_slice %180 {offsets = [0, 32], sizes = [8, 32], strides = [1, 1]} : vector<8x128xf32> to vector<8x32xf32>
    %188 = arith.negf %187 : vector<8x32xf32>
    %189 = math.exp %188 : vector<8x32xf32>
    %cst_73 = arith.constant 1.000000e+00 : f32
    %190 = vector.broadcast %cst_73 : f32 to vector<8x32xf32>
    %191 = arith.addf %190, %189 : vector<8x32xf32>
    %192 = arith.divf %190, %191 : vector<8x32xf32>
    %193 = vector.extract_strided_slice %180 {offsets = [0, 64], sizes = [8, 32], strides = [1, 1]} : vector<8x128xf32> to vector<8x32xf32>
    %194 = math.tanh %193 : vector<8x32xf32>
    %195 = vector.extract_strided_slice %180 {offsets = [0, 96], sizes = [8, 32], strides = [1, 1]} : vector<8x128xf32> to vector<8x32xf32>
    %196 = arith.negf %195 : vector<8x32xf32>
    %197 = math.exp %196 : vector<8x32xf32>
    %cst_74 = arith.constant 1.000000e+00 : f32
    %198 = vector.broadcast %cst_74 : f32 to vector<8x32xf32>
    %199 = arith.addf %198, %197 : vector<8x32xf32>
    %200 = arith.divf %198, %199 : vector<8x32xf32>
    %201 = arith.mulf %192, %129 : vector<8x32xf32>
    %202 = arith.mulf %186, %194 : vector<8x32xf32>
    %203 = arith.addf %201, %202 : vector<8x32xf32>
    %204 = math.tanh %203 : vector<8x32xf32>
    %205 = arith.mulf %200, %204 : vector<8x32xf32>
    %c7_i32_75 = arith.constant 7 : i32
    %206 = arith.subi %c7_i32_75, %c2_i32 : i32
    %207 = arith.index_cast %206 : i32 to index
    %c0_76 = arith.constant 0 : index
    %c0_77 = arith.constant 0 : index
    %208 = vector.load %arg12[%207, %c0_76, %c0_77] : memref<8x8x128xf32, #tpu.memory_space<vmem>>, vector<1x8x128xf32>
    %209 = vector.shape_cast %208 : vector<1x8x128xf32> to vector<8x128xf32>
    %210 = arith.truncf %163 : vector<8x32xf32> to vector<8x32xbf16>
    %cst_78 = arith.constant dense<0.000000e+00> : vector<8x128xf32>
    %211 = tpu.matmul %210, %22, %cst_78 {dimension_numbers = #tpu.dot_dimension_numbers<[1], [0], [0], [1], [0, 0, 1, 1], [], []>} : vector<8x32xbf16>, vector<32x128xbf16>, vector<8x128xf32> -> vector<8x128xf32>
    %212 = arith.addf %209, %211 : vector<8x128xf32>
    %213 = vector.extract_strided_slice %212 {offsets = [0, 0], sizes = [8, 32], strides = [1, 1]} : vector<8x128xf32> to vector<8x32xf32>
    %214 = arith.negf %213 : vector<8x32xf32>
    %215 = math.exp %214 : vector<8x32xf32>
    %cst_79 = arith.constant 1.000000e+00 : f32
    %216 = vector.broadcast %cst_79 : f32 to vector<8x32xf32>
    %217 = arith.addf %216, %215 : vector<8x32xf32>
    %218 = arith.divf %216, %217 : vector<8x32xf32>
    %219 = vector.extract_strided_slice %212 {offsets = [0, 32], sizes = [8, 32], strides = [1, 1]} : vector<8x128xf32> to vector<8x32xf32>
    %220 = arith.negf %219 : vector<8x32xf32>
    %221 = math.exp %220 : vector<8x32xf32>
    %cst_80 = arith.constant 1.000000e+00 : f32
    %222 = vector.broadcast %cst_80 : f32 to vector<8x32xf32>
    %223 = arith.addf %222, %221 : vector<8x32xf32>
    %224 = arith.divf %222, %223 : vector<8x32xf32>
    %225 = vector.extract_strided_slice %212 {offsets = [0, 64], sizes = [8, 32], strides = [1, 1]} : vector<8x128xf32> to vector<8x32xf32>
    %226 = math.tanh %225 : vector<8x32xf32>
    %227 = vector.extract_strided_slice %212 {offsets = [0, 96], sizes = [8, 32], strides = [1, 1]} : vector<8x128xf32> to vector<8x32xf32>
    %228 = arith.negf %227 : vector<8x32xf32>
    %229 = math.exp %228 : vector<8x32xf32>
    %cst_81 = arith.constant 1.000000e+00 : f32
    %230 = vector.broadcast %cst_81 : f32 to vector<8x32xf32>
    %231 = arith.addf %230, %229 : vector<8x32xf32>
    %232 = arith.divf %230, %231 : vector<8x32xf32>
    %233 = arith.mulf %224, %161 : vector<8x32xf32>
    %234 = arith.mulf %218, %226 : vector<8x32xf32>
    %235 = arith.addf %233, %234 : vector<8x32xf32>
    %236 = math.tanh %235 : vector<8x32xf32>
    %237 = arith.mulf %232, %236 : vector<8x32xf32>
    %238 = arith.truncf %205 : vector<8x32xf32> to vector<8x32xbf16>
    %239 = arith.index_cast %c2_i32 : i32 to index
    %c0_82 = arith.constant 0 : index
    %c0_83 = arith.constant 0 : index
    %240 = vector.load %arg9[%239, %c0_82, %c0_83] : memref<8x8x32xbf16, #tpu.memory_space<vmem>>, vector<1x8x32xbf16>
    %241 = vector.shape_cast %240 : vector<1x8x32xbf16> to vector<8x32xbf16>
    %242 = vector.shape_cast %238 : vector<8x32xbf16> to vector<1x8x32xbf16>
    tpu.vector_store %arg9[%239, %c0_82, %c0_83], %242 {strides = array<i32>} : memref<8x8x32xbf16, #tpu.memory_space<vmem>>, vector<1x8x32xbf16>,
    %243 = arith.truncf %237 : vector<8x32xf32> to vector<8x32xbf16>
    %c7_i32_84 = arith.constant 7 : i32
    %244 = arith.subi %c7_i32_84, %c2_i32 : i32
    %245 = arith.index_cast %244 : i32 to index
    %c0_85 = arith.constant 0 : index
    %c0_86 = arith.constant 0 : index
    %246 = vector.load %arg10[%245, %c0_85, %c0_86] : memref<8x8x32xbf16, #tpu.memory_space<vmem>>, vector<1x8x32xbf16>
    %247 = vector.shape_cast %246 : vector<1x8x32xbf16> to vector<8x32xbf16>
    %248 = vector.shape_cast %243 : vector<8x32xbf16> to vector<1x8x32xbf16>
    tpu.vector_store %arg10[%245, %c0_85, %c0_86], %248 {strides = array<i32>} : memref<8x8x32xbf16, #tpu.memory_space<vmem>>, vector<1x8x32xbf16>,
    %c3_i32 = arith.constant 3 : i32
    %249 = arith.index_cast %c3_i32 : i32 to index
    %c0_87 = arith.constant 0 : index
    %c0_88 = arith.constant 0 : index
    %250 = vector.load %arg11[%249, %c0_87, %c0_88] : memref<8x8x128xf32, #tpu.memory_space<vmem>>, vector<1x8x128xf32>
    %251 = vector.shape_cast %250 : vector<1x8x128xf32> to vector<8x128xf32>
    %252 = arith.truncf %205 : vector<8x32xf32> to vector<8x32xbf16>
    %cst_89 = arith.constant dense<0.000000e+00> : vector<8x128xf32>
    %253 = tpu.matmul %252, %21, %cst_89 {dimension_numbers = #tpu.dot_dimension_numbers<[1], [0], [0], [1], [0, 0, 1, 1], [], []>} : vector<8x32xbf16>, vector<32x128xbf16>, vector<8x128xf32> -> vector<8x128xf32>
    %254 = arith.addf %251, %253 : vector<8x128xf32>
    %255 = vector.extract_strided_slice %254 {offsets = [0, 0], sizes = [8, 32], strides = [1, 1]} : vector<8x128xf32> to vector<8x32xf32>
    %256 = arith.negf %255 : vector<8x32xf32>
    %257 = math.exp %256 : vector<8x32xf32>
    %cst_90 = arith.constant 1.000000e+00 : f32
    %258 = vector.broadcast %cst_90 : f32 to vector<8x32xf32>
    %259 = arith.addf %258, %257 : vector<8x32xf32>
    %260 = arith.divf %258, %259 : vector<8x32xf32>
    %261 = vector.extract_strided_slice %254 {offsets = [0, 32], sizes = [8, 32], strides = [1, 1]} : vector<8x128xf32> to vector<8x32xf32>
    %262 = arith.negf %261 : vector<8x32xf32>
    %263 = math.exp %262 : vector<8x32xf32>
    %cst_91 = arith.constant 1.000000e+00 : f32
    %264 = vector.broadcast %cst_91 : f32 to vector<8x32xf32>
    %265 = arith.addf %264, %263 : vector<8x32xf32>
    %266 = arith.divf %264, %265 : vector<8x32xf32>
    %267 = vector.extract_strided_slice %254 {offsets = [0, 64], sizes = [8, 32], strides = [1, 1]} : vector<8x128xf32> to vector<8x32xf32>
    %268 = math.tanh %267 : vector<8x32xf32>
    %269 = vector.extract_strided_slice %254 {offsets = [0, 96], sizes = [8, 32], strides = [1, 1]} : vector<8x128xf32> to vector<8x32xf32>
    %270 = arith.negf %269 : vector<8x32xf32>
    %271 = math.exp %270 : vector<8x32xf32>
    %cst_92 = arith.constant 1.000000e+00 : f32
    %272 = vector.broadcast %cst_92 : f32 to vector<8x32xf32>
    %273 = arith.addf %272, %271 : vector<8x32xf32>
    %274 = arith.divf %272, %273 : vector<8x32xf32>
    %275 = arith.mulf %266, %203 : vector<8x32xf32>
    %276 = arith.mulf %260, %268 : vector<8x32xf32>
    %277 = arith.addf %275, %276 : vector<8x32xf32>
    %278 = math.tanh %277 : vector<8x32xf32>
    %279 = arith.mulf %274, %278 : vector<8x32xf32>
    %c7_i32_93 = arith.constant 7 : i32
    %280 = arith.subi %c7_i32_93, %c3_i32 : i32
    %281 = arith.index_cast %280 : i32 to index
    %c0_94 = arith.constant 0 : index
    %c0_95 = arith.constant 0 : index
    %282 = vector.load %arg12[%281, %c0_94, %c0_95] : memref<8x8x128xf32, #tpu.memory_space<vmem>>, vector<1x8x128xf32>
    %283 = vector.shape_cast %282 : vector<1x8x128xf32> to vector<8x128xf32>
    %284 = arith.truncf %237 : vector<8x32xf32> to vector<8x32xbf16>
    %cst_96 = arith.constant dense<0.000000e+00> : vector<8x128xf32>
    %285 = tpu.matmul %284, %22, %cst_96 {dimension_numbers = #tpu.dot_dimension_numbers<[1], [0], [0], [1], [0, 0, 1, 1], [], []>} : vector<8x32xbf16>, vector<32x128xbf16>, vector<8x128xf32> -> vector<8x128xf32>
    %286 = arith.addf %283, %285 : vector<8x128xf32>
    %287 = vector.extract_strided_slice %286 {offsets = [0, 0], sizes = [8, 32], strides = [1, 1]} : vector<8x128xf32> to vector<8x32xf32>
    %288 = arith.negf %287 : vector<8x32xf32>
    %289 = math.exp %288 : vector<8x32xf32>
    %cst_97 = arith.constant 1.000000e+00 : f32
    %290 = vector.broadcast %cst_97 : f32 to vector<8x32xf32>
    %291 = arith.addf %290, %289 : vector<8x32xf32>
    %292 = arith.divf %290, %291 : vector<8x32xf32>
    %293 = vector.extract_strided_slice %286 {offsets = [0, 32], sizes = [8, 32], strides = [1, 1]} : vector<8x128xf32> to vector<8x32xf32>
    %294 = arith.negf %293 : vector<8x32xf32>
    %295 = math.exp %294 : vector<8x32xf32>
    %cst_98 = arith.constant 1.000000e+00 : f32
    %296 = vector.broadcast %cst_98 : f32 to vector<8x32xf32>
    %297 = arith.addf %296, %295 : vector<8x32xf32>
    %298 = arith.divf %296, %297 : vector<8x32xf32>
    %299 = vector.extract_strided_slice %286 {offsets = [0, 64], sizes = [8, 32], strides = [1, 1]} : vector<8x128xf32> to vector<8x32xf32>
    %300 = math.tanh %299 : vector<8x32xf32>
    %301 = vector.extract_strided_slice %286 {offsets = [0, 96], sizes = [8, 32], strides = [1, 1]} : vector<8x128xf32> to vector<8x32xf32>
    %302 = arith.negf %301 : vector<8x32xf32>
    %303 = math.exp %302 : vector<8x32xf32>
    %cst_99 = arith.constant 1.000000e+00 : f32
    %304 = vector.broadcast %cst_99 : f32 to vector<8x32xf32>
    %305 = arith.addf %304, %303 : vector<8x32xf32>
    %306 = arith.divf %304, %305 : vector<8x32xf32>
    %307 = arith.mulf %298, %235 : vector<8x32xf32>
    %308 = arith.mulf %292, %300 : vector<8x32xf32>
    %309 = arith.addf %307, %308 : vector<8x32xf32>
    %310 = math.tanh %309 : vector<8x32xf32>
    %311 = arith.mulf %306, %310 : vector<8x32xf32>
    %312 = arith.truncf %279 : vector<8x32xf32> to vector<8x32xbf16>
    %313 = arith.index_cast %c3_i32 : i32 to index
    %c0_100 = arith.constant 0 : index
    %c0_101 = arith.constant 0 : index
    %314 = vector.load %arg9[%313, %c0_100, %c0_101] : memref<8x8x32xbf16, #tpu.memory_space<vmem>>, vector<1x8x32xbf16>
    %315 = vector.shape_cast %314 : vector<1x8x32xbf16> to vector<8x32xbf16>
    %316 = vector.shape_cast %312 : vector<8x32xbf16> to vector<1x8x32xbf16>
    tpu.vector_store %arg9[%313, %c0_100, %c0_101], %316 {strides = array<i32>} : memref<8x8x32xbf16, #tpu.memory_space<vmem>>, vector<1x8x32xbf16>,
    %317 = arith.truncf %311 : vector<8x32xf32> to vector<8x32xbf16>
    %c7_i32_102 = arith.constant 7 : i32
    %318 = arith.subi %c7_i32_102, %c3_i32 : i32
    %319 = arith.index_cast %318 : i32 to index
    %c0_103 = arith.constant 0 : index
    %c0_104 = arith.constant 0 : index
    %320 = vector.load %arg10[%319, %c0_103, %c0_104] : memref<8x8x32xbf16, #tpu.memory_space<vmem>>, vector<1x8x32xbf16>
    %321 = vector.shape_cast %320 : vector<1x8x32xbf16> to vector<8x32xbf16>
    %322 = vector.shape_cast %317 : vector<8x32xbf16> to vector<1x8x32xbf16>
    tpu.vector_store %arg10[%319, %c0_103, %c0_104], %322 {strides = array<i32>} : memref<8x8x32xbf16, #tpu.memory_space<vmem>>, vector<1x8x32xbf16>,
    %c4_i32 = arith.constant 4 : i32
    %323 = arith.index_cast %c4_i32 : i32 to index
    %c0_105 = arith.constant 0 : index
    %c0_106 = arith.constant 0 : index
    %324 = vector.load %arg11[%323, %c0_105, %c0_106] : memref<8x8x128xf32, #tpu.memory_space<vmem>>, vector<1x8x128xf32>
    %325 = vector.shape_cast %324 : vector<1x8x128xf32> to vector<8x128xf32>
    %326 = arith.truncf %279 : vector<8x32xf32> to vector<8x32xbf16>
    %cst_107 = arith.constant dense<0.000000e+00> : vector<8x128xf32>
    %327 = tpu.matmul %326, %21, %cst_107 {dimension_numbers = #tpu.dot_dimension_numbers<[1], [0], [0], [1], [0, 0, 1, 1], [], []>} : vector<8x32xbf16>, vector<32x128xbf16>, vector<8x128xf32> -> vector<8x128xf32>
    %328 = arith.addf %325, %327 : vector<8x128xf32>
    %329 = vector.extract_strided_slice %328 {offsets = [0, 0], sizes = [8, 32], strides = [1, 1]} : vector<8x128xf32> to vector<8x32xf32>
    %330 = arith.negf %329 : vector<8x32xf32>
    %331 = math.exp %330 : vector<8x32xf32>
    %cst_108 = arith.constant 1.000000e+00 : f32
    %332 = vector.broadcast %cst_108 : f32 to vector<8x32xf32>
    %333 = arith.addf %332, %331 : vector<8x32xf32>
    %334 = arith.divf %332, %333 : vector<8x32xf32>
    %335 = vector.extract_strided_slice %328 {offsets = [0, 32], sizes = [8, 32], strides = [1, 1]} : vector<8x128xf32> to vector<8x32xf32>
    %336 = arith.negf %335 : vector<8x32xf32>
    %337 = math.exp %336 : vector<8x32xf32>
    %cst_109 = arith.constant 1.000000e+00 : f32
    %338 = vector.broadcast %cst_109 : f32 to vector<8x32xf32>
    %339 = arith.addf %338, %337 : vector<8x32xf32>
    %340 = arith.divf %338, %339 : vector<8x32xf32>
    %341 = vector.extract_strided_slice %328 {offsets = [0, 64], sizes = [8, 32], strides = [1, 1]} : vector<8x128xf32> to vector<8x32xf32>
    %342 = math.tanh %341 : vector<8x32xf32>
    %343 = vector.extract_strided_slice %328 {offsets = [0, 96], sizes = [8, 32], strides = [1, 1]} : vector<8x128xf32> to vector<8x32xf32>
    %344 = arith.negf %343 : vector<8x32xf32>
    %345 = math.exp %344 : vector<8x32xf32>
    %cst_110 = arith.constant 1.000000e+00 : f32
    %346 = vector.broadcast %cst_110 : f32 to vector<8x32xf32>
    %347 = arith.addf %346, %345 : vector<8x32xf32>
    %348 = arith.divf %346, %347 : vector<8x32xf32>
    %349 = arith.mulf %340, %277 : vector<8x32xf32>
    %350 = arith.mulf %334, %342 : vector<8x32xf32>
    %351 = arith.addf %349, %350 : vector<8x32xf32>
    %352 = math.tanh %351 : vector<8x32xf32>
    %353 = arith.mulf %348, %352 : vector<8x32xf32>
    %c7_i32_111 = arith.constant 7 : i32
    %354 = arith.subi %c7_i32_111, %c4_i32 : i32
    %355 = arith.index_cast %354 : i32 to index
    %c0_112 = arith.constant 0 : index
    %c0_113 = arith.constant 0 : index
    %356 = vector.load %arg12[%355, %c0_112, %c0_113] : memref<8x8x128xf32, #tpu.memory_space<vmem>>, vector<1x8x128xf32>
    %357 = vector.shape_cast %356 : vector<1x8x128xf32> to vector<8x128xf32>
    %358 = arith.truncf %311 : vector<8x32xf32> to vector<8x32xbf16>
    %cst_114 = arith.constant dense<0.000000e+00> : vector<8x128xf32>
    %359 = tpu.matmul %358, %22, %cst_114 {dimension_numbers = #tpu.dot_dimension_numbers<[1], [0], [0], [1], [0, 0, 1, 1], [], []>} : vector<8x32xbf16>, vector<32x128xbf16>, vector<8x128xf32> -> vector<8x128xf32>
    %360 = arith.addf %357, %359 : vector<8x128xf32>
    %361 = vector.extract_strided_slice %360 {offsets = [0, 0], sizes = [8, 32], strides = [1, 1]} : vector<8x128xf32> to vector<8x32xf32>
    %362 = arith.negf %361 : vector<8x32xf32>
    %363 = math.exp %362 : vector<8x32xf32>
    %cst_115 = arith.constant 1.000000e+00 : f32
    %364 = vector.broadcast %cst_115 : f32 to vector<8x32xf32>
    %365 = arith.addf %364, %363 : vector<8x32xf32>
    %366 = arith.divf %364, %365 : vector<8x32xf32>
    %367 = vector.extract_strided_slice %360 {offsets = [0, 32], sizes = [8, 32], strides = [1, 1]} : vector<8x128xf32> to vector<8x32xf32>
    %368 = arith.negf %367 : vector<8x32xf32>
    %369 = math.exp %368 : vector<8x32xf32>
    %cst_116 = arith.constant 1.000000e+00 : f32
    %370 = vector.broadcast %cst_116 : f32 to vector<8x32xf32>
    %371 = arith.addf %370, %369 : vector<8x32xf32>
    %372 = arith.divf %370, %371 : vector<8x32xf32>
    %373 = vector.extract_strided_slice %360 {offsets = [0, 64], sizes = [8, 32], strides = [1, 1]} : vector<8x128xf32> to vector<8x32xf32>
    %374 = math.tanh %373 : vector<8x32xf32>
    %375 = vector.extract_strided_slice %360 {offsets = [0, 96], sizes = [8, 32], strides = [1, 1]} : vector<8x128xf32> to vector<8x32xf32>
    %376 = arith.negf %375 : vector<8x32xf32>
    %377 = math.exp %376 : vector<8x32xf32>
    %cst_117 = arith.constant 1.000000e+00 : f32
    %378 = vector.broadcast %cst_117 : f32 to vector<8x32xf32>
    %379 = arith.addf %378, %377 : vector<8x32xf32>
    %380 = arith.divf %378, %379 : vector<8x32xf32>
    %381 = arith.mulf %372, %309 : vector<8x32xf32>
    %382 = arith.mulf %366, %374 : vector<8x32xf32>
    %383 = arith.addf %381, %382 : vector<8x32xf32>
    %384 = math.tanh %383 : vector<8x32xf32>
    %385 = arith.mulf %380, %384 : vector<8x32xf32>
    %386 = arith.truncf %353 : vector<8x32xf32> to vector<8x32xbf16>
    %387 = arith.index_cast %c4_i32 : i32 to index
    %c0_118 = arith.constant 0 : index
    %c0_119 = arith.constant 0 : index
    %388 = vector.load %arg9[%387, %c0_118, %c0_119] : memref<8x8x32xbf16, #tpu.memory_space<vmem>>, vector<1x8x32xbf16>
    %389 = vector.shape_cast %388 : vector<1x8x32xbf16> to vector<8x32xbf16>
    %390 = vector.shape_cast %386 : vector<8x32xbf16> to vector<1x8x32xbf16>
    tpu.vector_store %arg9[%387, %c0_118, %c0_119], %390 {strides = array<i32>} : memref<8x8x32xbf16, #tpu.memory_space<vmem>>, vector<1x8x32xbf16>,
    %391 = arith.truncf %385 : vector<8x32xf32> to vector<8x32xbf16>
    %c7_i32_120 = arith.constant 7 : i32
    %392 = arith.subi %c7_i32_120, %c4_i32 : i32
    %393 = arith.index_cast %392 : i32 to index
    %c0_121 = arith.constant 0 : index
    %c0_122 = arith.constant 0 : index
    %394 = vector.load %arg10[%393, %c0_121, %c0_122] : memref<8x8x32xbf16, #tpu.memory_space<vmem>>, vector<1x8x32xbf16>
    %395 = vector.shape_cast %394 : vector<1x8x32xbf16> to vector<8x32xbf16>
    %396 = vector.shape_cast %391 : vector<8x32xbf16> to vector<1x8x32xbf16>
    tpu.vector_store %arg10[%393, %c0_121, %c0_122], %396 {strides = array<i32>} : memref<8x8x32xbf16, #tpu.memory_space<vmem>>, vector<1x8x32xbf16>,
    %c5_i32 = arith.constant 5 : i32
    %397 = arith.index_cast %c5_i32 : i32 to index
    %c0_123 = arith.constant 0 : index
    %c0_124 = arith.constant 0 : index
    %398 = vector.load %arg11[%397, %c0_123, %c0_124] : memref<8x8x128xf32, #tpu.memory_space<vmem>>, vector<1x8x128xf32>
    %399 = vector.shape_cast %398 : vector<1x8x128xf32> to vector<8x128xf32>
    %400 = arith.truncf %353 : vector<8x32xf32> to vector<8x32xbf16>
    %cst_125 = arith.constant dense<0.000000e+00> : vector<8x128xf32>
    %401 = tpu.matmul %400, %21, %cst_125 {dimension_numbers = #tpu.dot_dimension_numbers<[1], [0], [0], [1], [0, 0, 1, 1], [], []>} : vector<8x32xbf16>, vector<32x128xbf16>, vector<8x128xf32> -> vector<8x128xf32>
    %402 = arith.addf %399, %401 : vector<8x128xf32>
    %403 = vector.extract_strided_slice %402 {offsets = [0, 0], sizes = [8, 32], strides = [1, 1]} : vector<8x128xf32> to vector<8x32xf32>
    %404 = arith.negf %403 : vector<8x32xf32>
    %405 = math.exp %404 : vector<8x32xf32>
    %cst_126 = arith.constant 1.000000e+00 : f32
    %406 = vector.broadcast %cst_126 : f32 to vector<8x32xf32>
    %407 = arith.addf %406, %405 : vector<8x32xf32>
    %408 = arith.divf %406, %407 : vector<8x32xf32>
    %409 = vector.extract_strided_slice %402 {offsets = [0, 32], sizes = [8, 32], strides = [1, 1]} : vector<8x128xf32> to vector<8x32xf32>
    %410 = arith.negf %409 : vector<8x32xf32>
    %411 = math.exp %410 : vector<8x32xf32>
    %cst_127 = arith.constant 1.000000e+00 : f32
    %412 = vector.broadcast %cst_127 : f32 to vector<8x32xf32>
    %413 = arith.addf %412, %411 : vector<8x32xf32>
    %414 = arith.divf %412, %413 : vector<8x32xf32>
    %415 = vector.extract_strided_slice %402 {offsets = [0, 64], sizes = [8, 32], strides = [1, 1]} : vector<8x128xf32> to vector<8x32xf32>
    %416 = math.tanh %415 : vector<8x32xf32>
    %417 = vector.extract_strided_slice %402 {offsets = [0, 96], sizes = [8, 32], strides = [1, 1]} : vector<8x128xf32> to vector<8x32xf32>
    %418 = arith.negf %417 : vector<8x32xf32>
    %419 = math.exp %418 : vector<8x32xf32>
    %cst_128 = arith.constant 1.000000e+00 : f32
    %420 = vector.broadcast %cst_128 : f32 to vector<8x32xf32>
    %421 = arith.addf %420, %419 : vector<8x32xf32>
    %422 = arith.divf %420, %421 : vector<8x32xf32>
    %423 = arith.mulf %414, %351 : vector<8x32xf32>
    %424 = arith.mulf %408, %416 : vector<8x32xf32>
    %425 = arith.addf %423, %424 : vector<8x32xf32>
    %426 = math.tanh %425 : vector<8x32xf32>
    %427 = arith.mulf %422, %426 : vector<8x32xf32>
    %c7_i32_129 = arith.constant 7 : i32
    %428 = arith.subi %c7_i32_129, %c5_i32 : i32
    %429 = arith.index_cast %428 : i32 to index
    %c0_130 = arith.constant 0 : index
    %c0_131 = arith.constant 0 : index
    %430 = vector.load %arg12[%429, %c0_130, %c0_131] : memref<8x8x128xf32, #tpu.memory_space<vmem>>, vector<1x8x128xf32>
    %431 = vector.shape_cast %430 : vector<1x8x128xf32> to vector<8x128xf32>
    %432 = arith.truncf %385 : vector<8x32xf32> to vector<8x32xbf16>
    %cst_132 = arith.constant dense<0.000000e+00> : vector<8x128xf32>
    %433 = tpu.matmul %432, %22, %cst_132 {dimension_numbers = #tpu.dot_dimension_numbers<[1], [0], [0], [1], [0, 0, 1, 1], [], []>} : vector<8x32xbf16>, vector<32x128xbf16>, vector<8x128xf32> -> vector<8x128xf32>
    %434 = arith.addf %431, %433 : vector<8x128xf32>
    %435 = vector.extract_strided_slice %434 {offsets = [0, 0], sizes = [8, 32], strides = [1, 1]} : vector<8x128xf32> to vector<8x32xf32>
    %436 = arith.negf %435 : vector<8x32xf32>
    %437 = math.exp %436 : vector<8x32xf32>
    %cst_133 = arith.constant 1.000000e+00 : f32
    %438 = vector.broadcast %cst_133 : f32 to vector<8x32xf32>
    %439 = arith.addf %438, %437 : vector<8x32xf32>
    %440 = arith.divf %438, %439 : vector<8x32xf32>
    %441 = vector.extract_strided_slice %434 {offsets = [0, 32], sizes = [8, 32], strides = [1, 1]} : vector<8x128xf32> to vector<8x32xf32>
    %442 = arith.negf %441 : vector<8x32xf32>
    %443 = math.exp %442 : vector<8x32xf32>
    %cst_134 = arith.constant 1.000000e+00 : f32
    %444 = vector.broadcast %cst_134 : f32 to vector<8x32xf32>
    %445 = arith.addf %444, %443 : vector<8x32xf32>
    %446 = arith.divf %444, %445 : vector<8x32xf32>
    %447 = vector.extract_strided_slice %434 {offsets = [0, 64], sizes = [8, 32], strides = [1, 1]} : vector<8x128xf32> to vector<8x32xf32>
    %448 = math.tanh %447 : vector<8x32xf32>
    %449 = vector.extract_strided_slice %434 {offsets = [0, 96], sizes = [8, 32], strides = [1, 1]} : vector<8x128xf32> to vector<8x32xf32>
    %450 = arith.negf %449 : vector<8x32xf32>
    %451 = math.exp %450 : vector<8x32xf32>
    %cst_135 = arith.constant 1.000000e+00 : f32
    %452 = vector.broadcast %cst_135 : f32 to vector<8x32xf32>
    %453 = arith.addf %452, %451 : vector<8x32xf32>
    %454 = arith.divf %452, %453 : vector<8x32xf32>
    %455 = arith.mulf %446, %383 : vector<8x32xf32>
    %456 = arith.mulf %440, %448 : vector<8x32xf32>
    %457 = arith.addf %455, %456 : vector<8x32xf32>
    %458 = math.tanh %457 : vector<8x32xf32>
    %459 = arith.mulf %454, %458 : vector<8x32xf32>
    %460 = arith.truncf %427 : vector<8x32xf32> to vector<8x32xbf16>
    %461 = arith.index_cast %c5_i32 : i32 to index
    %c0_136 = arith.constant 0 : index
    %c0_137 = arith.constant 0 : index
    %462 = vector.load %arg9[%461, %c0_136, %c0_137] : memref<8x8x32xbf16, #tpu.memory_space<vmem>>, vector<1x8x32xbf16>
    %463 = vector.shape_cast %462 : vector<1x8x32xbf16> to vector<8x32xbf16>
    %464 = vector.shape_cast %460 : vector<8x32xbf16> to vector<1x8x32xbf16>
    tpu.vector_store %arg9[%461, %c0_136, %c0_137], %464 {strides = array<i32>} : memref<8x8x32xbf16, #tpu.memory_space<vmem>>, vector<1x8x32xbf16>,
    %465 = arith.truncf %459 : vector<8x32xf32> to vector<8x32xbf16>
    %c7_i32_138 = arith.constant 7 : i32
    %466 = arith.subi %c7_i32_138, %c5_i32 : i32
    %467 = arith.index_cast %466 : i32 to index
    %c0_139 = arith.constant 0 : index
    %c0_140 = arith.constant 0 : index
    %468 = vector.load %arg10[%467, %c0_139, %c0_140] : memref<8x8x32xbf16, #tpu.memory_space<vmem>>, vector<1x8x32xbf16>
    %469 = vector.shape_cast %468 : vector<1x8x32xbf16> to vector<8x32xbf16>
    %470 = vector.shape_cast %465 : vector<8x32xbf16> to vector<1x8x32xbf16>
    tpu.vector_store %arg10[%467, %c0_139, %c0_140], %470 {strides = array<i32>} : memref<8x8x32xbf16, #tpu.memory_space<vmem>>, vector<1x8x32xbf16>,
    %c6_i32 = arith.constant 6 : i32
    %471 = arith.index_cast %c6_i32 : i32 to index
    %c0_141 = arith.constant 0 : index
    %c0_142 = arith.constant 0 : index
    %472 = vector.load %arg11[%471, %c0_141, %c0_142] : memref<8x8x128xf32, #tpu.memory_space<vmem>>, vector<1x8x128xf32>
    %473 = vector.shape_cast %472 : vector<1x8x128xf32> to vector<8x128xf32>
    %474 = arith.truncf %427 : vector<8x32xf32> to vector<8x32xbf16>
    %cst_143 = arith.constant dense<0.000000e+00> : vector<8x128xf32>
    %475 = tpu.matmul %474, %21, %cst_143 {dimension_numbers = #tpu.dot_dimension_numbers<[1], [0], [0], [1], [0, 0, 1, 1], [], []>} : vector<8x32xbf16>, vector<32x128xbf16>, vector<8x128xf32> -> vector<8x128xf32>
    %476 = arith.addf %473, %475 : vector<8x128xf32>
    %477 = vector.extract_strided_slice %476 {offsets = [0, 0], sizes = [8, 32], strides = [1, 1]} : vector<8x128xf32> to vector<8x32xf32>
    %478 = arith.negf %477 : vector<8x32xf32>
    %479 = math.exp %478 : vector<8x32xf32>
    %cst_144 = arith.constant 1.000000e+00 : f32
    %480 = vector.broadcast %cst_144 : f32 to vector<8x32xf32>
    %481 = arith.addf %480, %479 : vector<8x32xf32>
    %482 = arith.divf %480, %481 : vector<8x32xf32>
    %483 = vector.extract_strided_slice %476 {offsets = [0, 32], sizes = [8, 32], strides = [1, 1]} : vector<8x128xf32> to vector<8x32xf32>
    %484 = arith.negf %483 : vector<8x32xf32>
    %485 = math.exp %484 : vector<8x32xf32>
    %cst_145 = arith.constant 1.000000e+00 : f32
    %486 = vector.broadcast %cst_145 : f32 to vector<8x32xf32>
    %487 = arith.addf %486, %485 : vector<8x32xf32>
    %488 = arith.divf %486, %487 : vector<8x32xf32>
    %489 = vector.extract_strided_slice %476 {offsets = [0, 64], sizes = [8, 32], strides = [1, 1]} : vector<8x128xf32> to vector<8x32xf32>
    %490 = math.tanh %489 : vector<8x32xf32>
    %491 = vector.extract_strided_slice %476 {offsets = [0, 96], sizes = [8, 32], strides = [1, 1]} : vector<8x128xf32> to vector<8x32xf32>
    %492 = arith.negf %491 : vector<8x32xf32>
    %493 = math.exp %492 : vector<8x32xf32>
    %cst_146 = arith.constant 1.000000e+00 : f32
    %494 = vector.broadcast %cst_146 : f32 to vector<8x32xf32>
    %495 = arith.addf %494, %493 : vector<8x32xf32>
    %496 = arith.divf %494, %495 : vector<8x32xf32>
    %497 = arith.mulf %488, %425 : vector<8x32xf32>
    %498 = arith.mulf %482, %490 : vector<8x32xf32>
    %499 = arith.addf %497, %498 : vector<8x32xf32>
    %500 = math.tanh %499 : vector<8x32xf32>
    %501 = arith.mulf %496, %500 : vector<8x32xf32>
    %c7_i32_147 = arith.constant 7 : i32
    %502 = arith.subi %c7_i32_147, %c6_i32 : i32
    %503 = arith.index_cast %502 : i32 to index
    %c0_148 = arith.constant 0 : index
    %c0_149 = arith.constant 0 : index
    %504 = vector.load %arg12[%503, %c0_148, %c0_149] : memref<8x8x128xf32, #tpu.memory_space<vmem>>, vector<1x8x128xf32>
    %505 = vector.shape_cast %504 : vector<1x8x128xf32> to vector<8x128xf32>
    %506 = arith.truncf %459 : vector<8x32xf32> to vector<8x32xbf16>
    %cst_150 = arith.constant dense<0.000000e+00> : vector<8x128xf32>
    %507 = tpu.matmul %506, %22, %cst_150 {dimension_numbers = #tpu.dot_dimension_numbers<[1], [0], [0], [1], [0, 0, 1, 1], [], []>} : vector<8x32xbf16>, vector<32x128xbf16>, vector<8x128xf32> -> vector<8x128xf32>
    %508 = arith.addf %505, %507 : vector<8x128xf32>
    %509 = vector.extract_strided_slice %508 {offsets = [0, 0], sizes = [8, 32], strides = [1, 1]} : vector<8x128xf32> to vector<8x32xf32>
    %510 = arith.negf %509 : vector<8x32xf32>
    %511 = math.exp %510 : vector<8x32xf32>
    %cst_151 = arith.constant 1.000000e+00 : f32
    %512 = vector.broadcast %cst_151 : f32 to vector<8x32xf32>
    %513 = arith.addf %512, %511 : vector<8x32xf32>
    %514 = arith.divf %512, %513 : vector<8x32xf32>
    %515 = vector.extract_strided_slice %508 {offsets = [0, 32], sizes = [8, 32], strides = [1, 1]} : vector<8x128xf32> to vector<8x32xf32>
    %516 = arith.negf %515 : vector<8x32xf32>
    %517 = math.exp %516 : vector<8x32xf32>
    %cst_152 = arith.constant 1.000000e+00 : f32
    %518 = vector.broadcast %cst_152 : f32 to vector<8x32xf32>
    %519 = arith.addf %518, %517 : vector<8x32xf32>
    %520 = arith.divf %518, %519 : vector<8x32xf32>
    %521 = vector.extract_strided_slice %508 {offsets = [0, 64], sizes = [8, 32], strides = [1, 1]} : vector<8x128xf32> to vector<8x32xf32>
    %522 = math.tanh %521 : vector<8x32xf32>
    %523 = vector.extract_strided_slice %508 {offsets = [0, 96], sizes = [8, 32], strides = [1, 1]} : vector<8x128xf32> to vector<8x32xf32>
    %524 = arith.negf %523 : vector<8x32xf32>
    %525 = math.exp %524 : vector<8x32xf32>
    %cst_153 = arith.constant 1.000000e+00 : f32
    %526 = vector.broadcast %cst_153 : f32 to vector<8x32xf32>
    %527 = arith.addf %526, %525 : vector<8x32xf32>
    %528 = arith.divf %526, %527 : vector<8x32xf32>
    %529 = arith.mulf %520, %457 : vector<8x32xf32>
    %530 = arith.mulf %514, %522 : vector<8x32xf32>
    %531 = arith.addf %529, %530 : vector<8x32xf32>
    %532 = math.tanh %531 : vector<8x32xf32>
    %533 = arith.mulf %528, %532 : vector<8x32xf32>
    %534 = arith.truncf %501 : vector<8x32xf32> to vector<8x32xbf16>
    %535 = arith.index_cast %c6_i32 : i32 to index
    %c0_154 = arith.constant 0 : index
    %c0_155 = arith.constant 0 : index
    %536 = vector.load %arg9[%535, %c0_154, %c0_155] : memref<8x8x32xbf16, #tpu.memory_space<vmem>>, vector<1x8x32xbf16>
    %537 = vector.shape_cast %536 : vector<1x8x32xbf16> to vector<8x32xbf16>
    %538 = vector.shape_cast %534 : vector<8x32xbf16> to vector<1x8x32xbf16>
    tpu.vector_store %arg9[%535, %c0_154, %c0_155], %538 {strides = array<i32>} : memref<8x8x32xbf16, #tpu.memory_space<vmem>>, vector<1x8x32xbf16>,
    %539 = arith.truncf %533 : vector<8x32xf32> to vector<8x32xbf16>
    %c7_i32_156 = arith.constant 7 : i32
    %540 = arith.subi %c7_i32_156, %c6_i32 : i32
    %541 = arith.index_cast %540 : i32 to index
    %c0_157 = arith.constant 0 : index
    %c0_158 = arith.constant 0 : index
    %542 = vector.load %arg10[%541, %c0_157, %c0_158] : memref<8x8x32xbf16, #tpu.memory_space<vmem>>, vector<1x8x32xbf16>
    %543 = vector.shape_cast %542 : vector<1x8x32xbf16> to vector<8x32xbf16>
    %544 = vector.shape_cast %539 : vector<8x32xbf16> to vector<1x8x32xbf16>
    tpu.vector_store %arg10[%541, %c0_157, %c0_158], %544 {strides = array<i32>} : memref<8x8x32xbf16, #tpu.memory_space<vmem>>, vector<1x8x32xbf16>,
    %c7_i32_159 = arith.constant 7 : i32
    %545 = arith.index_cast %c7_i32_159 : i32 to index
    %c0_160 = arith.constant 0 : index
    %c0_161 = arith.constant 0 : index
    %546 = vector.load %arg11[%545, %c0_160, %c0_161] : memref<8x8x128xf32, #tpu.memory_space<vmem>>, vector<1x8x128xf32>
    %547 = vector.shape_cast %546 : vector<1x8x128xf32> to vector<8x128xf32>
    %548 = arith.truncf %501 : vector<8x32xf32> to vector<8x32xbf16>
    %cst_162 = arith.constant dense<0.000000e+00> : vector<8x128xf32>
    %549 = tpu.matmul %548, %21, %cst_162 {dimension_numbers = #tpu.dot_dimension_numbers<[1], [0], [0], [1], [0, 0, 1, 1], [], []>} : vector<8x32xbf16>, vector<32x128xbf16>, vector<8x128xf32> -> vector<8x128xf32>
    %550 = arith.addf %547, %549 : vector<8x128xf32>
    %551 = vector.extract_strided_slice %550 {offsets = [0, 0], sizes = [8, 32], strides = [1, 1]} : vector<8x128xf32> to vector<8x32xf32>
    %552 = arith.negf %551 : vector<8x32xf32>
    %553 = math.exp %552 : vector<8x32xf32>
    %cst_163 = arith.constant 1.000000e+00 : f32
    %554 = vector.broadcast %cst_163 : f32 to vector<8x32xf32>
    %555 = arith.addf %554, %553 : vector<8x32xf32>
    %556 = arith.divf %554, %555 : vector<8x32xf32>
    %557 = vector.extract_strided_slice %550 {offsets = [0, 32], sizes = [8, 32], strides = [1, 1]} : vector<8x128xf32> to vector<8x32xf32>
    %558 = arith.negf %557 : vector<8x32xf32>
    %559 = math.exp %558 : vector<8x32xf32>
    %cst_164 = arith.constant 1.000000e+00 : f32
    %560 = vector.broadcast %cst_164 : f32 to vector<8x32xf32>
    %561 = arith.addf %560, %559 : vector<8x32xf32>
    %562 = arith.divf %560, %561 : vector<8x32xf32>
    %563 = vector.extract_strided_slice %550 {offsets = [0, 64], sizes = [8, 32], strides = [1, 1]} : vector<8x128xf32> to vector<8x32xf32>
    %564 = math.tanh %563 : vector<8x32xf32>
    %565 = vector.extract_strided_slice %550 {offsets = [0, 96], sizes = [8, 32], strides = [1, 1]} : vector<8x128xf32> to vector<8x32xf32>
    %566 = arith.negf %565 : vector<8x32xf32>
    %567 = math.exp %566 : vector<8x32xf32>
    %cst_165 = arith.constant 1.000000e+00 : f32
    %568 = vector.broadcast %cst_165 : f32 to vector<8x32xf32>
    %569 = arith.addf %568, %567 : vector<8x32xf32>
    %570 = arith.divf %568, %569 : vector<8x32xf32>
    %571 = arith.mulf %562, %499 : vector<8x32xf32>
    %572 = arith.mulf %556, %564 : vector<8x32xf32>
    %573 = arith.addf %571, %572 : vector<8x32xf32>
    %574 = math.tanh %573 : vector<8x32xf32>
    %575 = arith.mulf %570, %574 : vector<8x32xf32>
    %c7_i32_166 = arith.constant 7 : i32
    %576 = arith.subi %c7_i32_166, %c7_i32_159 : i32
    %577 = arith.index_cast %576 : i32 to index
    %c0_167 = arith.constant 0 : index
    %c0_168 = arith.constant 0 : index
    %578 = vector.load %arg12[%577, %c0_167, %c0_168] : memref<8x8x128xf32, #tpu.memory_space<vmem>>, vector<1x8x128xf32>
    %579 = vector.shape_cast %578 : vector<1x8x128xf32> to vector<8x128xf32>
    %580 = arith.truncf %533 : vector<8x32xf32> to vector<8x32xbf16>
    %cst_169 = arith.constant dense<0.000000e+00> : vector<8x128xf32>
    %581 = tpu.matmul %580, %22, %cst_169 {dimension_numbers = #tpu.dot_dimension_numbers<[1], [0], [0], [1], [0, 0, 1, 1], [], []>} : vector<8x32xbf16>, vector<32x128xbf16>, vector<8x128xf32> -> vector<8x128xf32>
    %582 = arith.addf %579, %581 : vector<8x128xf32>
    %583 = vector.extract_strided_slice %582 {offsets = [0, 0], sizes = [8, 32], strides = [1, 1]} : vector<8x128xf32> to vector<8x32xf32>
    %584 = arith.negf %583 : vector<8x32xf32>
    %585 = math.exp %584 : vector<8x32xf32>
    %cst_170 = arith.constant 1.000000e+00 : f32
    %586 = vector.broadcast %cst_170 : f32 to vector<8x32xf32>
    %587 = arith.addf %586, %585 : vector<8x32xf32>
    %588 = arith.divf %586, %587 : vector<8x32xf32>
    %589 = vector.extract_strided_slice %582 {offsets = [0, 32], sizes = [8, 32], strides = [1, 1]} : vector<8x128xf32> to vector<8x32xf32>
    %590 = arith.negf %589 : vector<8x32xf32>
    %591 = math.exp %590 : vector<8x32xf32>
    %cst_171 = arith.constant 1.000000e+00 : f32
    %592 = vector.broadcast %cst_171 : f32 to vector<8x32xf32>
    %593 = arith.addf %592, %591 : vector<8x32xf32>
    %594 = arith.divf %592, %593 : vector<8x32xf32>
    %595 = vector.extract_strided_slice %582 {offsets = [0, 64], sizes = [8, 32], strides = [1, 1]} : vector<8x128xf32> to vector<8x32xf32>
    %596 = math.tanh %595 : vector<8x32xf32>
    %597 = vector.extract_strided_slice %582 {offsets = [0, 96], sizes = [8, 32], strides = [1, 1]} : vector<8x128xf32> to vector<8x32xf32>
    %598 = arith.negf %597 : vector<8x32xf32>
    %599 = math.exp %598 : vector<8x32xf32>
    %cst_172 = arith.constant 1.000000e+00 : f32
    %600 = vector.broadcast %cst_172 : f32 to vector<8x32xf32>
    %601 = arith.addf %600, %599 : vector<8x32xf32>
    %602 = arith.divf %600, %601 : vector<8x32xf32>
    %603 = arith.mulf %594, %531 : vector<8x32xf32>
    %604 = arith.mulf %588, %596 : vector<8x32xf32>
    %605 = arith.addf %603, %604 : vector<8x32xf32>
    %606 = math.tanh %605 : vector<8x32xf32>
    %607 = arith.mulf %602, %606 : vector<8x32xf32>
    %608 = arith.truncf %575 : vector<8x32xf32> to vector<8x32xbf16>
    %609 = arith.index_cast %c7_i32_159 : i32 to index
    %c0_173 = arith.constant 0 : index
    %c0_174 = arith.constant 0 : index
    %610 = vector.load %arg9[%609, %c0_173, %c0_174] : memref<8x8x32xbf16, #tpu.memory_space<vmem>>, vector<1x8x32xbf16>
    %611 = vector.shape_cast %610 : vector<1x8x32xbf16> to vector<8x32xbf16>
    %612 = vector.shape_cast %608 : vector<8x32xbf16> to vector<1x8x32xbf16>
    tpu.vector_store %arg9[%609, %c0_173, %c0_174], %612 {strides = array<i32>} : memref<8x8x32xbf16, #tpu.memory_space<vmem>>, vector<1x8x32xbf16>,
    %613 = arith.truncf %607 : vector<8x32xf32> to vector<8x32xbf16>
    %c7_i32_175 = arith.constant 7 : i32
    %614 = arith.subi %c7_i32_175, %c7_i32_159 : i32
    %615 = arith.index_cast %614 : i32 to index
    %c0_176 = arith.constant 0 : index
    %c0_177 = arith.constant 0 : index
    %616 = vector.load %arg10[%615, %c0_176, %c0_177] : memref<8x8x32xbf16, #tpu.memory_space<vmem>>, vector<1x8x32xbf16>
    %617 = vector.shape_cast %616 : vector<1x8x32xbf16> to vector<8x32xbf16>
    %618 = vector.shape_cast %613 : vector<8x32xbf16> to vector<1x8x32xbf16>
    tpu.vector_store %arg10[%615, %c0_176, %c0_177], %618 {strides = array<i32>} : memref<8x8x32xbf16, #tpu.memory_space<vmem>>, vector<1x8x32xbf16>,
    %c8_i32 = arith.constant 8 : i32
    %c0_178 = arith.constant 0 : index
    %c0_179 = arith.constant 0 : index
    %619 = vector.load %arg13[%c0_178, %c0_179] : memref<8x32xf32, #tpu.memory_space<vmem>>, vector<8x32xf32>
    tpu.vector_store %arg13[%c0_178, %c0_179], %575 {strides = array<i32>} : memref<8x32xf32, #tpu.memory_space<vmem>>, vector<8x32xf32>,
    %c0_180 = arith.constant 0 : index
    %c0_181 = arith.constant 0 : index
    %620 = vector.load %arg14[%c0_180, %c0_181] : memref<8x32xf32, #tpu.memory_space<vmem>>, vector<8x32xf32>
    tpu.vector_store %arg14[%c0_180, %c0_181], %573 {strides = array<i32>} : memref<8x32xf32, #tpu.memory_space<vmem>>, vector<8x32xf32>,
    %c0_182 = arith.constant 0 : index
    %c0_183 = arith.constant 0 : index
    %621 = vector.load %arg15[%c0_182, %c0_183] : memref<8x32xf32, #tpu.memory_space<vmem>>, vector<8x32xf32>
    tpu.vector_store %arg15[%c0_182, %c0_183], %607 {strides = array<i32>} : memref<8x32xf32, #tpu.memory_space<vmem>>, vector<8x32xf32>,
    %c0_184 = arith.constant 0 : index
    %c0_185 = arith.constant 0 : index
    %622 = vector.load %arg16[%c0_184, %c0_185] : memref<8x32xf32, #tpu.memory_space<vmem>>, vector<8x32xf32>
    tpu.vector_store %arg16[%c0_184, %c0_185], %605 {strides = array<i32>} : memref<8x32xf32, #tpu.memory_space<vmem>>, vector<8x32xf32>,
    return
  }
  func.func @transform_0(%arg0: i32) -> (i32, i32, i32) {
    %c0_i32 = arith.constant 0 : i32
    %c0_i32_0 = arith.constant 0 : i32
    %c0_i32_1 = arith.constant 0 : i32
    return %arg0, %c0_i32, %c0_i32_0 : i32, i32, i32
  }
  func.func @transform_1(%arg0: i32) -> (i32, i32, i32) {
    %c0_i32 = arith.constant 0 : i32
    %0 = arith.subi %c0_i32, %arg0 : i32
    %c0_i32_0 = arith.constant 0 : i32
    %c0_i32_1 = arith.constant 0 : i32
    %c0_i32_2 = arith.constant 0 : i32
    return %0, %c0_i32_0, %c0_i32_1 : i32, i32, i32
  }
  func.func @transform_2(%arg0: i32) -> (i32, i32) {
    %c0_i32 = arith.constant 0 : i32
    %c0_i32_0 = arith.constant 0 : i32
    %c0_i32_1 = arith.constant 0 : i32
    return %c0_i32, %c0_i32_0 : i32, i32
  }
  func.func @transform_3(%arg0: i32) -> (i32, i32) {
    %c0_i32 = arith.constant 0 : i32
    %c0_i32_0 = arith.constant 0 : i32
    %c0_i32_1 = arith.constant 0 : i32
    return %c0_i32, %c0_i32_0 : i32, i32
  }
  func.func @transform_4(%arg0: i32) -> (i32, i32) {
    %c0_i32 = arith.constant 0 : i32
    %c0_i32_0 = arith.constant 0 : i32
    %c0_i32_1 = arith.constant 0 : i32
    return %c0_i32, %c0_i32_0 : i32, i32
  }
  func.func @transform_5(%arg0: i32) -> (i32, i32) {
    %c0_i32 = arith.constant 0 : i32
    %c0_i32_0 = arith.constant 0 : i32
    %c0_i32_1 = arith.constant 0 : i32
    return %c0_i32, %c0_i32_0 : i32, i32
  }
  func.func @transform_6(%arg0: i32) -> (i32, i32) {
    %c0_i32 = arith.constant 0 : i32
    %c0_i32_0 = arith.constant 0 : i32
    %c0_i32_1 = arith.constant 0 : i32
    return %c0_i32, %c0_i32_0 : i32, i32
  }
  func.func @transform_7(%arg0: i32) -> (i32, i32) {
    %c0_i32 = arith.constant 0 : i32
    %c0_i32_0 = arith.constant 0 : i32
    %c0_i32_1 = arith.constant 0 : i32
    return %c0_i32, %c0_i32_0 : i32, i32
  }
  func.func @transform_8(%arg0: i32) -> (i32, i32, i32) {
    %c0_i32 = arith.constant 0 : i32
    %c0_i32_0 = arith.constant 0 : i32
    %c0_i32_1 = arith.constant 0 : i32
    return %arg0, %c0_i32, %c0_i32_0 : i32, i32, i32
  }
  func.func @transform_9(%arg0: i32) -> (i32, i32, i32) {
    %c0_i32 = arith.constant 0 : i32
    %0 = arith.subi %c0_i32, %arg0 : i32
    %c0_i32_0 = arith.constant 0 : i32
    %c0_i32_1 = arith.constant 0 : i32
    %c0_i32_2 = arith.constant 0 : i32
    return %0, %c0_i32_0, %c0_i32_1 : i32, i32, i32
  }
}

module attributes {stable_mosaic.version = 11 : i64} {
  func.func @kernel(%arg0: i32, %arg1: memref<8x8x32xbf16, #tpu.memory_space<vmem>>, %arg2: memref<8x8x32xbf16, #tpu.memory_space<vmem>>, %arg3: memref<8x8x32xbf16, #tpu.memory_space<vmem>>, %arg4: memref<8x8x32xbf16, #tpu.memory_space<vmem>>, %arg5: memref<32x128xbf16, #tpu.memory_space<vmem>>, %arg6: memref<32x128xbf16, #tpu.memory_space<vmem>>, %arg7: memref<32x128xbf16, #tpu.memory_space<vmem>>, %arg8: memref<32x128xbf16, #tpu.memory_space<vmem>>, %arg9: memref<1x128xf32, #tpu.memory_space<vmem>>, %arg10: memref<1x128xf32, #tpu.memory_space<vmem>>, %arg11: memref<32x128xbf16, #tpu.memory_space<vmem>>, %arg12: memref<32x128xbf16, #tpu.memory_space<vmem>>, %arg13: memref<64x128xbf16, #tpu.memory_space<vmem>>, %arg14: memref<1x128xf32, #tpu.memory_space<vmem>>, %arg15: memref<8x128xf32, #tpu.memory_space<vmem>>, %arg16: memref<8x8x128xf32, #tpu.memory_space<vmem>>, %arg17: memref<8x8x128xf32, #tpu.memory_space<vmem>>, %arg18: memref<8x32xf32, #tpu.memory_space<vmem>>, %arg19: memref<8x32xf32, #tpu.memory_space<vmem>>, %arg20: memref<8x32xf32, #tpu.memory_space<vmem>>, %arg21: memref<8x32xf32, #tpu.memory_space<vmem>>, %arg22: memref<8x32xf32, #tpu.memory_space<vmem>>, %arg23: memref<8x32xf32, #tpu.memory_space<vmem>>) attributes {dimension_semantics = [#tpu.dimension_semantics<arbitrary>], iteration_bounds = array<i64: 1>, scalar_prefetch = 0 : i64, scratch_operands = 8 : i64, tpu.core_type = #tpu.core_type<tc>, window_params = [{transform_indices = @transform_0, window_bounds = array<i64: 8, 8, 32>}, {transform_indices = @transform_1, window_bounds = array<i64: 8, 8, 32>}, {transform_indices = @transform_2, window_bounds = array<i64: 8, 8, 32>}, {transform_indices = @transform_3, window_bounds = array<i64: 8, 8, 32>}, {pipeline_mode = #tpu.pipeline_mode<synchronous>, transform_indices = @transform_4, window_bounds = array<i64: 32, 128>}, {pipeline_mode = #tpu.pipeline_mode<synchronous>, transform_indices = @transform_5, window_bounds = array<i64: 32, 128>}, {pipeline_mode = #tpu.pipeline_mode<synchronous>, transform_indices = @transform_6, window_bounds = array<i64: 32, 128>}, {pipeline_mode = #tpu.pipeline_mode<synchronous>, transform_indices = @transform_7, window_bounds = array<i64: 32, 128>}, {pipeline_mode = #tpu.pipeline_mode<synchronous>, transform_indices = @transform_8, window_bounds = array<i64: 1, 128>}, {pipeline_mode = #tpu.pipeline_mode<synchronous>, transform_indices = @transform_9, window_bounds = array<i64: 1, 128>}, {pipeline_mode = #tpu.pipeline_mode<synchronous>, transform_indices = @transform_10, window_bounds = array<i64: 32, 128>}, {pipeline_mode = #tpu.pipeline_mode<synchronous>, transform_indices = @transform_11, window_bounds = array<i64: 32, 128>}, {pipeline_mode = #tpu.pipeline_mode<synchronous>, transform_indices = @transform_12, window_bounds = array<i64: 64, 128>}, {pipeline_mode = #tpu.pipeline_mode<synchronous>, transform_indices = @transform_13, window_bounds = array<i64: 1, 128>}, {pipeline_mode = #tpu.pipeline_mode<synchronous>, transform_indices = @transform_14, window_bounds = array<i64: 8, 128>}]} {
    %c0_i32 = arith.constant 0 : i32
    %0 = arith.cmpi eq, %arg0, %c0_i32 : i32
    %1 = arith.extui %0 : i1 to i32
    %c0_i32_0 = arith.constant 0 : i32
    %2 = arith.cmpi ne, %1, %c0_i32_0 : i32
    scf.if %2 {
      %cst_168 = arith.constant 0.000000e+00 : f32
      %568 = vector.broadcast %cst_168 : f32 to vector<8x32xf32>
      %c0_169 = arith.constant 0 : index
      %c0_170 = arith.constant 0 : index
      %569 = vector.load %arg18[%c0_169, %c0_170] : memref<8x32xf32, #tpu.memory_space<vmem>>, vector<8x32xf32>
      tpu.vector_store %arg18[%c0_169, %c0_170], %568 {strides = array<i32>} : memref<8x32xf32, #tpu.memory_space<vmem>>, vector<8x32xf32>,
      %cst_171 = arith.constant 0.000000e+00 : f32
      %570 = vector.broadcast %cst_171 : f32 to vector<8x32xf32>
      %c0_172 = arith.constant 0 : index
      %c0_173 = arith.constant 0 : index
      %571 = vector.load %arg19[%c0_172, %c0_173] : memref<8x32xf32, #tpu.memory_space<vmem>>, vector<8x32xf32>
      tpu.vector_store %arg19[%c0_172, %c0_173], %570 {strides = array<i32>} : memref<8x32xf32, #tpu.memory_space<vmem>>, vector<8x32xf32>,
      %cst_174 = arith.constant 0.000000e+00 : f32
      %572 = vector.broadcast %cst_174 : f32 to vector<8x32xf32>
      %c0_175 = arith.constant 0 : index
      %c0_176 = arith.constant 0 : index
      %573 = vector.load %arg20[%c0_175, %c0_176] : memref<8x32xf32, #tpu.memory_space<vmem>>, vector<8x32xf32>
      tpu.vector_store %arg20[%c0_175, %c0_176], %572 {strides = array<i32>} : memref<8x32xf32, #tpu.memory_space<vmem>>, vector<8x32xf32>,
      %cst_177 = arith.constant 0.000000e+00 : f32
      %574 = vector.broadcast %cst_177 : f32 to vector<8x32xf32>
      %c0_178 = arith.constant 0 : index
      %c0_179 = arith.constant 0 : index
      %575 = vector.load %arg21[%c0_178, %c0_179] : memref<8x32xf32, #tpu.memory_space<vmem>>, vector<8x32xf32>
      tpu.vector_store %arg21[%c0_178, %c0_179], %574 {strides = array<i32>} : memref<8x32xf32, #tpu.memory_space<vmem>>, vector<8x32xf32>,
      %cst_180 = arith.constant 0.000000e+00 : f32
      %576 = vector.broadcast %cst_180 : f32 to vector<8x32xf32>
      %c0_181 = arith.constant 0 : index
      %c0_182 = arith.constant 0 : index
      %577 = vector.load %arg22[%c0_181, %c0_182] : memref<8x32xf32, #tpu.memory_space<vmem>>, vector<8x32xf32>
      tpu.vector_store %arg22[%c0_181, %c0_182], %576 {strides = array<i32>} : memref<8x32xf32, #tpu.memory_space<vmem>>, vector<8x32xf32>,
      %cst_183 = arith.constant 0.000000e+00 : f32
      %578 = vector.broadcast %cst_183 : f32 to vector<8x32xf32>
      %c0_184 = arith.constant 0 : index
      %c0_185 = arith.constant 0 : index
      %579 = vector.load %arg23[%c0_184, %c0_185] : memref<8x32xf32, #tpu.memory_space<vmem>>, vector<8x32xf32>
      tpu.vector_store %arg23[%c0_184, %c0_185], %578 {strides = array<i32>} : memref<8x32xf32, #tpu.memory_space<vmem>>, vector<8x32xf32>,
    } else {
    }
    %c0 = arith.constant 0 : index
    %c0_1 = arith.constant 0 : index
    %c0_2 = arith.constant 0 : index
    %3 = vector.load %arg1[%c0, %c0_1, %c0_2] : memref<8x8x32xbf16, #tpu.memory_space<vmem>>, vector<8x8x32xbf16>
    %4 = vector.shape_cast %3 : vector<8x8x32xbf16> to vector<64x32xbf16>
    %c0_3 = arith.constant 0 : index
    %c0_4 = arith.constant 0 : index
    %5 = vector.load %arg5[%c0_3, %c0_4] : memref<32x128xbf16, #tpu.memory_space<vmem>>, vector<32x128xbf16>
    %cst = arith.constant dense<0.000000e+00> : vector<64x128xf32>
    %6 = tpu.matmul %4, %5, %cst {dimension_numbers = #tpu.dot_dimension_numbers<[1], [0], [0], [1], [0, 0, 1, 1], [], []>} : vector<64x32xbf16>, vector<32x128xbf16>, vector<64x128xf32> -> vector<64x128xf32>
    %c0_5 = arith.constant 0 : index
    %c0_6 = arith.constant 0 : index
    %c0_7 = arith.constant 0 : index
    %7 = vector.load %arg2[%c0_5, %c0_6, %c0_7] : memref<8x8x32xbf16, #tpu.memory_space<vmem>>, vector<8x8x32xbf16>
    %8 = vector.shape_cast %7 : vector<8x8x32xbf16> to vector<64x32xbf16>
    %c0_8 = arith.constant 0 : index
    %c0_9 = arith.constant 0 : index
    %9 = vector.load %arg6[%c0_8, %c0_9] : memref<32x128xbf16, #tpu.memory_space<vmem>>, vector<32x128xbf16>
    %cst_10 = arith.constant dense<0.000000e+00> : vector<64x128xf32>
    %10 = tpu.matmul %8, %9, %cst_10 {dimension_numbers = #tpu.dot_dimension_numbers<[1], [0], [0], [1], [0, 0, 1, 1], [], []>} : vector<64x32xbf16>, vector<32x128xbf16>, vector<64x128xf32> -> vector<64x128xf32>
    %11 = arith.addf %6, %10 : vector<64x128xf32>
    %c0_11 = arith.constant 0 : index
    %c0_12 = arith.constant 0 : index
    %12 = vector.load %arg9[%c0_11, %c0_12] : memref<1x128xf32, #tpu.memory_space<vmem>>, vector<1x128xf32>
    %13 = vector.broadcast %12 : vector<1x128xf32> to vector<64x128xf32>
    %14 = arith.addf %11, %13 : vector<64x128xf32>
    %15 = vector.shape_cast %14 : vector<64x128xf32> to vector<8x8x128xf32>
    %c0_13 = arith.constant 0 : index
    %c0_14 = arith.constant 0 : index
    %c0_15 = arith.constant 0 : index
    %16 = vector.load %arg16[%c0_13, %c0_14, %c0_15] : memref<8x8x128xf32, #tpu.memory_space<vmem>>, vector<8x8x128xf32>
    tpu.vector_store %arg16[%c0_13, %c0_14, %c0_15], %15 {strides = array<i32>} : memref<8x8x128xf32, #tpu.memory_space<vmem>>, vector<8x8x128xf32>,
    %c0_16 = arith.constant 0 : index
    %c0_17 = arith.constant 0 : index
    %c0_18 = arith.constant 0 : index
    %17 = vector.load %arg3[%c0_16, %c0_17, %c0_18] : memref<8x8x32xbf16, #tpu.memory_space<vmem>>, vector<8x8x32xbf16>
    %18 = vector.shape_cast %17 : vector<8x8x32xbf16> to vector<64x32xbf16>
    %c0_19 = arith.constant 0 : index
    %c0_20 = arith.constant 0 : index
    %19 = vector.load %arg7[%c0_19, %c0_20] : memref<32x128xbf16, #tpu.memory_space<vmem>>, vector<32x128xbf16>
    %cst_21 = arith.constant dense<0.000000e+00> : vector<64x128xf32>
    %20 = tpu.matmul %18, %19, %cst_21 {dimension_numbers = #tpu.dot_dimension_numbers<[1], [0], [0], [1], [0, 0, 1, 1], [], []>} : vector<64x32xbf16>, vector<32x128xbf16>, vector<64x128xf32> -> vector<64x128xf32>
    %c0_22 = arith.constant 0 : index
    %c0_23 = arith.constant 0 : index
    %c0_24 = arith.constant 0 : index
    %21 = vector.load %arg4[%c0_22, %c0_23, %c0_24] : memref<8x8x32xbf16, #tpu.memory_space<vmem>>, vector<8x8x32xbf16>
    %22 = vector.shape_cast %21 : vector<8x8x32xbf16> to vector<64x32xbf16>
    %c0_25 = arith.constant 0 : index
    %c0_26 = arith.constant 0 : index
    %23 = vector.load %arg8[%c0_25, %c0_26] : memref<32x128xbf16, #tpu.memory_space<vmem>>, vector<32x128xbf16>
    %cst_27 = arith.constant dense<0.000000e+00> : vector<64x128xf32>
    %24 = tpu.matmul %22, %23, %cst_27 {dimension_numbers = #tpu.dot_dimension_numbers<[1], [0], [0], [1], [0, 0, 1, 1], [], []>} : vector<64x32xbf16>, vector<32x128xbf16>, vector<64x128xf32> -> vector<64x128xf32>
    %25 = arith.addf %20, %24 : vector<64x128xf32>
    %c0_28 = arith.constant 0 : index
    %c0_29 = arith.constant 0 : index
    %26 = vector.load %arg10[%c0_28, %c0_29] : memref<1x128xf32, #tpu.memory_space<vmem>>, vector<1x128xf32>
    %27 = vector.broadcast %26 : vector<1x128xf32> to vector<64x128xf32>
    %28 = arith.addf %25, %27 : vector<64x128xf32>
    %29 = vector.shape_cast %28 : vector<64x128xf32> to vector<8x8x128xf32>
    %c0_30 = arith.constant 0 : index
    %c0_31 = arith.constant 0 : index
    %c0_32 = arith.constant 0 : index
    %30 = vector.load %arg17[%c0_30, %c0_31, %c0_32] : memref<8x8x128xf32, #tpu.memory_space<vmem>>, vector<8x8x128xf32>
    tpu.vector_store %arg17[%c0_30, %c0_31, %c0_32], %29 {strides = array<i32>} : memref<8x8x128xf32, #tpu.memory_space<vmem>>, vector<8x8x128xf32>,
    %c0_33 = arith.constant 0 : index
    %c0_34 = arith.constant 0 : index
    %31 = vector.load %arg11[%c0_33, %c0_34] : memref<32x128xbf16, #tpu.memory_space<vmem>>, vector<32x128xbf16>
    %c0_35 = arith.constant 0 : index
    %c0_36 = arith.constant 0 : index
    %32 = vector.load %arg12[%c0_35, %c0_36] : memref<32x128xbf16, #tpu.memory_space<vmem>>, vector<32x128xbf16>
    %c0_37 = arith.constant 0 : index
    %c0_38 = arith.constant 0 : index
    %33 = vector.load %arg18[%c0_37, %c0_38] : memref<8x32xf32, #tpu.memory_space<vmem>>, vector<8x32xf32>
    %c0_39 = arith.constant 0 : index
    %c0_40 = arith.constant 0 : index
    %34 = vector.load %arg19[%c0_39, %c0_40] : memref<8x32xf32, #tpu.memory_space<vmem>>, vector<8x32xf32>
    %c0_41 = arith.constant 0 : index
    %c0_42 = arith.constant 0 : index
    %35 = vector.load %arg20[%c0_41, %c0_42] : memref<8x32xf32, #tpu.memory_space<vmem>>, vector<8x32xf32>
    %c0_43 = arith.constant 0 : index
    %c0_44 = arith.constant 0 : index
    %36 = vector.load %arg21[%c0_43, %c0_44] : memref<8x32xf32, #tpu.memory_space<vmem>>, vector<8x32xf32>
    %c0_45 = arith.constant 0 : index
    %c0_46 = arith.constant 0 : index
    %37 = vector.load %arg22[%c0_45, %c0_46] : memref<8x32xf32, #tpu.memory_space<vmem>>, vector<8x32xf32>
    %c0_47 = arith.constant 0 : index
    %c0_48 = arith.constant 0 : index
    %38 = vector.load %arg23[%c0_47, %c0_48] : memref<8x32xf32, #tpu.memory_space<vmem>>, vector<8x32xf32>
    %c0_i32_49 = arith.constant 0 : i32
    %39 = arith.index_cast %c0_i32_49 : i32 to index
    %c0_50 = arith.constant 0 : index
    %c0_51 = arith.constant 0 : index
    %40 = vector.load %arg16[%39, %c0_50, %c0_51] : memref<8x8x128xf32, #tpu.memory_space<vmem>>, vector<1x8x128xf32>
    %41 = vector.shape_cast %40 : vector<1x8x128xf32> to vector<8x128xf32>
    %42 = arith.truncf %33 : vector<8x32xf32> to vector<8x32xbf16>
    %cst_52 = arith.constant dense<0.000000e+00> : vector<8x128xf32>
    %43 = tpu.matmul %42, %31, %cst_52 {dimension_numbers = #tpu.dot_dimension_numbers<[1], [0], [0], [1], [0, 0, 1, 1], [], []>} : vector<8x32xbf16>, vector<32x128xbf16>, vector<8x128xf32> -> vector<8x128xf32>
    %44 = arith.addf %41, %43 : vector<8x128xf32>
    %45 = vector.extract_strided_slice %44 {offsets = [0, 0], sizes = [8, 32], strides = [1, 1]} : vector<8x128xf32> to vector<8x32xf32>
    %46 = arith.negf %45 : vector<8x32xf32>
    %47 = math.exp %46 : vector<8x32xf32>
    %cst_53 = arith.constant 1.000000e+00 : f32
    %48 = vector.broadcast %cst_53 : f32 to vector<8x32xf32>
    %49 = arith.addf %48, %47 : vector<8x32xf32>
    %50 = arith.divf %48, %49 : vector<8x32xf32>
    %51 = vector.extract_strided_slice %44 {offsets = [0, 32], sizes = [8, 32], strides = [1, 1]} : vector<8x128xf32> to vector<8x32xf32>
    %52 = arith.negf %51 : vector<8x32xf32>
    %53 = math.exp %52 : vector<8x32xf32>
    %cst_54 = arith.constant 1.000000e+00 : f32
    %54 = vector.broadcast %cst_54 : f32 to vector<8x32xf32>
    %55 = arith.addf %54, %53 : vector<8x32xf32>
    %56 = arith.divf %54, %55 : vector<8x32xf32>
    %57 = vector.extract_strided_slice %44 {offsets = [0, 64], sizes = [8, 32], strides = [1, 1]} : vector<8x128xf32> to vector<8x32xf32>
    %58 = math.tanh %57 : vector<8x32xf32>
    %59 = vector.extract_strided_slice %44 {offsets = [0, 96], sizes = [8, 32], strides = [1, 1]} : vector<8x128xf32> to vector<8x32xf32>
    %60 = arith.negf %59 : vector<8x32xf32>
    %61 = math.exp %60 : vector<8x32xf32>
    %cst_55 = arith.constant 1.000000e+00 : f32
    %62 = vector.broadcast %cst_55 : f32 to vector<8x32xf32>
    %63 = arith.addf %62, %61 : vector<8x32xf32>
    %64 = arith.divf %62, %63 : vector<8x32xf32>
    %65 = arith.mulf %56, %34 : vector<8x32xf32>
    %66 = arith.mulf %50, %58 : vector<8x32xf32>
    %67 = arith.addf %65, %66 : vector<8x32xf32>
    %68 = math.tanh %67 : vector<8x32xf32>
    %69 = arith.mulf %64, %68 : vector<8x32xf32>
    %c7_i32 = arith.constant 7 : i32
    %70 = arith.subi %c7_i32, %c0_i32_49 : i32
    %71 = arith.index_cast %70 : i32 to index
    %c0_56 = arith.constant 0 : index
    %c0_57 = arith.constant 0 : index
    %72 = vector.load %arg17[%71, %c0_56, %c0_57] : memref<8x8x128xf32, #tpu.memory_space<vmem>>, vector<1x8x128xf32>
    %73 = vector.shape_cast %72 : vector<1x8x128xf32> to vector<8x128xf32>
    %74 = arith.truncf %35 : vector<8x32xf32> to vector<8x32xbf16>
    %cst_58 = arith.constant dense<0.000000e+00> : vector<8x128xf32>
    %75 = tpu.matmul %74, %32, %cst_58 {dimension_numbers = #tpu.dot_dimension_numbers<[1], [0], [0], [1], [0, 0, 1, 1], [], []>} : vector<8x32xbf16>, vector<32x128xbf16>, vector<8x128xf32> -> vector<8x128xf32>
    %76 = arith.addf %73, %75 : vector<8x128xf32>
    %77 = vector.extract_strided_slice %76 {offsets = [0, 0], sizes = [8, 32], strides = [1, 1]} : vector<8x128xf32> to vector<8x32xf32>
    %78 = arith.negf %77 : vector<8x32xf32>
    %79 = math.exp %78 : vector<8x32xf32>
    %cst_59 = arith.constant 1.000000e+00 : f32
    %80 = vector.broadcast %cst_59 : f32 to vector<8x32xf32>
    %81 = arith.addf %80, %79 : vector<8x32xf32>
    %82 = arith.divf %80, %81 : vector<8x32xf32>
    %83 = vector.extract_strided_slice %76 {offsets = [0, 32], sizes = [8, 32], strides = [1, 1]} : vector<8x128xf32> to vector<8x32xf32>
    %84 = arith.negf %83 : vector<8x32xf32>
    %85 = math.exp %84 : vector<8x32xf32>
    %cst_60 = arith.constant 1.000000e+00 : f32
    %86 = vector.broadcast %cst_60 : f32 to vector<8x32xf32>
    %87 = arith.addf %86, %85 : vector<8x32xf32>
    %88 = arith.divf %86, %87 : vector<8x32xf32>
    %89 = vector.extract_strided_slice %76 {offsets = [0, 64], sizes = [8, 32], strides = [1, 1]} : vector<8x128xf32> to vector<8x32xf32>
    %90 = math.tanh %89 : vector<8x32xf32>
    %91 = vector.extract_strided_slice %76 {offsets = [0, 96], sizes = [8, 32], strides = [1, 1]} : vector<8x128xf32> to vector<8x32xf32>
    %92 = arith.negf %91 : vector<8x32xf32>
    %93 = math.exp %92 : vector<8x32xf32>
    %cst_61 = arith.constant 1.000000e+00 : f32
    %94 = vector.broadcast %cst_61 : f32 to vector<8x32xf32>
    %95 = arith.addf %94, %93 : vector<8x32xf32>
    %96 = arith.divf %94, %95 : vector<8x32xf32>
    %97 = arith.mulf %88, %36 : vector<8x32xf32>
    %98 = arith.mulf %82, %90 : vector<8x32xf32>
    %99 = arith.addf %97, %98 : vector<8x32xf32>
    %100 = math.tanh %99 : vector<8x32xf32>
    %101 = arith.mulf %96, %100 : vector<8x32xf32>
    %102 = arith.addf %37, %69 : vector<8x32xf32>
    %103 = arith.addf %38, %101 : vector<8x32xf32>
    %c1_i32 = arith.constant 1 : i32
    %104 = arith.index_cast %c1_i32 : i32 to index
    %c0_62 = arith.constant 0 : index
    %c0_63 = arith.constant 0 : index
    %105 = vector.load %arg16[%104, %c0_62, %c0_63] : memref<8x8x128xf32, #tpu.memory_space<vmem>>, vector<1x8x128xf32>
    %106 = vector.shape_cast %105 : vector<1x8x128xf32> to vector<8x128xf32>
    %107 = arith.truncf %69 : vector<8x32xf32> to vector<8x32xbf16>
    %cst_64 = arith.constant dense<0.000000e+00> : vector<8x128xf32>
    %108 = tpu.matmul %107, %31, %cst_64 {dimension_numbers = #tpu.dot_dimension_numbers<[1], [0], [0], [1], [0, 0, 1, 1], [], []>} : vector<8x32xbf16>, vector<32x128xbf16>, vector<8x128xf32> -> vector<8x128xf32>
    %109 = arith.addf %106, %108 : vector<8x128xf32>
    %110 = vector.extract_strided_slice %109 {offsets = [0, 0], sizes = [8, 32], strides = [1, 1]} : vector<8x128xf32> to vector<8x32xf32>
    %111 = arith.negf %110 : vector<8x32xf32>
    %112 = math.exp %111 : vector<8x32xf32>
    %cst_65 = arith.constant 1.000000e+00 : f32
    %113 = vector.broadcast %cst_65 : f32 to vector<8x32xf32>
    %114 = arith.addf %113, %112 : vector<8x32xf32>
    %115 = arith.divf %113, %114 : vector<8x32xf32>
    %116 = vector.extract_strided_slice %109 {offsets = [0, 32], sizes = [8, 32], strides = [1, 1]} : vector<8x128xf32> to vector<8x32xf32>
    %117 = arith.negf %116 : vector<8x32xf32>
    %118 = math.exp %117 : vector<8x32xf32>
    %cst_66 = arith.constant 1.000000e+00 : f32
    %119 = vector.broadcast %cst_66 : f32 to vector<8x32xf32>
    %120 = arith.addf %119, %118 : vector<8x32xf32>
    %121 = arith.divf %119, %120 : vector<8x32xf32>
    %122 = vector.extract_strided_slice %109 {offsets = [0, 64], sizes = [8, 32], strides = [1, 1]} : vector<8x128xf32> to vector<8x32xf32>
    %123 = math.tanh %122 : vector<8x32xf32>
    %124 = vector.extract_strided_slice %109 {offsets = [0, 96], sizes = [8, 32], strides = [1, 1]} : vector<8x128xf32> to vector<8x32xf32>
    %125 = arith.negf %124 : vector<8x32xf32>
    %126 = math.exp %125 : vector<8x32xf32>
    %cst_67 = arith.constant 1.000000e+00 : f32
    %127 = vector.broadcast %cst_67 : f32 to vector<8x32xf32>
    %128 = arith.addf %127, %126 : vector<8x32xf32>
    %129 = arith.divf %127, %128 : vector<8x32xf32>
    %130 = arith.mulf %121, %67 : vector<8x32xf32>
    %131 = arith.mulf %115, %123 : vector<8x32xf32>
    %132 = arith.addf %130, %131 : vector<8x32xf32>
    %133 = math.tanh %132 : vector<8x32xf32>
    %134 = arith.mulf %129, %133 : vector<8x32xf32>
    %c7_i32_68 = arith.constant 7 : i32
    %135 = arith.subi %c7_i32_68, %c1_i32 : i32
    %136 = arith.index_cast %135 : i32 to index
    %c0_69 = arith.constant 0 : index
    %c0_70 = arith.constant 0 : index
    %137 = vector.load %arg17[%136, %c0_69, %c0_70] : memref<8x8x128xf32, #tpu.memory_space<vmem>>, vector<1x8x128xf32>
    %138 = vector.shape_cast %137 : vector<1x8x128xf32> to vector<8x128xf32>
    %139 = arith.truncf %101 : vector<8x32xf32> to vector<8x32xbf16>
    %cst_71 = arith.constant dense<0.000000e+00> : vector<8x128xf32>
    %140 = tpu.matmul %139, %32, %cst_71 {dimension_numbers = #tpu.dot_dimension_numbers<[1], [0], [0], [1], [0, 0, 1, 1], [], []>} : vector<8x32xbf16>, vector<32x128xbf16>, vector<8x128xf32> -> vector<8x128xf32>
    %141 = arith.addf %138, %140 : vector<8x128xf32>
    %142 = vector.extract_strided_slice %141 {offsets = [0, 0], sizes = [8, 32], strides = [1, 1]} : vector<8x128xf32> to vector<8x32xf32>
    %143 = arith.negf %142 : vector<8x32xf32>
    %144 = math.exp %143 : vector<8x32xf32>
    %cst_72 = arith.constant 1.000000e+00 : f32
    %145 = vector.broadcast %cst_72 : f32 to vector<8x32xf32>
    %146 = arith.addf %145, %144 : vector<8x32xf32>
    %147 = arith.divf %145, %146 : vector<8x32xf32>
    %148 = vector.extract_strided_slice %141 {offsets = [0, 32], sizes = [8, 32], strides = [1, 1]} : vector<8x128xf32> to vector<8x32xf32>
    %149 = arith.negf %148 : vector<8x32xf32>
    %150 = math.exp %149 : vector<8x32xf32>
    %cst_73 = arith.constant 1.000000e+00 : f32
    %151 = vector.broadcast %cst_73 : f32 to vector<8x32xf32>
    %152 = arith.addf %151, %150 : vector<8x32xf32>
    %153 = arith.divf %151, %152 : vector<8x32xf32>
    %154 = vector.extract_strided_slice %141 {offsets = [0, 64], sizes = [8, 32], strides = [1, 1]} : vector<8x128xf32> to vector<8x32xf32>
    %155 = math.tanh %154 : vector<8x32xf32>
    %156 = vector.extract_strided_slice %141 {offsets = [0, 96], sizes = [8, 32], strides = [1, 1]} : vector<8x128xf32> to vector<8x32xf32>
    %157 = arith.negf %156 : vector<8x32xf32>
    %158 = math.exp %157 : vector<8x32xf32>
    %cst_74 = arith.constant 1.000000e+00 : f32
    %159 = vector.broadcast %cst_74 : f32 to vector<8x32xf32>
    %160 = arith.addf %159, %158 : vector<8x32xf32>
    %161 = arith.divf %159, %160 : vector<8x32xf32>
    %162 = arith.mulf %153, %99 : vector<8x32xf32>
    %163 = arith.mulf %147, %155 : vector<8x32xf32>
    %164 = arith.addf %162, %163 : vector<8x32xf32>
    %165 = math.tanh %164 : vector<8x32xf32>
    %166 = arith.mulf %161, %165 : vector<8x32xf32>
    %167 = arith.addf %102, %134 : vector<8x32xf32>
    %168 = arith.addf %103, %166 : vector<8x32xf32>
    %c2_i32 = arith.constant 2 : i32
    %169 = arith.index_cast %c2_i32 : i32 to index
    %c0_75 = arith.constant 0 : index
    %c0_76 = arith.constant 0 : index
    %170 = vector.load %arg16[%169, %c0_75, %c0_76] : memref<8x8x128xf32, #tpu.memory_space<vmem>>, vector<1x8x128xf32>
    %171 = vector.shape_cast %170 : vector<1x8x128xf32> to vector<8x128xf32>
    %172 = arith.truncf %134 : vector<8x32xf32> to vector<8x32xbf16>
    %cst_77 = arith.constant dense<0.000000e+00> : vector<8x128xf32>
    %173 = tpu.matmul %172, %31, %cst_77 {dimension_numbers = #tpu.dot_dimension_numbers<[1], [0], [0], [1], [0, 0, 1, 1], [], []>} : vector<8x32xbf16>, vector<32x128xbf16>, vector<8x128xf32> -> vector<8x128xf32>
    %174 = arith.addf %171, %173 : vector<8x128xf32>
    %175 = vector.extract_strided_slice %174 {offsets = [0, 0], sizes = [8, 32], strides = [1, 1]} : vector<8x128xf32> to vector<8x32xf32>
    %176 = arith.negf %175 : vector<8x32xf32>
    %177 = math.exp %176 : vector<8x32xf32>
    %cst_78 = arith.constant 1.000000e+00 : f32
    %178 = vector.broadcast %cst_78 : f32 to vector<8x32xf32>
    %179 = arith.addf %178, %177 : vector<8x32xf32>
    %180 = arith.divf %178, %179 : vector<8x32xf32>
    %181 = vector.extract_strided_slice %174 {offsets = [0, 32], sizes = [8, 32], strides = [1, 1]} : vector<8x128xf32> to vector<8x32xf32>
    %182 = arith.negf %181 : vector<8x32xf32>
    %183 = math.exp %182 : vector<8x32xf32>
    %cst_79 = arith.constant 1.000000e+00 : f32
    %184 = vector.broadcast %cst_79 : f32 to vector<8x32xf32>
    %185 = arith.addf %184, %183 : vector<8x32xf32>
    %186 = arith.divf %184, %185 : vector<8x32xf32>
    %187 = vector.extract_strided_slice %174 {offsets = [0, 64], sizes = [8, 32], strides = [1, 1]} : vector<8x128xf32> to vector<8x32xf32>
    %188 = math.tanh %187 : vector<8x32xf32>
    %189 = vector.extract_strided_slice %174 {offsets = [0, 96], sizes = [8, 32], strides = [1, 1]} : vector<8x128xf32> to vector<8x32xf32>
    %190 = arith.negf %189 : vector<8x32xf32>
    %191 = math.exp %190 : vector<8x32xf32>
    %cst_80 = arith.constant 1.000000e+00 : f32
    %192 = vector.broadcast %cst_80 : f32 to vector<8x32xf32>
    %193 = arith.addf %192, %191 : vector<8x32xf32>
    %194 = arith.divf %192, %193 : vector<8x32xf32>
    %195 = arith.mulf %186, %132 : vector<8x32xf32>
    %196 = arith.mulf %180, %188 : vector<8x32xf32>
    %197 = arith.addf %195, %196 : vector<8x32xf32>
    %198 = math.tanh %197 : vector<8x32xf32>
    %199 = arith.mulf %194, %198 : vector<8x32xf32>
    %c7_i32_81 = arith.constant 7 : i32
    %200 = arith.subi %c7_i32_81, %c2_i32 : i32
    %201 = arith.index_cast %200 : i32 to index
    %c0_82 = arith.constant 0 : index
    %c0_83 = arith.constant 0 : index
    %202 = vector.load %arg17[%201, %c0_82, %c0_83] : memref<8x8x128xf32, #tpu.memory_space<vmem>>, vector<1x8x128xf32>
    %203 = vector.shape_cast %202 : vector<1x8x128xf32> to vector<8x128xf32>
    %204 = arith.truncf %166 : vector<8x32xf32> to vector<8x32xbf16>
    %cst_84 = arith.constant dense<0.000000e+00> : vector<8x128xf32>
    %205 = tpu.matmul %204, %32, %cst_84 {dimension_numbers = #tpu.dot_dimension_numbers<[1], [0], [0], [1], [0, 0, 1, 1], [], []>} : vector<8x32xbf16>, vector<32x128xbf16>, vector<8x128xf32> -> vector<8x128xf32>
    %206 = arith.addf %203, %205 : vector<8x128xf32>
    %207 = vector.extract_strided_slice %206 {offsets = [0, 0], sizes = [8, 32], strides = [1, 1]} : vector<8x128xf32> to vector<8x32xf32>
    %208 = arith.negf %207 : vector<8x32xf32>
    %209 = math.exp %208 : vector<8x32xf32>
    %cst_85 = arith.constant 1.000000e+00 : f32
    %210 = vector.broadcast %cst_85 : f32 to vector<8x32xf32>
    %211 = arith.addf %210, %209 : vector<8x32xf32>
    %212 = arith.divf %210, %211 : vector<8x32xf32>
    %213 = vector.extract_strided_slice %206 {offsets = [0, 32], sizes = [8, 32], strides = [1, 1]} : vector<8x128xf32> to vector<8x32xf32>
    %214 = arith.negf %213 : vector<8x32xf32>
    %215 = math.exp %214 : vector<8x32xf32>
    %cst_86 = arith.constant 1.000000e+00 : f32
    %216 = vector.broadcast %cst_86 : f32 to vector<8x32xf32>
    %217 = arith.addf %216, %215 : vector<8x32xf32>
    %218 = arith.divf %216, %217 : vector<8x32xf32>
    %219 = vector.extract_strided_slice %206 {offsets = [0, 64], sizes = [8, 32], strides = [1, 1]} : vector<8x128xf32> to vector<8x32xf32>
    %220 = math.tanh %219 : vector<8x32xf32>
    %221 = vector.extract_strided_slice %206 {offsets = [0, 96], sizes = [8, 32], strides = [1, 1]} : vector<8x128xf32> to vector<8x32xf32>
    %222 = arith.negf %221 : vector<8x32xf32>
    %223 = math.exp %222 : vector<8x32xf32>
    %cst_87 = arith.constant 1.000000e+00 : f32
    %224 = vector.broadcast %cst_87 : f32 to vector<8x32xf32>
    %225 = arith.addf %224, %223 : vector<8x32xf32>
    %226 = arith.divf %224, %225 : vector<8x32xf32>
    %227 = arith.mulf %218, %164 : vector<8x32xf32>
    %228 = arith.mulf %212, %220 : vector<8x32xf32>
    %229 = arith.addf %227, %228 : vector<8x32xf32>
    %230 = math.tanh %229 : vector<8x32xf32>
    %231 = arith.mulf %226, %230 : vector<8x32xf32>
    %232 = arith.addf %167, %199 : vector<8x32xf32>
    %233 = arith.addf %168, %231 : vector<8x32xf32>
    %c3_i32 = arith.constant 3 : i32
    %234 = arith.index_cast %c3_i32 : i32 to index
    %c0_88 = arith.constant 0 : index
    %c0_89 = arith.constant 0 : index
    %235 = vector.load %arg16[%234, %c0_88, %c0_89] : memref<8x8x128xf32, #tpu.memory_space<vmem>>, vector<1x8x128xf32>
    %236 = vector.shape_cast %235 : vector<1x8x128xf32> to vector<8x128xf32>
    %237 = arith.truncf %199 : vector<8x32xf32> to vector<8x32xbf16>
    %cst_90 = arith.constant dense<0.000000e+00> : vector<8x128xf32>
    %238 = tpu.matmul %237, %31, %cst_90 {dimension_numbers = #tpu.dot_dimension_numbers<[1], [0], [0], [1], [0, 0, 1, 1], [], []>} : vector<8x32xbf16>, vector<32x128xbf16>, vector<8x128xf32> -> vector<8x128xf32>
    %239 = arith.addf %236, %238 : vector<8x128xf32>
    %240 = vector.extract_strided_slice %239 {offsets = [0, 0], sizes = [8, 32], strides = [1, 1]} : vector<8x128xf32> to vector<8x32xf32>
    %241 = arith.negf %240 : vector<8x32xf32>
    %242 = math.exp %241 : vector<8x32xf32>
    %cst_91 = arith.constant 1.000000e+00 : f32
    %243 = vector.broadcast %cst_91 : f32 to vector<8x32xf32>
    %244 = arith.addf %243, %242 : vector<8x32xf32>
    %245 = arith.divf %243, %244 : vector<8x32xf32>
    %246 = vector.extract_strided_slice %239 {offsets = [0, 32], sizes = [8, 32], strides = [1, 1]} : vector<8x128xf32> to vector<8x32xf32>
    %247 = arith.negf %246 : vector<8x32xf32>
    %248 = math.exp %247 : vector<8x32xf32>
    %cst_92 = arith.constant 1.000000e+00 : f32
    %249 = vector.broadcast %cst_92 : f32 to vector<8x32xf32>
    %250 = arith.addf %249, %248 : vector<8x32xf32>
    %251 = arith.divf %249, %250 : vector<8x32xf32>
    %252 = vector.extract_strided_slice %239 {offsets = [0, 64], sizes = [8, 32], strides = [1, 1]} : vector<8x128xf32> to vector<8x32xf32>
    %253 = math.tanh %252 : vector<8x32xf32>
    %254 = vector.extract_strided_slice %239 {offsets = [0, 96], sizes = [8, 32], strides = [1, 1]} : vector<8x128xf32> to vector<8x32xf32>
    %255 = arith.negf %254 : vector<8x32xf32>
    %256 = math.exp %255 : vector<8x32xf32>
    %cst_93 = arith.constant 1.000000e+00 : f32
    %257 = vector.broadcast %cst_93 : f32 to vector<8x32xf32>
    %258 = arith.addf %257, %256 : vector<8x32xf32>
    %259 = arith.divf %257, %258 : vector<8x32xf32>
    %260 = arith.mulf %251, %197 : vector<8x32xf32>
    %261 = arith.mulf %245, %253 : vector<8x32xf32>
    %262 = arith.addf %260, %261 : vector<8x32xf32>
    %263 = math.tanh %262 : vector<8x32xf32>
    %264 = arith.mulf %259, %263 : vector<8x32xf32>
    %c7_i32_94 = arith.constant 7 : i32
    %265 = arith.subi %c7_i32_94, %c3_i32 : i32
    %266 = arith.index_cast %265 : i32 to index
    %c0_95 = arith.constant 0 : index
    %c0_96 = arith.constant 0 : index
    %267 = vector.load %arg17[%266, %c0_95, %c0_96] : memref<8x8x128xf32, #tpu.memory_space<vmem>>, vector<1x8x128xf32>
    %268 = vector.shape_cast %267 : vector<1x8x128xf32> to vector<8x128xf32>
    %269 = arith.truncf %231 : vector<8x32xf32> to vector<8x32xbf16>
    %cst_97 = arith.constant dense<0.000000e+00> : vector<8x128xf32>
    %270 = tpu.matmul %269, %32, %cst_97 {dimension_numbers = #tpu.dot_dimension_numbers<[1], [0], [0], [1], [0, 0, 1, 1], [], []>} : vector<8x32xbf16>, vector<32x128xbf16>, vector<8x128xf32> -> vector<8x128xf32>
    %271 = arith.addf %268, %270 : vector<8x128xf32>
    %272 = vector.extract_strided_slice %271 {offsets = [0, 0], sizes = [8, 32], strides = [1, 1]} : vector<8x128xf32> to vector<8x32xf32>
    %273 = arith.negf %272 : vector<8x32xf32>
    %274 = math.exp %273 : vector<8x32xf32>
    %cst_98 = arith.constant 1.000000e+00 : f32
    %275 = vector.broadcast %cst_98 : f32 to vector<8x32xf32>
    %276 = arith.addf %275, %274 : vector<8x32xf32>
    %277 = arith.divf %275, %276 : vector<8x32xf32>
    %278 = vector.extract_strided_slice %271 {offsets = [0, 32], sizes = [8, 32], strides = [1, 1]} : vector<8x128xf32> to vector<8x32xf32>
    %279 = arith.negf %278 : vector<8x32xf32>
    %280 = math.exp %279 : vector<8x32xf32>
    %cst_99 = arith.constant 1.000000e+00 : f32
    %281 = vector.broadcast %cst_99 : f32 to vector<8x32xf32>
    %282 = arith.addf %281, %280 : vector<8x32xf32>
    %283 = arith.divf %281, %282 : vector<8x32xf32>
    %284 = vector.extract_strided_slice %271 {offsets = [0, 64], sizes = [8, 32], strides = [1, 1]} : vector<8x128xf32> to vector<8x32xf32>
    %285 = math.tanh %284 : vector<8x32xf32>
    %286 = vector.extract_strided_slice %271 {offsets = [0, 96], sizes = [8, 32], strides = [1, 1]} : vector<8x128xf32> to vector<8x32xf32>
    %287 = arith.negf %286 : vector<8x32xf32>
    %288 = math.exp %287 : vector<8x32xf32>
    %cst_100 = arith.constant 1.000000e+00 : f32
    %289 = vector.broadcast %cst_100 : f32 to vector<8x32xf32>
    %290 = arith.addf %289, %288 : vector<8x32xf32>
    %291 = arith.divf %289, %290 : vector<8x32xf32>
    %292 = arith.mulf %283, %229 : vector<8x32xf32>
    %293 = arith.mulf %277, %285 : vector<8x32xf32>
    %294 = arith.addf %292, %293 : vector<8x32xf32>
    %295 = math.tanh %294 : vector<8x32xf32>
    %296 = arith.mulf %291, %295 : vector<8x32xf32>
    %297 = arith.addf %232, %264 : vector<8x32xf32>
    %298 = arith.addf %233, %296 : vector<8x32xf32>
    %c4_i32 = arith.constant 4 : i32
    %299 = arith.index_cast %c4_i32 : i32 to index
    %c0_101 = arith.constant 0 : index
    %c0_102 = arith.constant 0 : index
    %300 = vector.load %arg16[%299, %c0_101, %c0_102] : memref<8x8x128xf32, #tpu.memory_space<vmem>>, vector<1x8x128xf32>
    %301 = vector.shape_cast %300 : vector<1x8x128xf32> to vector<8x128xf32>
    %302 = arith.truncf %264 : vector<8x32xf32> to vector<8x32xbf16>
    %cst_103 = arith.constant dense<0.000000e+00> : vector<8x128xf32>
    %303 = tpu.matmul %302, %31, %cst_103 {dimension_numbers = #tpu.dot_dimension_numbers<[1], [0], [0], [1], [0, 0, 1, 1], [], []>} : vector<8x32xbf16>, vector<32x128xbf16>, vector<8x128xf32> -> vector<8x128xf32>
    %304 = arith.addf %301, %303 : vector<8x128xf32>
    %305 = vector.extract_strided_slice %304 {offsets = [0, 0], sizes = [8, 32], strides = [1, 1]} : vector<8x128xf32> to vector<8x32xf32>
    %306 = arith.negf %305 : vector<8x32xf32>
    %307 = math.exp %306 : vector<8x32xf32>
    %cst_104 = arith.constant 1.000000e+00 : f32
    %308 = vector.broadcast %cst_104 : f32 to vector<8x32xf32>
    %309 = arith.addf %308, %307 : vector<8x32xf32>
    %310 = arith.divf %308, %309 : vector<8x32xf32>
    %311 = vector.extract_strided_slice %304 {offsets = [0, 32], sizes = [8, 32], strides = [1, 1]} : vector<8x128xf32> to vector<8x32xf32>
    %312 = arith.negf %311 : vector<8x32xf32>
    %313 = math.exp %312 : vector<8x32xf32>
    %cst_105 = arith.constant 1.000000e+00 : f32
    %314 = vector.broadcast %cst_105 : f32 to vector<8x32xf32>
    %315 = arith.addf %314, %313 : vector<8x32xf32>
    %316 = arith.divf %314, %315 : vector<8x32xf32>
    %317 = vector.extract_strided_slice %304 {offsets = [0, 64], sizes = [8, 32], strides = [1, 1]} : vector<8x128xf32> to vector<8x32xf32>
    %318 = math.tanh %317 : vector<8x32xf32>
    %319 = vector.extract_strided_slice %304 {offsets = [0, 96], sizes = [8, 32], strides = [1, 1]} : vector<8x128xf32> to vector<8x32xf32>
    %320 = arith.negf %319 : vector<8x32xf32>
    %321 = math.exp %320 : vector<8x32xf32>
    %cst_106 = arith.constant 1.000000e+00 : f32
    %322 = vector.broadcast %cst_106 : f32 to vector<8x32xf32>
    %323 = arith.addf %322, %321 : vector<8x32xf32>
    %324 = arith.divf %322, %323 : vector<8x32xf32>
    %325 = arith.mulf %316, %262 : vector<8x32xf32>
    %326 = arith.mulf %310, %318 : vector<8x32xf32>
    %327 = arith.addf %325, %326 : vector<8x32xf32>
    %328 = math.tanh %327 : vector<8x32xf32>
    %329 = arith.mulf %324, %328 : vector<8x32xf32>
    %c7_i32_107 = arith.constant 7 : i32
    %330 = arith.subi %c7_i32_107, %c4_i32 : i32
    %331 = arith.index_cast %330 : i32 to index
    %c0_108 = arith.constant 0 : index
    %c0_109 = arith.constant 0 : index
    %332 = vector.load %arg17[%331, %c0_108, %c0_109] : memref<8x8x128xf32, #tpu.memory_space<vmem>>, vector<1x8x128xf32>
    %333 = vector.shape_cast %332 : vector<1x8x128xf32> to vector<8x128xf32>
    %334 = arith.truncf %296 : vector<8x32xf32> to vector<8x32xbf16>
    %cst_110 = arith.constant dense<0.000000e+00> : vector<8x128xf32>
    %335 = tpu.matmul %334, %32, %cst_110 {dimension_numbers = #tpu.dot_dimension_numbers<[1], [0], [0], [1], [0, 0, 1, 1], [], []>} : vector<8x32xbf16>, vector<32x128xbf16>, vector<8x128xf32> -> vector<8x128xf32>
    %336 = arith.addf %333, %335 : vector<8x128xf32>
    %337 = vector.extract_strided_slice %336 {offsets = [0, 0], sizes = [8, 32], strides = [1, 1]} : vector<8x128xf32> to vector<8x32xf32>
    %338 = arith.negf %337 : vector<8x32xf32>
    %339 = math.exp %338 : vector<8x32xf32>
    %cst_111 = arith.constant 1.000000e+00 : f32
    %340 = vector.broadcast %cst_111 : f32 to vector<8x32xf32>
    %341 = arith.addf %340, %339 : vector<8x32xf32>
    %342 = arith.divf %340, %341 : vector<8x32xf32>
    %343 = vector.extract_strided_slice %336 {offsets = [0, 32], sizes = [8, 32], strides = [1, 1]} : vector<8x128xf32> to vector<8x32xf32>
    %344 = arith.negf %343 : vector<8x32xf32>
    %345 = math.exp %344 : vector<8x32xf32>
    %cst_112 = arith.constant 1.000000e+00 : f32
    %346 = vector.broadcast %cst_112 : f32 to vector<8x32xf32>
    %347 = arith.addf %346, %345 : vector<8x32xf32>
    %348 = arith.divf %346, %347 : vector<8x32xf32>
    %349 = vector.extract_strided_slice %336 {offsets = [0, 64], sizes = [8, 32], strides = [1, 1]} : vector<8x128xf32> to vector<8x32xf32>
    %350 = math.tanh %349 : vector<8x32xf32>
    %351 = vector.extract_strided_slice %336 {offsets = [0, 96], sizes = [8, 32], strides = [1, 1]} : vector<8x128xf32> to vector<8x32xf32>
    %352 = arith.negf %351 : vector<8x32xf32>
    %353 = math.exp %352 : vector<8x32xf32>
    %cst_113 = arith.constant 1.000000e+00 : f32
    %354 = vector.broadcast %cst_113 : f32 to vector<8x32xf32>
    %355 = arith.addf %354, %353 : vector<8x32xf32>
    %356 = arith.divf %354, %355 : vector<8x32xf32>
    %357 = arith.mulf %348, %294 : vector<8x32xf32>
    %358 = arith.mulf %342, %350 : vector<8x32xf32>
    %359 = arith.addf %357, %358 : vector<8x32xf32>
    %360 = math.tanh %359 : vector<8x32xf32>
    %361 = arith.mulf %356, %360 : vector<8x32xf32>
    %362 = arith.addf %297, %329 : vector<8x32xf32>
    %363 = arith.addf %298, %361 : vector<8x32xf32>
    %c5_i32 = arith.constant 5 : i32
    %364 = arith.index_cast %c5_i32 : i32 to index
    %c0_114 = arith.constant 0 : index
    %c0_115 = arith.constant 0 : index
    %365 = vector.load %arg16[%364, %c0_114, %c0_115] : memref<8x8x128xf32, #tpu.memory_space<vmem>>, vector<1x8x128xf32>
    %366 = vector.shape_cast %365 : vector<1x8x128xf32> to vector<8x128xf32>
    %367 = arith.truncf %329 : vector<8x32xf32> to vector<8x32xbf16>
    %cst_116 = arith.constant dense<0.000000e+00> : vector<8x128xf32>
    %368 = tpu.matmul %367, %31, %cst_116 {dimension_numbers = #tpu.dot_dimension_numbers<[1], [0], [0], [1], [0, 0, 1, 1], [], []>} : vector<8x32xbf16>, vector<32x128xbf16>, vector<8x128xf32> -> vector<8x128xf32>
    %369 = arith.addf %366, %368 : vector<8x128xf32>
    %370 = vector.extract_strided_slice %369 {offsets = [0, 0], sizes = [8, 32], strides = [1, 1]} : vector<8x128xf32> to vector<8x32xf32>
    %371 = arith.negf %370 : vector<8x32xf32>
    %372 = math.exp %371 : vector<8x32xf32>
    %cst_117 = arith.constant 1.000000e+00 : f32
    %373 = vector.broadcast %cst_117 : f32 to vector<8x32xf32>
    %374 = arith.addf %373, %372 : vector<8x32xf32>
    %375 = arith.divf %373, %374 : vector<8x32xf32>
    %376 = vector.extract_strided_slice %369 {offsets = [0, 32], sizes = [8, 32], strides = [1, 1]} : vector<8x128xf32> to vector<8x32xf32>
    %377 = arith.negf %376 : vector<8x32xf32>
    %378 = math.exp %377 : vector<8x32xf32>
    %cst_118 = arith.constant 1.000000e+00 : f32
    %379 = vector.broadcast %cst_118 : f32 to vector<8x32xf32>
    %380 = arith.addf %379, %378 : vector<8x32xf32>
    %381 = arith.divf %379, %380 : vector<8x32xf32>
    %382 = vector.extract_strided_slice %369 {offsets = [0, 64], sizes = [8, 32], strides = [1, 1]} : vector<8x128xf32> to vector<8x32xf32>
    %383 = math.tanh %382 : vector<8x32xf32>
    %384 = vector.extract_strided_slice %369 {offsets = [0, 96], sizes = [8, 32], strides = [1, 1]} : vector<8x128xf32> to vector<8x32xf32>
    %385 = arith.negf %384 : vector<8x32xf32>
    %386 = math.exp %385 : vector<8x32xf32>
    %cst_119 = arith.constant 1.000000e+00 : f32
    %387 = vector.broadcast %cst_119 : f32 to vector<8x32xf32>
    %388 = arith.addf %387, %386 : vector<8x32xf32>
    %389 = arith.divf %387, %388 : vector<8x32xf32>
    %390 = arith.mulf %381, %327 : vector<8x32xf32>
    %391 = arith.mulf %375, %383 : vector<8x32xf32>
    %392 = arith.addf %390, %391 : vector<8x32xf32>
    %393 = math.tanh %392 : vector<8x32xf32>
    %394 = arith.mulf %389, %393 : vector<8x32xf32>
    %c7_i32_120 = arith.constant 7 : i32
    %395 = arith.subi %c7_i32_120, %c5_i32 : i32
    %396 = arith.index_cast %395 : i32 to index
    %c0_121 = arith.constant 0 : index
    %c0_122 = arith.constant 0 : index
    %397 = vector.load %arg17[%396, %c0_121, %c0_122] : memref<8x8x128xf32, #tpu.memory_space<vmem>>, vector<1x8x128xf32>
    %398 = vector.shape_cast %397 : vector<1x8x128xf32> to vector<8x128xf32>
    %399 = arith.truncf %361 : vector<8x32xf32> to vector<8x32xbf16>
    %cst_123 = arith.constant dense<0.000000e+00> : vector<8x128xf32>
    %400 = tpu.matmul %399, %32, %cst_123 {dimension_numbers = #tpu.dot_dimension_numbers<[1], [0], [0], [1], [0, 0, 1, 1], [], []>} : vector<8x32xbf16>, vector<32x128xbf16>, vector<8x128xf32> -> vector<8x128xf32>
    %401 = arith.addf %398, %400 : vector<8x128xf32>
    %402 = vector.extract_strided_slice %401 {offsets = [0, 0], sizes = [8, 32], strides = [1, 1]} : vector<8x128xf32> to vector<8x32xf32>
    %403 = arith.negf %402 : vector<8x32xf32>
    %404 = math.exp %403 : vector<8x32xf32>
    %cst_124 = arith.constant 1.000000e+00 : f32
    %405 = vector.broadcast %cst_124 : f32 to vector<8x32xf32>
    %406 = arith.addf %405, %404 : vector<8x32xf32>
    %407 = arith.divf %405, %406 : vector<8x32xf32>
    %408 = vector.extract_strided_slice %401 {offsets = [0, 32], sizes = [8, 32], strides = [1, 1]} : vector<8x128xf32> to vector<8x32xf32>
    %409 = arith.negf %408 : vector<8x32xf32>
    %410 = math.exp %409 : vector<8x32xf32>
    %cst_125 = arith.constant 1.000000e+00 : f32
    %411 = vector.broadcast %cst_125 : f32 to vector<8x32xf32>
    %412 = arith.addf %411, %410 : vector<8x32xf32>
    %413 = arith.divf %411, %412 : vector<8x32xf32>
    %414 = vector.extract_strided_slice %401 {offsets = [0, 64], sizes = [8, 32], strides = [1, 1]} : vector<8x128xf32> to vector<8x32xf32>
    %415 = math.tanh %414 : vector<8x32xf32>
    %416 = vector.extract_strided_slice %401 {offsets = [0, 96], sizes = [8, 32], strides = [1, 1]} : vector<8x128xf32> to vector<8x32xf32>
    %417 = arith.negf %416 : vector<8x32xf32>
    %418 = math.exp %417 : vector<8x32xf32>
    %cst_126 = arith.constant 1.000000e+00 : f32
    %419 = vector.broadcast %cst_126 : f32 to vector<8x32xf32>
    %420 = arith.addf %419, %418 : vector<8x32xf32>
    %421 = arith.divf %419, %420 : vector<8x32xf32>
    %422 = arith.mulf %413, %359 : vector<8x32xf32>
    %423 = arith.mulf %407, %415 : vector<8x32xf32>
    %424 = arith.addf %422, %423 : vector<8x32xf32>
    %425 = math.tanh %424 : vector<8x32xf32>
    %426 = arith.mulf %421, %425 : vector<8x32xf32>
    %427 = arith.addf %362, %394 : vector<8x32xf32>
    %428 = arith.addf %363, %426 : vector<8x32xf32>
    %c6_i32 = arith.constant 6 : i32
    %429 = arith.index_cast %c6_i32 : i32 to index
    %c0_127 = arith.constant 0 : index
    %c0_128 = arith.constant 0 : index
    %430 = vector.load %arg16[%429, %c0_127, %c0_128] : memref<8x8x128xf32, #tpu.memory_space<vmem>>, vector<1x8x128xf32>
    %431 = vector.shape_cast %430 : vector<1x8x128xf32> to vector<8x128xf32>
    %432 = arith.truncf %394 : vector<8x32xf32> to vector<8x32xbf16>
    %cst_129 = arith.constant dense<0.000000e+00> : vector<8x128xf32>
    %433 = tpu.matmul %432, %31, %cst_129 {dimension_numbers = #tpu.dot_dimension_numbers<[1], [0], [0], [1], [0, 0, 1, 1], [], []>} : vector<8x32xbf16>, vector<32x128xbf16>, vector<8x128xf32> -> vector<8x128xf32>
    %434 = arith.addf %431, %433 : vector<8x128xf32>
    %435 = vector.extract_strided_slice %434 {offsets = [0, 0], sizes = [8, 32], strides = [1, 1]} : vector<8x128xf32> to vector<8x32xf32>
    %436 = arith.negf %435 : vector<8x32xf32>
    %437 = math.exp %436 : vector<8x32xf32>
    %cst_130 = arith.constant 1.000000e+00 : f32
    %438 = vector.broadcast %cst_130 : f32 to vector<8x32xf32>
    %439 = arith.addf %438, %437 : vector<8x32xf32>
    %440 = arith.divf %438, %439 : vector<8x32xf32>
    %441 = vector.extract_strided_slice %434 {offsets = [0, 32], sizes = [8, 32], strides = [1, 1]} : vector<8x128xf32> to vector<8x32xf32>
    %442 = arith.negf %441 : vector<8x32xf32>
    %443 = math.exp %442 : vector<8x32xf32>
    %cst_131 = arith.constant 1.000000e+00 : f32
    %444 = vector.broadcast %cst_131 : f32 to vector<8x32xf32>
    %445 = arith.addf %444, %443 : vector<8x32xf32>
    %446 = arith.divf %444, %445 : vector<8x32xf32>
    %447 = vector.extract_strided_slice %434 {offsets = [0, 64], sizes = [8, 32], strides = [1, 1]} : vector<8x128xf32> to vector<8x32xf32>
    %448 = math.tanh %447 : vector<8x32xf32>
    %449 = vector.extract_strided_slice %434 {offsets = [0, 96], sizes = [8, 32], strides = [1, 1]} : vector<8x128xf32> to vector<8x32xf32>
    %450 = arith.negf %449 : vector<8x32xf32>
    %451 = math.exp %450 : vector<8x32xf32>
    %cst_132 = arith.constant 1.000000e+00 : f32
    %452 = vector.broadcast %cst_132 : f32 to vector<8x32xf32>
    %453 = arith.addf %452, %451 : vector<8x32xf32>
    %454 = arith.divf %452, %453 : vector<8x32xf32>
    %455 = arith.mulf %446, %392 : vector<8x32xf32>
    %456 = arith.mulf %440, %448 : vector<8x32xf32>
    %457 = arith.addf %455, %456 : vector<8x32xf32>
    %458 = math.tanh %457 : vector<8x32xf32>
    %459 = arith.mulf %454, %458 : vector<8x32xf32>
    %c7_i32_133 = arith.constant 7 : i32
    %460 = arith.subi %c7_i32_133, %c6_i32 : i32
    %461 = arith.index_cast %460 : i32 to index
    %c0_134 = arith.constant 0 : index
    %c0_135 = arith.constant 0 : index
    %462 = vector.load %arg17[%461, %c0_134, %c0_135] : memref<8x8x128xf32, #tpu.memory_space<vmem>>, vector<1x8x128xf32>
    %463 = vector.shape_cast %462 : vector<1x8x128xf32> to vector<8x128xf32>
    %464 = arith.truncf %426 : vector<8x32xf32> to vector<8x32xbf16>
    %cst_136 = arith.constant dense<0.000000e+00> : vector<8x128xf32>
    %465 = tpu.matmul %464, %32, %cst_136 {dimension_numbers = #tpu.dot_dimension_numbers<[1], [0], [0], [1], [0, 0, 1, 1], [], []>} : vector<8x32xbf16>, vector<32x128xbf16>, vector<8x128xf32> -> vector<8x128xf32>
    %466 = arith.addf %463, %465 : vector<8x128xf32>
    %467 = vector.extract_strided_slice %466 {offsets = [0, 0], sizes = [8, 32], strides = [1, 1]} : vector<8x128xf32> to vector<8x32xf32>
    %468 = arith.negf %467 : vector<8x32xf32>
    %469 = math.exp %468 : vector<8x32xf32>
    %cst_137 = arith.constant 1.000000e+00 : f32
    %470 = vector.broadcast %cst_137 : f32 to vector<8x32xf32>
    %471 = arith.addf %470, %469 : vector<8x32xf32>
    %472 = arith.divf %470, %471 : vector<8x32xf32>
    %473 = vector.extract_strided_slice %466 {offsets = [0, 32], sizes = [8, 32], strides = [1, 1]} : vector<8x128xf32> to vector<8x32xf32>
    %474 = arith.negf %473 : vector<8x32xf32>
    %475 = math.exp %474 : vector<8x32xf32>
    %cst_138 = arith.constant 1.000000e+00 : f32
    %476 = vector.broadcast %cst_138 : f32 to vector<8x32xf32>
    %477 = arith.addf %476, %475 : vector<8x32xf32>
    %478 = arith.divf %476, %477 : vector<8x32xf32>
    %479 = vector.extract_strided_slice %466 {offsets = [0, 64], sizes = [8, 32], strides = [1, 1]} : vector<8x128xf32> to vector<8x32xf32>
    %480 = math.tanh %479 : vector<8x32xf32>
    %481 = vector.extract_strided_slice %466 {offsets = [0, 96], sizes = [8, 32], strides = [1, 1]} : vector<8x128xf32> to vector<8x32xf32>
    %482 = arith.negf %481 : vector<8x32xf32>
    %483 = math.exp %482 : vector<8x32xf32>
    %cst_139 = arith.constant 1.000000e+00 : f32
    %484 = vector.broadcast %cst_139 : f32 to vector<8x32xf32>
    %485 = arith.addf %484, %483 : vector<8x32xf32>
    %486 = arith.divf %484, %485 : vector<8x32xf32>
    %487 = arith.mulf %478, %424 : vector<8x32xf32>
    %488 = arith.mulf %472, %480 : vector<8x32xf32>
    %489 = arith.addf %487, %488 : vector<8x32xf32>
    %490 = math.tanh %489 : vector<8x32xf32>
    %491 = arith.mulf %486, %490 : vector<8x32xf32>
    %492 = arith.addf %427, %459 : vector<8x32xf32>
    %493 = arith.addf %428, %491 : vector<8x32xf32>
    %c7_i32_140 = arith.constant 7 : i32
    %494 = arith.index_cast %c7_i32_140 : i32 to index
    %c0_141 = arith.constant 0 : index
    %c0_142 = arith.constant 0 : index
    %495 = vector.load %arg16[%494, %c0_141, %c0_142] : memref<8x8x128xf32, #tpu.memory_space<vmem>>, vector<1x8x128xf32>
    %496 = vector.shape_cast %495 : vector<1x8x128xf32> to vector<8x128xf32>
    %497 = arith.truncf %459 : vector<8x32xf32> to vector<8x32xbf16>
    %cst_143 = arith.constant dense<0.000000e+00> : vector<8x128xf32>
    %498 = tpu.matmul %497, %31, %cst_143 {dimension_numbers = #tpu.dot_dimension_numbers<[1], [0], [0], [1], [0, 0, 1, 1], [], []>} : vector<8x32xbf16>, vector<32x128xbf16>, vector<8x128xf32> -> vector<8x128xf32>
    %499 = arith.addf %496, %498 : vector<8x128xf32>
    %500 = vector.extract_strided_slice %499 {offsets = [0, 0], sizes = [8, 32], strides = [1, 1]} : vector<8x128xf32> to vector<8x32xf32>
    %501 = arith.negf %500 : vector<8x32xf32>
    %502 = math.exp %501 : vector<8x32xf32>
    %cst_144 = arith.constant 1.000000e+00 : f32
    %503 = vector.broadcast %cst_144 : f32 to vector<8x32xf32>
    %504 = arith.addf %503, %502 : vector<8x32xf32>
    %505 = arith.divf %503, %504 : vector<8x32xf32>
    %506 = vector.extract_strided_slice %499 {offsets = [0, 32], sizes = [8, 32], strides = [1, 1]} : vector<8x128xf32> to vector<8x32xf32>
    %507 = arith.negf %506 : vector<8x32xf32>
    %508 = math.exp %507 : vector<8x32xf32>
    %cst_145 = arith.constant 1.000000e+00 : f32
    %509 = vector.broadcast %cst_145 : f32 to vector<8x32xf32>
    %510 = arith.addf %509, %508 : vector<8x32xf32>
    %511 = arith.divf %509, %510 : vector<8x32xf32>
    %512 = vector.extract_strided_slice %499 {offsets = [0, 64], sizes = [8, 32], strides = [1, 1]} : vector<8x128xf32> to vector<8x32xf32>
    %513 = math.tanh %512 : vector<8x32xf32>
    %514 = vector.extract_strided_slice %499 {offsets = [0, 96], sizes = [8, 32], strides = [1, 1]} : vector<8x128xf32> to vector<8x32xf32>
    %515 = arith.negf %514 : vector<8x32xf32>
    %516 = math.exp %515 : vector<8x32xf32>
    %cst_146 = arith.constant 1.000000e+00 : f32
    %517 = vector.broadcast %cst_146 : f32 to vector<8x32xf32>
    %518 = arith.addf %517, %516 : vector<8x32xf32>
    %519 = arith.divf %517, %518 : vector<8x32xf32>
    %520 = arith.mulf %511, %457 : vector<8x32xf32>
    %521 = arith.mulf %505, %513 : vector<8x32xf32>
    %522 = arith.addf %520, %521 : vector<8x32xf32>
    %523 = math.tanh %522 : vector<8x32xf32>
    %524 = arith.mulf %519, %523 : vector<8x32xf32>
    %c7_i32_147 = arith.constant 7 : i32
    %525 = arith.subi %c7_i32_147, %c7_i32_140 : i32
    %526 = arith.index_cast %525 : i32 to index
    %c0_148 = arith.constant 0 : index
    %c0_149 = arith.constant 0 : index
    %527 = vector.load %arg17[%526, %c0_148, %c0_149] : memref<8x8x128xf32, #tpu.memory_space<vmem>>, vector<1x8x128xf32>
    %528 = vector.shape_cast %527 : vector<1x8x128xf32> to vector<8x128xf32>
    %529 = arith.truncf %491 : vector<8x32xf32> to vector<8x32xbf16>
    %cst_150 = arith.constant dense<0.000000e+00> : vector<8x128xf32>
    %530 = tpu.matmul %529, %32, %cst_150 {dimension_numbers = #tpu.dot_dimension_numbers<[1], [0], [0], [1], [0, 0, 1, 1], [], []>} : vector<8x32xbf16>, vector<32x128xbf16>, vector<8x128xf32> -> vector<8x128xf32>
    %531 = arith.addf %528, %530 : vector<8x128xf32>
    %532 = vector.extract_strided_slice %531 {offsets = [0, 0], sizes = [8, 32], strides = [1, 1]} : vector<8x128xf32> to vector<8x32xf32>
    %533 = arith.negf %532 : vector<8x32xf32>
    %534 = math.exp %533 : vector<8x32xf32>
    %cst_151 = arith.constant 1.000000e+00 : f32
    %535 = vector.broadcast %cst_151 : f32 to vector<8x32xf32>
    %536 = arith.addf %535, %534 : vector<8x32xf32>
    %537 = arith.divf %535, %536 : vector<8x32xf32>
    %538 = vector.extract_strided_slice %531 {offsets = [0, 32], sizes = [8, 32], strides = [1, 1]} : vector<8x128xf32> to vector<8x32xf32>
    %539 = arith.negf %538 : vector<8x32xf32>
    %540 = math.exp %539 : vector<8x32xf32>
    %cst_152 = arith.constant 1.000000e+00 : f32
    %541 = vector.broadcast %cst_152 : f32 to vector<8x32xf32>
    %542 = arith.addf %541, %540 : vector<8x32xf32>
    %543 = arith.divf %541, %542 : vector<8x32xf32>
    %544 = vector.extract_strided_slice %531 {offsets = [0, 64], sizes = [8, 32], strides = [1, 1]} : vector<8x128xf32> to vector<8x32xf32>
    %545 = math.tanh %544 : vector<8x32xf32>
    %546 = vector.extract_strided_slice %531 {offsets = [0, 96], sizes = [8, 32], strides = [1, 1]} : vector<8x128xf32> to vector<8x32xf32>
    %547 = arith.negf %546 : vector<8x32xf32>
    %548 = math.exp %547 : vector<8x32xf32>
    %cst_153 = arith.constant 1.000000e+00 : f32
    %549 = vector.broadcast %cst_153 : f32 to vector<8x32xf32>
    %550 = arith.addf %549, %548 : vector<8x32xf32>
    %551 = arith.divf %549, %550 : vector<8x32xf32>
    %552 = arith.mulf %543, %489 : vector<8x32xf32>
    %553 = arith.mulf %537, %545 : vector<8x32xf32>
    %554 = arith.addf %552, %553 : vector<8x32xf32>
    %555 = math.tanh %554 : vector<8x32xf32>
    %556 = arith.mulf %551, %555 : vector<8x32xf32>
    %557 = arith.addf %492, %524 : vector<8x32xf32>
    %558 = arith.addf %493, %556 : vector<8x32xf32>
    %c8_i32 = arith.constant 8 : i32
    %c0_154 = arith.constant 0 : index
    %c0_155 = arith.constant 0 : index
    %559 = vector.load %arg18[%c0_154, %c0_155] : memref<8x32xf32, #tpu.memory_space<vmem>>, vector<8x32xf32>
    tpu.vector_store %arg18[%c0_154, %c0_155], %524 {strides = array<i32>} : memref<8x32xf32, #tpu.memory_space<vmem>>, vector<8x32xf32>,
    %c0_156 = arith.constant 0 : index
    %c0_157 = arith.constant 0 : index
    %560 = vector.load %arg19[%c0_156, %c0_157] : memref<8x32xf32, #tpu.memory_space<vmem>>, vector<8x32xf32>
    tpu.vector_store %arg19[%c0_156, %c0_157], %522 {strides = array<i32>} : memref<8x32xf32, #tpu.memory_space<vmem>>, vector<8x32xf32>,
    %c0_158 = arith.constant 0 : index
    %c0_159 = arith.constant 0 : index
    %561 = vector.load %arg20[%c0_158, %c0_159] : memref<8x32xf32, #tpu.memory_space<vmem>>, vector<8x32xf32>
    tpu.vector_store %arg20[%c0_158, %c0_159], %556 {strides = array<i32>} : memref<8x32xf32, #tpu.memory_space<vmem>>, vector<8x32xf32>,
    %c0_160 = arith.constant 0 : index
    %c0_161 = arith.constant 0 : index
    %562 = vector.load %arg21[%c0_160, %c0_161] : memref<8x32xf32, #tpu.memory_space<vmem>>, vector<8x32xf32>
    tpu.vector_store %arg21[%c0_160, %c0_161], %554 {strides = array<i32>} : memref<8x32xf32, #tpu.memory_space<vmem>>, vector<8x32xf32>,
    %c0_162 = arith.constant 0 : index
    %c0_163 = arith.constant 0 : index
    %563 = vector.load %arg22[%c0_162, %c0_163] : memref<8x32xf32, #tpu.memory_space<vmem>>, vector<8x32xf32>
    tpu.vector_store %arg22[%c0_162, %c0_163], %557 {strides = array<i32>} : memref<8x32xf32, #tpu.memory_space<vmem>>, vector<8x32xf32>,
    %c0_164 = arith.constant 0 : index
    %c0_165 = arith.constant 0 : index
    %564 = vector.load %arg23[%c0_164, %c0_165] : memref<8x32xf32, #tpu.memory_space<vmem>>, vector<8x32xf32>
    tpu.vector_store %arg23[%c0_164, %c0_165], %558 {strides = array<i32>} : memref<8x32xf32, #tpu.memory_space<vmem>>, vector<8x32xf32>,
    %c0_i32_166 = arith.constant 0 : i32
    %565 = arith.cmpi eq, %arg0, %c0_i32_166 : i32
    %566 = arith.extui %565 : i1 to i32
    %c0_i32_167 = arith.constant 0 : i32
    %567 = arith.cmpi ne, %566, %c0_i32_167 : i32
    scf.if %567 {
      %c0_168 = arith.constant 0 : index
      %c0_169 = arith.constant 0 : index
      %568 = vector.load %arg22[%c0_168, %c0_169] : memref<8x32xf32, #tpu.memory_space<vmem>>, vector<8x32xf32>
      %c0_170 = arith.constant 0 : index
      %c0_171 = arith.constant 0 : index
      %569 = vector.load %arg23[%c0_170, %c0_171] : memref<8x32xf32, #tpu.memory_space<vmem>>, vector<8x32xf32>
      %570 = tpu.concatenate %568, %569 in 1 : vector<8x32xf32>, vector<8x32xf32> -> vector<8x64xf32>
      %cst_172 = arith.constant 1.250000e-01 : f32
      %571 = vector.broadcast %cst_172 : f32 to vector<8x64xf32>
      %572 = arith.mulf %570, %571 : vector<8x64xf32>
      %573 = arith.truncf %572 : vector<8x64xf32> to vector<8x64xbf16>
      %c0_173 = arith.constant 0 : index
      %c0_174 = arith.constant 0 : index
      %574 = vector.load %arg13[%c0_173, %c0_174] : memref<64x128xbf16, #tpu.memory_space<vmem>>, vector<64x128xbf16>
      %cst_175 = arith.constant dense<0.000000e+00> : vector<8x128xf32>
      %575 = tpu.matmul %573, %574, %cst_175 {dimension_numbers = #tpu.dot_dimension_numbers<[1], [0], [0], [1], [0, 0, 1, 1], [], []>} : vector<8x64xbf16>, vector<64x128xbf16>, vector<8x128xf32> -> vector<8x128xf32>
      %c0_176 = arith.constant 0 : index
      %c0_177 = arith.constant 0 : index
      %576 = vector.load %arg14[%c0_176, %c0_177] : memref<1x128xf32, #tpu.memory_space<vmem>>, vector<1x128xf32>
      %577 = vector.broadcast %576 : vector<1x128xf32> to vector<8x128xf32>
      %578 = arith.addf %575, %577 : vector<8x128xf32>
      %c0_178 = arith.constant 0 : index
      %c0_179 = arith.constant 0 : index
      %579 = vector.load %arg15[%c0_178, %c0_179] : memref<8x128xf32, #tpu.memory_space<vmem>>, vector<8x128xf32>
      tpu.vector_store %arg15[%c0_178, %c0_179], %578 {strides = array<i32>} : memref<8x128xf32, #tpu.memory_space<vmem>>, vector<8x128xf32>,
    } else {
    }
    return
  }
  func.func @transform_0(%arg0: i32) -> (i32, i32, i32) {
    %c0_i32 = arith.constant 0 : i32
    %c0_i32_0 = arith.constant 0 : i32
    %c0_i32_1 = arith.constant 0 : i32
    return %arg0, %c0_i32, %c0_i32_0 : i32, i32, i32
  }
  func.func @transform_1(%arg0: i32) -> (i32, i32, i32) {
    %c0_i32 = arith.constant 0 : i32
    %c0_i32_0 = arith.constant 0 : i32
    %c0_i32_1 = arith.constant 0 : i32
    return %arg0, %c0_i32, %c0_i32_0 : i32, i32, i32
  }
  func.func @transform_2(%arg0: i32) -> (i32, i32, i32) {
    %c0_i32 = arith.constant 0 : i32
    %0 = arith.subi %c0_i32, %arg0 : i32
    %c0_i32_0 = arith.constant 0 : i32
    %c0_i32_1 = arith.constant 0 : i32
    %c0_i32_2 = arith.constant 0 : i32
    return %0, %c0_i32_0, %c0_i32_1 : i32, i32, i32
  }
  func.func @transform_3(%arg0: i32) -> (i32, i32, i32) {
    %c0_i32 = arith.constant 0 : i32
    %0 = arith.subi %c0_i32, %arg0 : i32
    %c0_i32_0 = arith.constant 0 : i32
    %c0_i32_1 = arith.constant 0 : i32
    %c0_i32_2 = arith.constant 0 : i32
    return %0, %c0_i32_0, %c0_i32_1 : i32, i32, i32
  }
  func.func @transform_4(%arg0: i32) -> (i32, i32) {
    %c0_i32 = arith.constant 0 : i32
    %c0_i32_0 = arith.constant 0 : i32
    %c0_i32_1 = arith.constant 0 : i32
    return %c0_i32, %c0_i32_0 : i32, i32
  }
  func.func @transform_5(%arg0: i32) -> (i32, i32) {
    %c0_i32 = arith.constant 0 : i32
    %c0_i32_0 = arith.constant 0 : i32
    %c0_i32_1 = arith.constant 0 : i32
    return %c0_i32, %c0_i32_0 : i32, i32
  }
  func.func @transform_6(%arg0: i32) -> (i32, i32) {
    %c0_i32 = arith.constant 0 : i32
    %c0_i32_0 = arith.constant 0 : i32
    %c0_i32_1 = arith.constant 0 : i32
    return %c0_i32, %c0_i32_0 : i32, i32
  }
  func.func @transform_7(%arg0: i32) -> (i32, i32) {
    %c0_i32 = arith.constant 0 : i32
    %c0_i32_0 = arith.constant 0 : i32
    %c0_i32_1 = arith.constant 0 : i32
    return %c0_i32, %c0_i32_0 : i32, i32
  }
  func.func @transform_8(%arg0: i32) -> (i32, i32) {
    %c0_i32 = arith.constant 0 : i32
    %c0_i32_0 = arith.constant 0 : i32
    %c0_i32_1 = arith.constant 0 : i32
    return %c0_i32, %c0_i32_0 : i32, i32
  }
  func.func @transform_9(%arg0: i32) -> (i32, i32) {
    %c0_i32 = arith.constant 0 : i32
    %c0_i32_0 = arith.constant 0 : i32
    %c0_i32_1 = arith.constant 0 : i32
    return %c0_i32, %c0_i32_0 : i32, i32
  }
  func.func @transform_10(%arg0: i32) -> (i32, i32) {
    %c0_i32 = arith.constant 0 : i32
    %c0_i32_0 = arith.constant 0 : i32
    %c0_i32_1 = arith.constant 0 : i32
    return %c0_i32, %c0_i32_0 : i32, i32
  }
  func.func @transform_11(%arg0: i32) -> (i32, i32) {
    %c0_i32 = arith.constant 0 : i32
    %c0_i32_0 = arith.constant 0 : i32
    %c0_i32_1 = arith.constant 0 : i32
    return %c0_i32, %c0_i32_0 : i32, i32
  }
  func.func @transform_12(%arg0: i32) -> (i32, i32) {
    %c0_i32 = arith.constant 0 : i32
    %c0_i32_0 = arith.constant 0 : i32
    %c0_i32_1 = arith.constant 0 : i32
    return %c0_i32, %c0_i32_0 : i32, i32
  }
  func.func @transform_13(%arg0: i32) -> (i32, i32) {
    %c0_i32 = arith.constant 0 : i32
    %c0_i32_0 = arith.constant 0 : i32
    %c0_i32_1 = arith.constant 0 : i32
    return %c0_i32, %c0_i32_0 : i32, i32
  }
  func.func @transform_14(%arg0: i32) -> (i32, i32) {
    %c0_i32 = arith.constant 0 : i32
    %c0_i32_0 = arith.constant 0 : i32
    %c0_i32_1 = arith.constant 0 : i32
    return %c0_i32, %c0_i32_0 : i32, i32
  }
}

</mosaic_0001>

<llo_original>
// kernel: bilstm_softmax_forward.3
$region0: #{bilstm_softmax_forward.3}
  #allocation0 [shape = 'u32[]', space=smem, size = 0x4, offset = 0x4, fixed_abs, tag = 'smem constant byte address 0x4 - core index']
  #allocation1 [shape = 'u32[144,128]{1,0:T(1,128)}', space=vmem, size = 0x12000, scoped, tag = 'internal scratch']
  #allocation2 [shape = 'f32[8,8,128]{2,1,0:T(8,128)}', space=vmem, size = 0x8000, scoped, tag = 'scratch operand']
  #allocation3 [shape = 'f32[8,8,128]{2,1,0:T(8,128)}', space=vmem, size = 0x8000, scoped, tag = 'scratch operand']
  #allocation4 [shape = 'f32[8,32]{1,0:T(8,128)}', space=vmem, size = 0x1000, scoped, tag = 'scratch operand']
  #allocation5 [shape = 'f32[8,32]{1,0:T(8,128)}', space=vmem, size = 0x1000, scoped, tag = 'scratch operand']
  #allocation6 [shape = 'f32[8,32]{1,0:T(8,128)}', space=vmem, size = 0x1000, scoped, tag = 'scratch operand']
  #allocation7 [shape = 'f32[8,32]{1,0:T(8,128)}', space=vmem, size = 0x1000, scoped, tag = 'scratch operand']
  #allocation8 [shape = 'f32[8,32]{1,0:T(8,128)}', space=vmem, size = 0x1000, scoped, tag = 'scratch operand']
  #allocation9 [shape = 'f32[8,32]{1,0:T(8,128)}', space=vmem, size = 0x1000, scoped, tag = 'scratch operand']
  %s0 = inlined_call_operand.vmem [shape: bf16[8,8,32], index: 0, kind: input, shape index: {}, may-alias: {0,2}]
  %s1 = inlined_call_operand.vmem [shape: bf16[8,8,32], index: 1, kind: input, shape index: {}, may-alias: {1,3}]
  %s2 = inlined_call_operand.vmem [shape: bf16[8,8,32], index: 2, kind: input, shape index: {}, may-alias: {0,2}]
  %s3 = inlined_call_operand.vmem [shape: bf16[8,8,32], index: 3, kind: input, shape index: {}, may-alias: {1,3}]
  %s4 = inlined_call_operand.vmem [shape: bf16[32,128], index: 4, kind: input, shape index: {}]
  %s5 = inlined_call_operand.vmem [shape: bf16[32,128], index: 5, kind: input, shape index: {}]
  %s6 = inlined_call_operand.vmem [shape: bf16[32,128], index: 6, kind: input, shape index: {}]
  %s7 = inlined_call_operand.vmem [shape: bf16[32,128], index: 7, kind: input, shape index: {}]
  %s8 = inlined_call_operand.vmem [shape: f32[1,128], index: 8, kind: input, shape index: {}]
  %s9 = inlined_call_operand.vmem [shape: f32[1,128], index: 9, kind: input, shape index: {}]
  %s10 = inlined_call_operand.vmem [shape: bf16[32,128], index: 10, kind: input, shape index: {}]
  %s11 = inlined_call_operand.vmem [shape: bf16[32,128], index: 11, kind: input, shape index: {}]
  %s12 = inlined_call_operand.vmem [shape: bf16[64,128], index: 12, kind: input, shape index: {}]
  %s13 = inlined_call_operand.vmem [shape: f32[1,128], index: 13, kind: input, shape index: {}]
  %s14 = inlined_call_operand.vmem [shape: f32[8,128], index: 14, kind: output, shape index: {}]
  %s15 = sld [smem:[#allocation0]]
  $region74: #{bilstm_softmax_forward.3} parent=0
    _
  %s17 = ssub.s32 1, %s15
  %s18 = scalar_select 0, %s17, %s15
  // Predicated region
  $region2: #{bilstm_softmax_forward.3} parent=0 // pred_check
    _
  $region3: #{bilstm_softmax_forward.3} parent=0 // pred_check_branch
    %20 = sbr.rel (0) target = $region5
  $region4: #{bilstm_softmax_forward.3} parent=0 // pred_region
    _
  $region5: #{bilstm_softmax_forward.3} parent=0 // pred_fallthru
    _
  // Predicated region
  $region6: #{bilstm_softmax_forward.3} parent=0 // pred_check
    _
  $region7: #{bilstm_softmax_forward.3} parent=0 // pred_check_branch
    %22 = sbr.rel (0) target = $region9
  $region8: #{bilstm_softmax_forward.3} parent=0 // pred_region
    _
  $region9: #{bilstm_softmax_forward.3} parent=0 // pred_fallthru
    _
  // Predicated region
  $region10: #{bilstm_softmax_forward.3} parent=0 // pred_check
    _
  $region11: #{bilstm_softmax_forward.3} parent=0 // pred_check_branch
    %24 = sbr.rel (0) target = $region13
  $region12: #{bilstm_softmax_forward.3} parent=0 // pred_region
    %s25 = ssub.s32 0, 0
    %s26 = smul.u32 8, %s25
    %p27 = scmp.lt.s32.totalorder %s26, 7
    %s28 = scalar_select %p27, %s26, 7
    %s29 = smul.addr %s28, 4
    %s30 = scalar_lea.vmem %s2, %s29
    %s31 = ssub.s32 0, 0
    %s32 = smul.u32 8, %s31
  $region13: #{bilstm_softmax_forward.3} parent=0 // pred_fallthru
    _
  // Predicated region
  $region14: #{bilstm_softmax_forward.3} parent=0 // pred_check
    _
  $region15: #{bilstm_softmax_forward.3} parent=0 // pred_check_branch
    %34 = sbr.rel (0) target = $region17
  $region16: #{bilstm_softmax_forward.3} parent=0 // pred_region
    %s35 = ssub.s32 0, 0
    %s36 = smul.u32 8, %s35
    %p37 = scmp.lt.s32.totalorder %s36, 7
    %s38 = scalar_select %p37, %s36, 7
    %s39 = smul.addr %s38, 4
    %s40 = scalar_lea.vmem %s3, %s39
    %s41 = ssub.s32 0, 0
    %s42 = smul.u32 8, %s41
  $region17: #{bilstm_softmax_forward.3} parent=0 // pred_fallthru
    _
  // Predicated region
  $region18: #{bilstm_softmax_forward.3} parent=0 // pred_check
    _
  $region19: #{bilstm_softmax_forward.3} parent=0 // pred_check_branch
    %44 = sbr.rel (0) target = $region21
  $region20: #{bilstm_softmax_forward.3} parent=0 // pred_region
    _
  $region21: #{bilstm_softmax_forward.3} parent=0 // pred_fallthru
    _
  // Predicated region
  $region22: #{bilstm_softmax_forward.3} parent=0 // pred_check
    _
  $region23: #{bilstm_softmax_forward.3} parent=0 // pred_check_branch
    %46 = sbr.rel (0) target = $region25
  $region24: #{bilstm_softmax_forward.3} parent=0 // pred_region
    _
  $region25: #{bilstm_softmax_forward.3} parent=0 // pred_fallthru
    _
  // Predicated region
  $region26: #{bilstm_softmax_forward.3} parent=0 // pred_check
    _
  $region27: #{bilstm_softmax_forward.3} parent=0 // pred_check_branch
    %48 = sbr.rel (0) target = $region29
  $region28: #{bilstm_softmax_forward.3} parent=0 // pred_region
    _
  $region29: #{bilstm_softmax_forward.3} parent=0 // pred_fallthru
    _
  // Predicated region
  $region30: #{bilstm_softmax_forward.3} parent=0 // pred_check
    _
  $region31: #{bilstm_softmax_forward.3} parent=0 // pred_check_branch
    %50 = sbr.rel (0) target = $region33
  $region32: #{bilstm_softmax_forward.3} parent=0 // pred_region
    _
  $region33: #{bilstm_softmax_forward.3} parent=0 // pred_fallthru
    _
  // Predicated region
  $region34: #{bilstm_softmax_forward.3} parent=0 // pred_check
    _
  $region35: #{bilstm_softmax_forward.3} parent=0 // pred_check_branch
    %52 = sbr.rel (0) target = $region37
  $region36: #{bilstm_softmax_forward.3} parent=0 // pred_region
    _
  $region37: #{bilstm_softmax_forward.3} parent=0 // pred_fallthru
    _
  // Predicated region
  $region38: #{bilstm_softmax_forward.3} parent=0 // pred_check
    _
  $region39: #{bilstm_softmax_forward.3} parent=0 // pred_check_branch
    %54 = sbr.rel (0) target = $region41
  $region40: #{bilstm_softmax_forward.3} parent=0 // pred_region
    _
  $region41: #{bilstm_softmax_forward.3} parent=0 // pred_fallthru
    _
  // Predicated region
  $region42: #{bilstm_softmax_forward.3} parent=0 // pred_check
    _
  $region43: #{bilstm_softmax_forward.3} parent=0 // pred_check_branch
    %56 = sbr.rel (0) target = $region45
  $region44: #{bilstm_softmax_forward.3} parent=0 // pred_region
    _
  $region45: #{bilstm_softmax_forward.3} parent=0 // pred_fallthru
    _
  // Predicated region
  $region46: #{bilstm_softmax_forward.3} parent=0 // pred_check
    _
  $region47: #{bilstm_softmax_forward.3} parent=0 // pred_check_branch
    %58 = sbr.rel (0) target = $region49
  $region48: #{bilstm_softmax_forward.3} parent=0 // pred_region
    _
  $region49: #{bilstm_softmax_forward.3} parent=0 // pred_fallthru
    _
  // Predicated region
  $region50: #{bilstm_softmax_forward.3} parent=0 // pred_check
    _
  $region51: #{bilstm_softmax_forward.3} parent=0 // pred_check_branch
    %60 = sbr.rel (0) target = $region53
  $region52: #{bilstm_softmax_forward.3} parent=0 // pred_region
    _
  $region53: #{bilstm_softmax_forward.3} parent=0 // pred_fallthru
    _
  // Predicated region
  $region54: #{bilstm_softmax_forward.3} parent=0 // pred_check
    _
  $region55: #{bilstm_softmax_forward.3} parent=0 // pred_check_branch
    %62 = sbr.rel (0) target = $region57
  $region56: #{bilstm_softmax_forward.3} parent=0 // pred_region
    _
  $region57: #{bilstm_softmax_forward.3} parent=0 // pred_fallthru
    _
  %s63 = ssub.s32 0, 0
  %s64 = smul.u32 8, %s63
  %p65 = scmp.lt.s32.totalorder %s64, 7
  %s66 = scalar_select %p65, %s64, 7
  %s67 = smul.addr %s66, 4
  %s68 = scalar_lea.vmem %s2, %s67
  %s69 = ssub.s32 0, 0
  %s70 = smul.u32 8, %s69
  %p71 = scmp.lt.s32.totalorder %s70, 7
  %s72 = scalar_select %p71, %s70, 7
  %s73 = smul.addr %s72, 4
  %s74 = scalar_lea.vmem %s3, %s73
  %s75 = ssub.s32 0, 0
  %s76 = smul.u32 8, %s75
  %p77 = scmp.lt.s32.totalorder %s76, 7
  %s78 = scalar_select %p77, %s76, 7
  %s79 = smul.addr %s78, 4
  %s80 = scalar_lea.vmem %s2, %s79
  %s81 = ssub.s32 0, 0
  %s82 = smul.u32 8, %s81
  %s83 = ssub.s32 0, 0
  %s84 = smul.u32 8, %s83
  %p85 = scmp.lt.s32.totalorder %s84, 7
  %s86 = scalar_select %p85, %s84, 7
  %s87 = smul.addr %s86, 4
  %s88 = scalar_lea.vmem %s3, %s87
  %s89 = ssub.s32 0, 0
  %s90 = smul.u32 8, %s89
  %p92 = scmp.eq.s32.totalorder 0, 0
  // Predicated region
  $region58: #{bilstm_softmax_forward.3} parent=0 // pred_check
    %p93 = pneg %p92
  $region59: #{bilstm_softmax_forward.3} parent=0 // pred_check_branch
    %95 = sbr.rel (%p93) target = $region61
  $region60: #{bilstm_softmax_forward.3} parent=0 // pred_region
    %vm96 = vcmask 261120
    %97 = vst.msk [vmem:[#allocation4] sm:$0xff] %vm96, 0.0
    %98 = vst.msk [vmem:[#allocation5] sm:$0xff] %vm96, 0.0
    %99 = vst.msk [vmem:[#allocation6] sm:$0xff] %vm96, 0.0
    %100 = vst.msk [vmem:[#allocation7] sm:$0xff] %vm96, 0.0
    %101 = vst.msk [vmem:[#allocation8] sm:$0xff] %vm96, 0.0
    %102 = vst.msk [vmem:[#allocation9] sm:$0xff] %vm96, 0.0
  $region61: #{bilstm_softmax_forward.3} parent=0 // pred_fallthru
    _
  %v103 = vld [vmem:[%s0] sm:$0xf]
  %v104 = vld [vmem:[%s0 + $0x4] sm:$0xf]
  %v105 = vld [vmem:[%s0 + $0x8] sm:$0xf]
  %v106 = vld [vmem:[%s0 + $0xc] sm:$0xf]
  %v107 = vld [vmem:[%s0 + $0x10] sm:$0xf]
  %v108 = vld [vmem:[%s0 + $0x14] sm:$0xf]
  %v109 = vld [vmem:[%s0 + $0x18] sm:$0xf]
  %v110 = vld [vmem:[%s0 + $0x1c] sm:$0xf]
  %v111 = vld [vmem:[%s4] sm:$0xf]
  %v112 = vld [vmem:[%s4 + $0x4] sm:$0xf]
  %v113 = vld [vmem:[%s4 + $0x8] sm:$0xf]
  %v114 = vld [vmem:[%s4 + $0xc] sm:$0xf]
  %v115 = vld [vmem:[%s1] sm:$0xf]
  %v116 = vld [vmem:[%s1 + $0x4] sm:$0xf]
  %v117 = vld [vmem:[%s1 + $0x8] sm:$0xf]
  %v118 = vld [vmem:[%s1 + $0xc] sm:$0xf]
  %v119 = vld [vmem:[%s1 + $0x10] sm:$0xf]
  %v120 = vld [vmem:[%s1 + $0x14] sm:$0xf]
  %v121 = vld [vmem:[%s1 + $0x18] sm:$0xf]
  %v122 = vld [vmem:[%s1 + $0x1c] sm:$0xf]
  %v123 = vld [vmem:[%s5] sm:$0xf]
  %v124 = vld [vmem:[%s5 + $0x4] sm:$0xf]
  %v125 = vld [vmem:[%s5 + $0x8] sm:$0xf]
  %v126 = vld [vmem:[%s5 + $0xc] sm:$0xf]
  %v135 = vunpack.c.l.b16 %v115
  %v136 = vunpack.c.l.b16 %v116
  %v137 = vunpack.c.l.b16 %v117
  %v138 = vunpack.c.l.b16 %v118
  %v139 = vunpack.c.l.b16 %v119
  %v140 = vunpack.c.l.b16 %v120
  %v141 = vunpack.c.l.b16 %v121
  %v142 = vunpack.c.l.b16 %v122
  %v143 = vpack.c.b16 %v136, %v135
  %v144 = vpack.c.b16 %v138, %v137
  %v145 = vpack.c.b16 %v140, %v139
  %v146 = vpack.c.b16 %v142, %v141
  %v151 = vunpack.c.l.b16 %v123
  %v152 = vunpack.c.l.b16 %v124
  %v153 = vunpack.c.l.b16 %v125
  %v154 = vunpack.c.l.b16 %v126
  %v155 = vpack.c.b16 %v152, %v151
  %v156 = vpack.c.b16 %v154, %v153
  %vm159 = vcmask 261120
  %v161 = vsel %vm159, %v143, 0
  %v164 = vsel %vm159, %v144, 0
  %v167 = vsel %vm159, %v145, 0
  %v170 = vsel %vm159, %v146, 0
  %172 = vmatprep.subr.bf16.mxu0 0
  %173 = vmatpush1.bf16.msra.mxu0 %v155
  %174 = vmatprep.subr.bf16.mxu0 0
  %175 = vmatpush1.bf16.msra.mxu0 %v156
  %176 = vmatprep.subr.bf16.mxu0 0
  %177 = vmatpush1.bf16.msra.mxu0 0
  %178 = vmatprep.subr.bf16.mxu0 0
  %179 = vmatpush1.bf16.msra.mxu0 0
  %180 = vmatprep.subr.bf16.mxu0 0
  %181 = vmatpush1.bf16.msra.mxu0 0
  %182 = vmatprep.subr.bf16.mxu0 0
  %183 = vmatpush1.bf16.msra.mxu0 0
  %184 = vmatprep.subr.bf16.mxu0 0
  %185 = vmatpush1.bf16.msra.mxu0 0
  %186 = vmatprep.subr.bf16.mxu0 0
  %187 = vmatpush1.bf16.msra.mxu0 0
  %188 = vmatprep.subr.bf16.mxu0 0
  %189 = vmatpush1.bf16.msra.mxu0 0
  %190 = vmatprep.subr.bf16.mxu0 0
  %191 = vmatpush1.bf16.msra.mxu0 0
  %192 = vmatprep.subr.bf16.mxu0 0
  %193 = vmatpush1.bf16.msra.mxu0 0
  %194 = vmatprep.subr.bf16.mxu0 0
  %195 = vmatpush1.bf16.msra.mxu0 0
  %196 = vmatprep.subr.bf16.mxu0 0
  %197 = vmatpush1.bf16.msra.mxu0 0
  %198 = vmatprep.subr.bf16.mxu0 0
  %199 = vmatpush1.bf16.msra.mxu0 0
  %200 = vmatprep.subr.bf16.mxu0 0
  %201 = vmatpush1.bf16.msra.mxu0 0
  %202 = vmatprep.subr.bf16.mxu0 0
  %203 = vmatpush1.bf16.msra.mxu0 0
  %204 = vmatprep.mubr.bf16.mxu0 0
  %205 = vmatmul.mubr.bf16.gmra.mrb[0].mxu0 %v161
  %v206 = vpop.f32.mrb[0].mxu0
  %v207 = vadd.f32 0.0, %v206
  %v208 = vpop.f32.mrb[0].mxu0
  %v209 = vpop.f32.mrb[0].mxu0
  %v210 = vadd.f32 0.0, %v209
  %v211 = vpop.f32.mrb[0].mxu0
  %212 = vmatprep.mubr.bf16.mxu0 0
  %213 = vmatmul.mubr.bf16.gmra.mrb[0].mxu0 %v164
  %v214 = vpop.f32.mrb[0].mxu0
  %v215 = vadd.f32 0.0, %v214
  %v216 = vpop.f32.mrb[0].mxu0
  %v217 = vpop.f32.mrb[0].mxu0
  %v218 = vadd.f32 0.0, %v217
  %v219 = vpop.f32.mrb[0].mxu0
  %220 = vmatprep.mubr.bf16.mxu0 0
  %221 = vmatmul.mubr.bf16.gmra.mrb[0].mxu0 %v167
  %v222 = vpop.f32.mrb[0].mxu0
  %v223 = vadd.f32 0.0, %v222
  %v224 = vpop.f32.mrb[0].mxu0
  %v225 = vpop.f32.mrb[0].mxu0
  %v226 = vadd.f32 0.0, %v225
  %v227 = vpop.f32.mrb[0].mxu0
  %228 = vmatprep.mubr.bf16.mxu0 0
  %229 = vmatmul.mubr.bf16.gmra.mrb[0].mxu0 %v170
  %v230 = vpop.f32.mrb[0].mxu0
  %v231 = vadd.f32 0.0, %v230
  %v232 = vpop.f32.mrb[0].mxu0
  %v233 = vpop.f32.mrb[0].mxu0
  %v234 = vadd.f32 0.0, %v233
  %v235 = vpop.f32.mrb[0].mxu0
  %236 = vdwg.mxu0
  %v245 = vunpack.c.l.b16 %v103
  %v246 = vunpack.c.l.b16 %v104
  %v247 = vunpack.c.l.b16 %v105
  %v248 = vunpack.c.l.b16 %v106
  %v249 = vunpack.c.l.b16 %v107
  %v250 = vunpack.c.l.b16 %v108
  %v251 = vunpack.c.l.b16 %v109
  %v252 = vunpack.c.l.b16 %v110
  %v253 = vpack.c.b16 %v246, %v245
  %v254 = vpack.c.b16 %v248, %v247
  %v255 = vpack.c.b16 %v250, %v249
  %v256 = vpack.c.b16 %v252, %v251
  %v261 = vunpack.c.l.b16 %v111
  %v262 = vunpack.c.l.b16 %v112
  %v263 = vunpack.c.l.b16 %v113
  %v264 = vunpack.c.l.b16 %v114
  %v265 = vpack.c.b16 %v262, %v261
  %v266 = vpack.c.b16 %v264, %v263
  %v270 = vsel %vm159, %v253, 0
  %v273 = vsel %vm159, %v254, 0
  %v276 = vsel %vm159, %v255, 0
  %v279 = vsel %vm159, %v256, 0
  %281 = vmatprep.subr.bf16.mxu0 0
  %282 = vmatpush1.bf16.msra.mxu0 %v265
  %283 = vmatprep.subr.bf16.mxu0 0
  %284 = vmatpush1.bf16.msra.mxu0 %v266
  %285 = vmatprep.subr.bf16.mxu0 0
  %286 = vmatpush1.bf16.msra.mxu0 0
  %287 = vmatprep.subr.bf16.mxu0 0
  %288 = vmatpush1.bf16.msra.mxu0 0
  %289 = vmatprep.subr.bf16.mxu0 0
  %290 = vmatpush1.bf16.msra.mxu0 0
  %291 = vmatprep.subr.bf16.mxu0 0
  %292 = vmatpush1.bf16.msra.mxu0 0
  %293 = vmatprep.subr.bf16.mxu0 0
  %294 = vmatpush1.bf16.msra.mxu0 0
  %295 = vmatprep.subr.bf16.mxu0 0
  %296 = vmatpush1.bf16.msra.mxu0 0
  %297 = vmatprep.subr.bf16.mxu0 0
  %298 = vmatpush1.bf16.msra.mxu0 0
  %299 = vmatprep.subr.bf16.mxu0 0
  %300 = vmatpush1.bf16.msra.mxu0 0
  %301 = vmatprep.subr.bf16.mxu0 0
  %302 = vmatpush1.bf16.msra.mxu0 0
  %303 = vmatprep.subr.bf16.mxu0 0
  %304 = vmatpush1.bf16.msra.mxu0 0
  %305 = vmatprep.subr.bf16.mxu0 0
  %306 = vmatpush1.bf16.msra.mxu0 0
  %307 = vmatprep.subr.bf16.mxu0 0
  %308 = vmatpush1.bf16.msra.mxu0 0
  %309 = vmatprep.subr.bf16.mxu0 0
  %310 = vmatpush1.bf16.msra.mxu0 0
  %311 = vmatprep.subr.bf16.mxu0 0
  %312 = vmatpush1.bf16.msra.mxu0 0
  %313 = vmatprep.mubr.bf16.mxu0 0
  %314 = vmatmul.mubr.bf16.gmra.mrb[0].mxu0 %v270
  %v315 = vpop.f32.mrb[0].mxu0
  %v316 = vadd.f32 %v207, %v315
  %v317 = vpop.f32.mrb[0].mxu0
  %v318 = vpop.f32.mrb[0].mxu0
  %v319 = vadd.f32 %v210, %v318
  %v320 = vpop.f32.mrb[0].mxu0
  %321 = vmatprep.mubr.bf16.mxu0 0
  %322 = vmatmul.mubr.bf16.gmra.mrb[0].mxu0 %v273
  %v323 = vpop.f32.mrb[0].mxu0
  %v324 = vadd.f32 %v215, %v323
  %v325 = vpop.f32.mrb[0].mxu0
  %v326 = vpop.f32.mrb[0].mxu0
  %v327 = vadd.f32 %v218, %v326
  %v328 = vpop.f32.mrb[0].mxu0
  %329 = vmatprep.mubr.bf16.mxu0 0
  %330 = vmatmul.mubr.bf16.gmra.mrb[0].mxu0 %v276
  %v331 = vpop.f32.mrb[0].mxu0
  %v332 = vadd.f32 %v223, %v331
  %v333 = vpop.f32.mrb[0].mxu0
  %v334 = vpop.f32.mrb[0].mxu0
  %v335 = vadd.f32 %v226, %v334
  %v336 = vpop.f32.mrb[0].mxu0
  %337 = vmatprep.mubr.bf16.mxu0 0
  %338 = vmatmul.mubr.bf16.gmra.mrb[0].mxu0 %v279
  %v339 = vpop.f32.mrb[0].mxu0
  %v340 = vadd.f32 %v231, %v339
  %v341 = vpop.f32.mrb[0].mxu0
  %v342 = vpop.f32.mrb[0].mxu0
  %v343 = vadd.f32 %v234, %v342
  %v344 = vpop.f32.mrb[0].mxu0
  %345 = vdwg.mxu0
  %v346 = vld [vmem:[%s8] sm:$0x1]
  %v348 = vlaneseq
  %v349 = vshrl.u32 %v348, 7
  %v350 = vsub.s32 0, %v349
  %v351 = vrot.slane %v346, %v350
  %v353 = vadd.f32 %v316, %v351
  %v354 = vadd.f32 %v319, %v351
  %v355 = vadd.f32 %v324, %v351
  %v356 = vadd.f32 %v327, %v351
  %v357 = vadd.f32 %v332, %v351
  %v358 = vadd.f32 %v335, %v351
  %v359 = vadd.f32 %v340, %v351
  %v360 = vadd.f32 %v343, %v351
  %361 = vst [vmem:[#allocation2] sm:$0xff] %v353
  %362 = vst [vmem:[#allocation2 + $0x8] sm:$0xff] %v354
  %363 = vst [vmem:[#allocation2 + $0x10] sm:$0xff] %v355
  %364 = vst [vmem:[#allocation2 + $0x18] sm:$0xff] %v356
  %365 = vst [vmem:[#allocation2 + $0x20] sm:$0xff] %v357
  %366 = vst [vmem:[#allocation2 + $0x28] sm:$0xff] %v358
  %367 = vst [vmem:[#allocation2 + $0x30] sm:$0xff] %v359
  %368 = vst [vmem:[#allocation2 + $0x38] sm:$0xff] %v360
  %v369 = vld [vmem:[%s80] sm:$0xf]
  %v370 = vld [vmem:[%s80 + $0x4] sm:$0xf]
  %v371 = vld [vmem:[%s80 + $0x8] sm:$0xf]
  %v372 = vld [vmem:[%s80 + $0xc] sm:$0xf]
  %v373 = vld [vmem:[%s80 + $0x10] sm:$0xf]
  %v374 = vld [vmem:[%s80 + $0x14] sm:$0xf]
  %v375 = vld [vmem:[%s80 + $0x18] sm:$0xf]
  %v376 = vld [vmem:[%s80 + $0x1c] sm:$0xf]
  %v377 = vld [vmem:[%s6] sm:$0xf]
  %v378 = vld [vmem:[%s6 + $0x4] sm:$0xf]
  %v379 = vld [vmem:[%s6 + $0x8] sm:$0xf]
  %v380 = vld [vmem:[%s6 + $0xc] sm:$0xf]
  %v381 = vld [vmem:[%s88] sm:$0xf]
  %v382 = vld [vmem:[%s88 + $0x4] sm:$0xf]
  %v383 = vld [vmem:[%s88 + $0x8] sm:$0xf]
  %v384 = vld [vmem:[%s88 + $0xc] sm:$0xf]
  %v385 = vld [vmem:[%s88 + $0x10] sm:$0xf]
  %v386 = vld [vmem:[%s88 + $0x14] sm:$0xf]
  %v387 = vld [vmem:[%s88 + $0x18] sm:$0xf]
  %v388 = vld [vmem:[%s88 + $0x1c] sm:$0xf]
  %v389 = vld [vmem:[%s7] sm:$0xf]
  %v390 = vld [vmem:[%s7 + $0x4] sm:$0xf]
  %v391 = vld [vmem:[%s7 + $0x8] sm:$0xf]
  %v392 = vld [vmem:[%s7 + $0xc] sm:$0xf]
  %v401 = vunpack.c.l.b16 %v381
  %v402 = vunpack.c.l.b16 %v382
  %v403 = vunpack.c.l.b16 %v383
  %v404 = vunpack.c.l.b16 %v384
  %v405 = vunpack.c.l.b16 %v385
  %v406 = vunpack.c.l.b16 %v386
  %v407 = vunpack.c.l.b16 %v387
  %v408 = vunpack.c.l.b16 %v388
  %v409 = vpack.c.b16 %v402, %v401
  %v410 = vpack.c.b16 %v404, %v403
  %v411 = vpack.c.b16 %v406, %v405
  %v412 = vpack.c.b16 %v408, %v407
  %v417 = vunpack.c.l.b16 %v389
  %v418 = vunpack.c.l.b16 %v390
  %v419 = vunpack.c.l.b16 %v391
  %v420 = vunpack.c.l.b16 %v392
  %v421 = vpack.c.b16 %v418, %v417
  %v422 = vpack.c.b16 %v420, %v419
  %v426 = vsel %vm159, %v409, 0
  %v429 = vsel %vm159, %v410, 0
  %v432 = vsel %vm159, %v411, 0
  %v435 = vsel %vm159, %v412, 0
  %437 = vmatprep.subr.bf16.mxu0 0
  %438 = vmatpush1.bf16.msra.mxu0 %v421
  %439 = vmatprep.subr.bf16.mxu0 0
  %440 = vmatpush1.bf16.msra.mxu0 %v422
  %441 = vmatprep.subr.bf16.mxu0 0
  %442 = vmatpush1.bf16.msra.mxu0 0
  %443 = vmatprep.subr.bf16.mxu0 0
  %444 = vmatpush1.bf16.msra.mxu0 0
  %445 = vmatprep.subr.bf16.mxu0 0
  %446 = vmatpush1.bf16.msra.mxu0 0
  %447 = vmatprep.subr.bf16.mxu0 0
  %448 = vmatpush1.bf16.msra.mxu0 0
  %449 = vmatprep.subr.bf16.mxu0 0
  %450 = vmatpush1.bf16.msra.mxu0 0
  %451 = vmatprep.subr.bf16.mxu0 0
  %452 = vmatpush1.bf16.msra.mxu0 0
  %453 = vmatprep.subr.bf16.mxu0 0
  %454 = vmatpush1.bf16.msra.mxu0 0
  %455 = vmatprep.subr.bf16.mxu0 0
  %456 = vmatpush1.bf16.msra.mxu0 0
  %457 = vmatprep.subr.bf16.mxu0 0
  %458 = vmatpush1.bf16.msra.mxu0 0
  %459 = vmatprep.subr.bf16.mxu0 0
  %460 = vmatpush1.bf16.msra.mxu0 0
  %461 = vmatprep.subr.bf16.mxu0 0
  %462 = vmatpush1.bf16.msra.mxu0 0
  %463 = vmatprep.subr.bf16.mxu0 0
  %464 = vmatpush1.bf16.msra.mxu0 0
  %465 = vmatprep.subr.bf16.mxu0 0
  %466 = vmatpush1.bf16.msra.mxu0 0
  %467 = vmatprep.subr.bf16.mxu0 0
  %468 = vmatpush1.bf16.msra.mxu0 0
  %469 = vmatprep.mubr.bf16.mxu0 0
  %470 = vmatmul.mubr.bf16.gmra.mrb[0].mxu0 %v426
  %v471 = vpop.f32.mrb[0].mxu0
  %v472 = vadd.f32 0.0, %v471
  %v473 = vpop.f32.mrb[0].mxu0
  %v474 = vpop.f32.mrb[0].mxu0
  %v475 = vadd.f32 0.0, %v474
  %v476 = vpop.f32.mrb[0].mxu0
  %477 = vmatprep.mubr.bf16.mxu0 0
  %478 = vmatmul.mubr.bf16.gmra.mrb[0].mxu0 %v429
  %v479 = vpop.f32.mrb[0].mxu0
  %v480 = vadd.f32 0.0, %v479
  %v481 = vpop.f32.mrb[0].mxu0
  %v482 = vpop.f32.mrb[0].mxu0
  %v483 = vadd.f32 0.0, %v482
  %v484 = vpop.f32.mrb[0].mxu0
  %485 = vmatprep.mubr.bf16.mxu0 0
  %486 = vmatmul.mubr.bf16.gmra.mrb[0].mxu0 %v432
  %v487 = vpop.f32.mrb[0].mxu0
  %v488 = vadd.f32 0.0, %v487
  %v489 = vpop.f32.mrb[0].mxu0
  %v490 = vpop.f32.mrb[0].mxu0
  %v491 = vadd.f32 0.0, %v490
  %v492 = vpop.f32.mrb[0].mxu0
  %493 = vmatprep.mubr.bf16.mxu0 0
  %494 = vmatmul.mubr.bf16.gmra.mrb[0].mxu0 %v435
  %v495 = vpop.f32.mrb[0].mxu0
  %v496 = vadd.f32 0.0, %v495
  %v497 = vpop.f32.mrb[0].mxu0
  %v498 = vpop.f32.mrb[0].mxu0
  %v499 = vadd.f32 0.0, %v498
  %v500 = vpop.f32.mrb[0].mxu0
  %501 = vdwg.mxu0
  %v510 = vunpack.c.l.b16 %v369
  %v511 = vunpack.c.l.b16 %v370
  %v512 = vunpack.c.l.b16 %v371
  %v513 = vunpack.c.l.b16 %v372
  %v514 = vunpack.c.l.b16 %v373
  %v515 = vunpack.c.l.b16 %v374
  %v516 = vunpack.c.l.b16 %v375
  %v517 = vunpack.c.l.b16 %v376
  %v518 = vpack.c.b16 %v511, %v510
  %v519 = vpack.c.b16 %v513, %v512
  %v520 = vpack.c.b16 %v515, %v514
  %v521 = vpack.c.b16 %v517, %v516
  %v526 = vunpack.c.l.b16 %v377
  %v527 = vunpack.c.l.b16 %v378
  %v528 = vunpack.c.l.b16 %v379
  %v529 = vunpack.c.l.b16 %v380
  %v530 = vpack.c.b16 %v527, %v526
  %v531 = vpack.c.b16 %v529, %v528
  %v535 = vsel %vm159, %v518, 0
  %v538 = vsel %vm159, %v519, 0
  %v541 = vsel %vm159, %v520, 0
  %v544 = vsel %vm159, %v521, 0
  %546 = vmatprep.subr.bf16.mxu0 0
  %547 = vmatpush1.bf16.msra.mxu0 %v530
  %548 = vmatprep.subr.bf16.mxu0 0
  %549 = vmatpush1.bf16.msra.mxu0 %v531
  %550 = vmatprep.subr.bf16.mxu0 0
  %551 = vmatpush1.bf16.msra.mxu0 0
  %552 = vmatprep.subr.bf16.mxu0 0
  %553 = vmatpush1.bf16.msra.mxu0 0
  %554 = vmatprep.subr.bf16.mxu0 0
  %555 = vmatpush1.bf16.msra.mxu0 0
  %556 = vmatprep.subr.bf16.mxu0 0
  %557 = vmatpush1.bf16.msra.mxu0 0
  %558 = vmatprep.subr.bf16.mxu0 0
  %559 = vmatpush1.bf16.msra.mxu0 0
  %560 = vmatprep.subr.bf16.mxu0 0
  %561 = vmatpush1.bf16.msra.mxu0 0
  %562 = vmatprep.subr.bf16.mxu0 0
  %563 = vmatpush1.bf16.msra.mxu0 0
  %564 = vmatprep.subr.bf16.mxu0 0
  %565 = vmatpush1.bf16.msra.mxu0 0
  %566 = vmatprep.subr.bf16.mxu0 0
  %567 = vmatpush1.bf16.msra.mxu0 0
  %568 = vmatprep.subr.bf16.mxu0 0
  %569 = vmatpush1.bf16.msra.mxu0 0
  %570 = vmatprep.subr.bf16.mxu0 0
  %571 = vmatpush1.bf16.msra.mxu0 0
  %572 = vmatprep.subr.bf16.mxu0 0
  %573 = vmatpush1.bf16.msra.mxu0 0
  %574 = vmatprep.subr.bf16.mxu0 0
  %575 = vmatpush1.bf16.msra.mxu0 0
  %576 = vmatprep.subr.bf16.mxu0 0
  %577 = vmatpush1.bf16.msra.mxu0 0
  %578 = vmatprep.mubr.bf16.mxu0 0
  %579 = vmatmul.mubr.bf16.gmra.mrb[0].mxu0 %v535
  %v580 = vpop.f32.mrb[0].mxu0
  %v581 = vadd.f32 %v472, %v580
  %v582 = vpop.f32.mrb[0].mxu0
  %v583 = vpop.f32.mrb[0].mxu0
  %v584 = vadd.f32 %v475, %v583
  %v585 = vpop.f32.mrb[0].mxu0
  %586 = vmatprep.mubr.bf16.mxu0 0
  %587 = vmatmul.mubr.bf16.gmra.mrb[0].mxu0 %v538
  %v588 = vpop.f32.mrb[0].mxu0
  %v589 = vadd.f32 %v480, %v588
  %v590 = vpop.f32.mrb[0].mxu0
  %v591 = vpop.f32.mrb[0].mxu0
  %v592 = vadd.f32 %v483, %v591
  %v593 = vpop.f32.mrb[0].mxu0
  %594 = vmatprep.mubr.bf16.mxu0 0
  %595 = vmatmul.mubr.bf16.gmra.mrb[0].mxu0 %v541
  %v596 = vpop.f32.mrb[0].mxu0
  %v597 = vadd.f32 %v488, %v596
  %v598 = vpop.f32.mrb[0].mxu0
  %v599 = vpop.f32.mrb[0].mxu0
  %v600 = vadd.f32 %v491, %v599
  %v601 = vpop.f32.mrb[0].mxu0
  %602 = vmatprep.mubr.bf16.mxu0 0
  %603 = vmatmul.mubr.bf16.gmra.mrb[0].mxu0 %v544
  %v604 = vpop.f32.mrb[0].mxu0
  %v605 = vadd.f32 %v496, %v604
  %v606 = vpop.f32.mrb[0].mxu0
  %v607 = vpop.f32.mrb[0].mxu0
  %v608 = vadd.f32 %v499, %v607
  %v609 = vpop.f32.mrb[0].mxu0
  %610 = vdwg.mxu0
  %v611 = vld [vmem:[%s9] sm:$0x1]
  %v613 = vlaneseq
  %v614 = vshrl.u32 %v613, 7
  %v615 = vsub.s32 0, %v614
  %v616 = vrot.slane %v611, %v615
  %v618 = vadd.f32 %v581, %v616
  %v619 = vadd.f32 %v584, %v616
  %v620 = vadd.f32 %v589, %v616
  %v621 = vadd.f32 %v592, %v616
  %v622 = vadd.f32 %v597, %v616
  %v623 = vadd.f32 %v600, %v616
  %v624 = vadd.f32 %v605, %v616
  %v625 = vadd.f32 %v608, %v616
  %626 = vst [vmem:[#allocation3] sm:$0xff] %v618
  %627 = vst [vmem:[#allocation3 + $0x8] sm:$0xff] %v619
  %628 = vst [vmem:[#allocation3 + $0x10] sm:$0xff] %v620
  %629 = vst [vmem:[#allocation3 + $0x18] sm:$0xff] %v621
  %630 = vst [vmem:[#allocation3 + $0x20] sm:$0xff] %v622
  %631 = vst [vmem:[#allocation3 + $0x28] sm:$0xff] %v623
  %632 = vst [vmem:[#allocation3 + $0x30] sm:$0xff] %v624
  %633 = vst [vmem:[#allocation3 + $0x38] sm:$0xff] %v625
  %v634 = vld [vmem:[%s10] sm:$0xf]
  %v635 = vld [vmem:[%s10 + $0x4] sm:$0xf]
  %v636 = vld [vmem:[%s10 + $0x8] sm:$0xf]
  %v637 = vld [vmem:[%s10 + $0xc] sm:$0xf]
  %v638 = vld [vmem:[%s11] sm:$0xf]
  %v639 = vld [vmem:[%s11 + $0x4] sm:$0xf]
  %v640 = vld [vmem:[%s11 + $0x8] sm:$0xf]
  %v641 = vld [vmem:[%s11 + $0xc] sm:$0xf]
  %v642 = vld [vmem:[#allocation4] sm:$0xff]
  %v643 = vld [vmem:[#allocation5] sm:$0xff]
  %v644 = vld [vmem:[#allocation6] sm:$0xff]
  %v645 = vld [vmem:[#allocation7] sm:$0xff]
  %v646 = vld [vmem:[#allocation8] sm:$0xff]
  %v647 = vld [vmem:[#allocation9] sm:$0xff]
  %v648 = vld [vmem:[#allocation2] sm:$0xff]
  %v649 = vpack.c.bf16 %v642, %v642
  %v654 = vunpack.c.l.b16 %v634
  %v655 = vunpack.c.l.b16 %v635
  %v656 = vunpack.c.l.b16 %v636
  %v657 = vunpack.c.l.b16 %v637
  %v658 = vpack.c.b16 %v655, %v654
  %v659 = vpack.c.b16 %v657, %v656
  %v663 = vsel %vm159, %v649, 0
  %665 = vmatprep.subr.bf16.mxu0 0
  %666 = vmatpush1.bf16.msra.mxu0 %v658
  %667 = vmatprep.subr.bf16.mxu0 0
  %668 = vmatpush1.bf16.msra.mxu0 %v659
  %669 = vmatprep.subr.bf16.mxu0 0
  %670 = vmatpush1.bf16.msra.mxu0 0
  %671 = vmatprep.subr.bf16.mxu0 0
  %672 = vmatpush1.bf16.msra.mxu0 0
  %673 = vmatprep.subr.bf16.mxu0 0
  %674 = vmatpush1.bf16.msra.mxu0 0
  %675 = vmatprep.subr.bf16.mxu0 0
  %676 = vmatpush1.bf16.msra.mxu0 0
  %677 = vmatprep.subr.bf16.mxu0 0
  %678 = vmatpush1.bf16.msra.mxu0 0
  %679 = vmatprep.subr.bf16.mxu0 0
  %680 = vmatpush1.bf16.msra.mxu0 0
  %681 = vmatprep.subr.bf16.mxu0 0
  %682 = vmatpush1.bf16.msra.mxu0 0
  %683 = vmatprep.subr.bf16.mxu0 0
  %684 = vmatpush1.bf16.msra.mxu0 0
  %685 = vmatprep.subr.bf16.mxu0 0
  %686 = vmatpush1.bf16.msra.mxu0 0
  %687 = vmatprep.subr.bf16.mxu0 0
  %688 = vmatpush1.bf16.msra.mxu0 0
  %689 = vmatprep.subr.bf16.mxu0 0
  %690 = vmatpush1.bf16.msra.mxu0 0
  %691 = vmatprep.subr.bf16.mxu0 0
  %692 = vmatpush1.bf16.msra.mxu0 0
  %693 = vmatprep.subr.bf16.mxu0 0
  %694 = vmatpush1.bf16.msra.mxu0 0
  %695 = vmatprep.subr.bf16.mxu0 0
  %696 = vmatpush1.bf16.msra.mxu0 0
  %697 = vmatprep.mubr.bf16.mxu0 0
  %698 = vmatmul.mubr.bf16.gmra.mrb[0].mxu0 %v663
  %v699 = vpop.f32.mrb[0].mxu0
  %v700 = vadd.f32 0.0, %v699
  %v701 = vpop.f32.mrb[0].mxu0
  %v702 = vpop.f32.mrb[0].mxu0
  %v703 = vpop.f32.mrb[0].mxu0
  %704 = vdwg.mxu0
  %v705 = vadd.f32 %v648, %v700
  %v706 = vxor.u32 %v705, 2147483648
  %v707 = vmul.f32 %v706, 1.442695
  %v708 = vpow.pop %v707
  %v709 = vadd.f32 %v708, 1.0
  %v710 = vrcp.pop %v709
  %v711 = vmul.f32 1.0, %v710
  %v712 = vtanh.pop %v705
  %714 = vrot.lane.b32.xlu0 %v643, 32
  %v715 = vpop.permute.xlu0 %714
  %v717 = vmul.f32 %v711, %v715
  %719 = vrot.lane.b32.xlu0 %v712, 64
  %v720 = vpop.permute.xlu0 %719
  %v722 = vmul.f32 %v711, %v720
  %724 = vrot.lane.b32.xlu0 %v722, 32
  %v725 = vpop.permute.xlu0 %724
  %v727 = vadd.f32 %v717, %v725
  %v728 = vtanh.pop %v727
  %730 = vrot.lane.b32.xlu0 %v728, 64
  %v731 = vpop.permute.xlu0 %730
  %v733 = vmul.f32 %v711, %v731
  %s734 = scalar_lea.vmem [#allocation3], 56
  %v735 = vld [vmem:[%s734] sm:$0xff]
  %v736 = vpack.c.bf16 %v644, %v644
  %v741 = vunpack.c.l.b16 %v638
  %v742 = vunpack.c.l.b16 %v639
  %v743 = vunpack.c.l.b16 %v640
  %v744 = vunpack.c.l.b16 %v641
  %v745 = vpack.c.b16 %v742, %v741
  %v746 = vpack.c.b16 %v744, %v743
  %v750 = vsel %vm159, %v736, 0
  %752 = vmatprep.subr.bf16.mxu0 0
  %753 = vmatpush1.bf16.msra.mxu0 %v745
  %754 = vmatprep.subr.bf16.mxu0 0
  %755 = vmatpush1.bf16.msra.mxu0 %v746
  %756 = vmatprep.subr.bf16.mxu0 0
  %757 = vmatpush1.bf16.msra.mxu0 0
  %758 = vmatprep.subr.bf16.mxu0 0
  %759 = vmatpush1.bf16.msra.mxu0 0
  %760 = vmatprep.subr.bf16.mxu0 0
  %761 = vmatpush1.bf16.msra.mxu0 0
  %762 = vmatprep.subr.bf16.mxu0 0
  %763 = vmatpush1.bf16.msra.mxu0 0
  %764 = vmatprep.subr.bf16.mxu0 0
  %765 = vmatpush1.bf16.msra.mxu0 0
  %766 = vmatprep.subr.bf16.mxu0 0
  %767 = vmatpush1.bf16.msra.mxu0 0
  %768 = vmatprep.subr.bf16.mxu0 0
  %769 = vmatpush1.bf16.msra.mxu0 0
  %770 = vmatprep.subr.bf16.mxu0 0
  %771 = vmatpush1.bf16.msra.mxu0 0
  %772 = vmatprep.subr.bf16.mxu0 0
  %773 = vmatpush1.bf16.msra.mxu0 0
  %774 = vmatprep.subr.bf16.mxu0 0
  %775 = vmatpush1.bf16.msra.mxu0 0
  %776 = vmatprep.subr.bf16.mxu0 0
  %777 = vmatpush1.bf16.msra.mxu0 0
  %778 = vmatprep.subr.bf16.mxu0 0
  %779 = vmatpush1.bf16.msra.mxu0 0
  %780 = vmatprep.subr.bf16.mxu0 0
  %781 = vmatpush1.bf16.msra.mxu0 0
  %782 = vmatprep.subr.bf16.mxu0 0
  %783 = vmatpush1.bf16.msra.mxu0 0
  %784 = vmatprep.mubr.bf16.mxu0 0
  %785 = vmatmul.mubr.bf16.gmra.mrb[0].mxu0 %v750
  %v786 = vpop.f32.mrb[0].mxu0
  %v787 = vadd.f32 0.0, %v786
  %v788 = vpop.f32.mrb[0].mxu0
  %v789 = vpop.f32.mrb[0].mxu0
  %v790 = vpop.f32.mrb[0].mxu0
  %791 = vdwg.mxu0
  %v792 = vadd.f32 %v735, %v787
  %v793 = vxor.u32 %v792, 2147483648
  %v794 = vmul.f32 %v793, 1.442695
  %v795 = vpow.pop %v794
  %v796 = vadd.f32 %v795, 1.0
  %v797 = vrcp.pop %v796
  %v798 = vmul.f32 1.0, %v797
  %v799 = vtanh.pop %v792
  %801 = vrot.lane.b32.xlu0 %v645, 32
  %v802 = vpop.permute.xlu0 %801
  %v804 = vmul.f32 %v798, %v802
  %806 = vrot.lane.b32.xlu0 %v799, 64
  %v807 = vpop.permute.xlu0 %806
  %v809 = vmul.f32 %v798, %v807
  %811 = vrot.lane.b32.xlu0 %v809, 32
  %v812 = vpop.permute.xlu0 %811
  %v814 = vadd.f32 %v804, %v812
  %v815 = vtanh.pop %v814
  %817 = vrot.lane.b32.xlu0 %v815, 64
  %v818 = vpop.permute.xlu0 %817
  %v820 = vmul.f32 %v798, %v818
  %822 = vrot.lane.b32.xlu0 %v733, 32
  %v823 = vpop.permute.xlu0 %822
  %v825 = vadd.f32 %v646, %v823
  %827 = vrot.lane.b32.xlu0 %v820, 32
  %v828 = vpop.permute.xlu0 %827
  %v830 = vadd.f32 %v647, %v828
  %s831 = scalar_lea.vmem [#allocation2], 8
  %v832 = vld [vmem:[%s831] sm:$0xff]
  %v833 = vpack.c.bf16 %v733, %v733
  %835 = vrot.lane.b32.xlu0 %v833, 32
  %v836 = vpop.permute.xlu0 %835
  %v838 = vsel %vm159, %v836, 0
  %840 = vmatprep.subr.bf16.mxu0 0
  %841 = vmatpush1.bf16.msra.mxu0 %v658
  %842 = vmatprep.subr.bf16.mxu0 0
  %843 = vmatpush1.bf16.msra.mxu0 %v659
  %844 = vmatprep.subr.bf16.mxu0 0
  %845 = vmatpush1.bf16.msra.mxu0 0
  %846 = vmatprep.subr.bf16.mxu0 0
  %847 = vmatpush1.bf16.msra.mxu0 0
  %848 = vmatprep.subr.bf16.mxu0 0
  %849 = vmatpush1.bf16.msra.mxu0 0
  %850 = vmatprep.subr.bf16.mxu0 0
  %851 = vmatpush1.bf16.msra.mxu0 0
  %852 = vmatprep.subr.bf16.mxu0 0
  %853 = vmatpush1.bf16.msra.mxu0 0
  %854 = vmatprep.subr.bf16.mxu0 0
  %855 = vmatpush1.bf16.msra.mxu0 0
  %856 = vmatprep.subr.bf16.mxu0 0
  %857 = vmatpush1.bf16.msra.mxu0 0
  %858 = vmatprep.subr.bf16.mxu0 0
  %859 = vmatpush1.bf16.msra.mxu0 0
  %860 = vmatprep.subr.bf16.mxu0 0
  %861 = vmatpush1.bf16.msra.mxu0 0
  %862 = vmatprep.subr.bf16.mxu0 0
  %863 = vmatpush1.bf16.msra.mxu0 0
  %864 = vmatprep.subr.bf16.mxu0 0
  %865 = vmatpush1.bf16.msra.mxu0 0
  %866 = vmatprep.subr.bf16.mxu0 0
  %867 = vmatpush1.bf16.msra.mxu0 0
  %868 = vmatprep.subr.bf16.mxu0 0
  %869 = vmatpush1.bf16.msra.mxu0 0
  %870 = vmatprep.subr.bf16.mxu0 0
  %871 = vmatpush1.bf16.msra.mxu0 0
  %872 = vmatprep.mubr.bf16.mxu0 0
  %873 = vmatmul.mubr.bf16.gmra.mrb[0].mxu0 %v838
  %v874 = vpop.f32.mrb[0].mxu0
  %v875 = vadd.f32 0.0, %v874
  %v876 = vpop.f32.mrb[0].mxu0
  %v877 = vpop.f32.mrb[0].mxu0
  %v878 = vpop.f32.mrb[0].mxu0
  %879 = vdwg.mxu0
  %v880 = vadd.f32 %v832, %v875
  %v881 = vxor.u32 %v880, 2147483648
  %v882 = vmul.f32 %v881, 1.442695
  %v883 = vpow.pop %v882
  %v884 = vadd.f32 %v883, 1.0
  %v885 = vrcp.pop %v884
  %v886 = vmul.f32 1.0, %v885
  %v887 = vtanh.pop %v880
  %v888 = vmul.f32 %v886, %v727
  %890 = vrot.lane.b32.xlu0 %v887, 64
  %v891 = vpop.permute.xlu0 %890
  %v893 = vmul.f32 %v886, %v891
  %895 = vrot.lane.b32.xlu0 %v893, 32
  %v896 = vpop.permute.xlu0 %895
  %v898 = vadd.f32 %v888, %v896
  %v899 = vtanh.pop %v898
  %901 = vrot.lane.b32.xlu0 %v899, 64
  %v902 = vpop.permute.xlu0 %901
  %v904 = vmul.f32 %v886, %v902
  %s905 = scalar_lea.vmem [#allocation3], 48
  %v906 = vld [vmem:[%s905] sm:$0xff]
  %v907 = vpack.c.bf16 %v820, %v820
  %909 = vrot.lane.b32.xlu0 %v907, 32
  %v910 = vpop.permute.xlu0 %909
  %v912 = vsel %vm159, %v910, 0
  %914 = vmatprep.subr.bf16.mxu0 0
  %915 = vmatpush1.bf16.msra.mxu0 %v745
  %916 = vmatprep.subr.bf16.mxu0 0
  %917 = vmatpush1.bf16.msra.mxu0 %v746
  %918 = vmatprep.subr.bf16.mxu0 0
  %919 = vmatpush1.bf16.msra.mxu0 0
  %920 = vmatprep.subr.bf16.mxu0 0
  %921 = vmatpush1.bf16.msra.mxu0 0
  %922 = vmatprep.subr.bf16.mxu0 0
  %923 = vmatpush1.bf16.msra.mxu0 0
  %924 = vmatprep.subr.bf16.mxu0 0
  %925 = vmatpush1.bf16.msra.mxu0 0
  %926 = vmatprep.subr.bf16.mxu0 0
  %927 = vmatpush1.bf16.msra.mxu0 0
  %928 = vmatprep.subr.bf16.mxu0 0
  %929 = vmatpush1.bf16.msra.mxu0 0
  %930 = vmatprep.subr.bf16.mxu0 0
  %931 = vmatpush1.bf16.msra.mxu0 0
  %932 = vmatprep.subr.bf16.mxu0 0
  %933 = vmatpush1.bf16.msra.mxu0 0
  %934 = vmatprep.subr.bf16.mxu0 0
  %935 = vmatpush1.bf16.msra.mxu0 0
  %936 = vmatprep.subr.bf16.mxu0 0
  %937 = vmatpush1.bf16.msra.mxu0 0
  %938 = vmatprep.subr.bf16.mxu0 0
  %939 = vmatpush1.bf16.msra.mxu0 0
  %940 = vmatprep.subr.bf16.mxu0 0
  %941 = vmatpush1.bf16.msra.mxu0 0
  %942 = vmatprep.subr.bf16.mxu0 0
  %943 = vmatpush1.bf16.msra.mxu0 0
  %944 = vmatprep.subr.bf16.mxu0 0
  %945 = vmatpush1.bf16.msra.mxu0 0
  %946 = vmatprep.mubr.bf16.mxu0 0
  %947 = vmatmul.mubr.bf16.gmra.mrb[0].mxu0 %v912
  %v948 = vpop.f32.mrb[0].mxu0
  %v949 = vadd.f32 0.0, %v948
  %v950 = vpop.f32.mrb[0].mxu0
  %v951 = vpop.f32.mrb[0].mxu0
  %v952 = vpop.f32.mrb[0].mxu0
  %953 = vdwg.mxu0
  %v954 = vadd.f32 %v906, %v949
  %v955 = vxor.u32 %v954, 2147483648
  %v956 = vmul.f32 %v955, 1.442695
  %v957 = vpow.pop %v956
  %v958 = vadd.f32 %v957, 1.0
  %v959 = vrcp.pop %v958
  %v960 = vmul.f32 1.0, %v959
  %v961 = vtanh.pop %v954
  %v962 = vmul.f32 %v960, %v814
  %964 = vrot.lane.b32.xlu0 %v961, 64
  %v965 = vpop.permute.xlu0 %964
  %v967 = vmul.f32 %v960, %v965
  %969 = vrot.lane.b32.xlu0 %v967, 32
  %v970 = vpop.permute.xlu0 %969
  %v972 = vadd.f32 %v962, %v970
  %v973 = vtanh.pop %v972
  %975 = vrot.lane.b32.xlu0 %v973, 64
  %v976 = vpop.permute.xlu0 %975
  %v978 = vmul.f32 %v960, %v976
  %980 = vrot.lane.b32.xlu0 %v904, 32
  %v981 = vpop.permute.xlu0 %980
  %v983 = vadd.f32 %v825, %v981
  %985 = vrot.lane.b32.xlu0 %v978, 32
  %v986 = vpop.permute.xlu0 %985
  %v988 = vadd.f32 %v830, %v986
  %s989 = scalar_lea.vmem [#allocation2], 16
  %v990 = vld [vmem:[%s989] sm:$0xff]
  %v991 = vpack.c.bf16 %v904, %v904
  %993 = vrot.lane.b32.xlu0 %v991, 32
  %v994 = vpop.permute.xlu0 %993
  %v996 = vsel %vm159, %v994, 0
  %998 = vmatprep.subr.bf16.mxu0 0
  %999 = vmatpush1.bf16.msra.mxu0 %v658
  %1000 = vmatprep.subr.bf16.mxu0 0
  %1001 = vmatpush1.bf16.msra.mxu0 %v659
  %1002 = vmatprep.subr.bf16.mxu0 0
  %1003 = vmatpush1.bf16.msra.mxu0 0
  %1004 = vmatprep.subr.bf16.mxu0 0
  %1005 = vmatpush1.bf16.msra.mxu0 0
  %1006 = vmatprep.subr.bf16.mxu0 0
  %1007 = vmatpush1.bf16.msra.mxu0 0
  %1008 = vmatprep.subr.bf16.mxu0 0
  %1009 = vmatpush1.bf16.msra.mxu0 0
  %1010 = vmatprep.subr.bf16.mxu0 0
  %1011 = vmatpush1.bf16.msra.mxu0 0
  %1012 = vmatprep.subr.bf16.mxu0 0
  %1013 = vmatpush1.bf16.msra.mxu0 0
  %1014 = vmatprep.subr.bf16.mxu0 0
  %1015 = vmatpush1.bf16.msra.mxu0 0
  %1016 = vmatprep.subr.bf16.mxu0 0
  %1017 = vmatpush1.bf16.msra.mxu0 0
  %1018 = vmatprep.subr.bf16.mxu0 0
  %1019 = vmatpush1.bf16.msra.mxu0 0
  %1020 = vmatprep.subr.bf16.mxu0 0
  %1021 = vmatpush1.bf16.msra.mxu0 0
  %1022 = vmatprep.subr.bf16.mxu0 0
  %1023 = vmatpush1.bf16.msra.mxu0 0
  %1024 = vmatprep.subr.bf16.mxu0 0
  %1025 = vmatpush1.bf16.msra.mxu0 0
  %1026 = vmatprep.subr.bf16.mxu0 0
  %1027 = vmatpush1.bf16.msra.mxu0 0
  %1028 = vmatprep.subr.bf16.mxu0 0
  %1029 = vmatpush1.bf16.msra.mxu0 0
  %1030 = vmatprep.mubr.bf16.mxu0 0
  %1031 = vmatmul.mubr.bf16.gmra.mrb[0].mxu0 %v996
  %v1032 = vpop.f32.mrb[0].mxu0
  %v1033 = vadd.f32 0.0, %v1032
  %v1034 = vpop.f32.mrb[0].mxu0
  %v1035 = vpop.f32.mrb[0].mxu0
  %v1036 = vpop.f32.mrb[0].mxu0
  %1037 = vdwg.mxu0
  %v1038 = vadd.f32 %v990, %v1033
  %v1039 = vxor.u32 %v1038, 2147483648
  %v1040 = vmul.f32 %v1039, 1.442695
  %v1041 = vpow.pop %v1040
  %v1042 = vadd.f32 %v1041, 1.0
  %v1043 = vrcp.pop %v1042
  %v1044 = vmul.f32 1.0, %v1043
  %v1045 = vtanh.pop %v1038
  %v1046 = vmul.f32 %v1044, %v898
  %1048 = vrot.lane.b32.xlu0 %v1045, 64
  %v1049 = vpop.permute.xlu0 %1048
  %v1051 = vmul.f32 %v1044, %v1049
  %1053 = vrot.lane.b32.xlu0 %v1051, 32
  %v1054 = vpop.permute.xlu0 %1053
  %v1056 = vadd.f32 %v1046, %v1054
  %v1057 = vtanh.pop %v1056
  %1059 = vrot.lane.b32.xlu0 %v1057, 64
  %v1060 = vpop.permute.xlu0 %1059
  %v1062 = vmul.f32 %v1044, %v1060
  %s1063 = scalar_lea.vmem [#allocation3], 40
  %v1064 = vld [vmem:[%s1063] sm:$0xff]
  %v1065 = vpack.c.bf16 %v978, %v978
  %1067 = vrot.lane.b32.xlu0 %v1065, 32
  %v1068 = vpop.permute.xlu0 %1067
  %v1070 = vsel %vm159, %v1068, 0
  %1072 = vmatprep.subr.bf16.mxu0 0
  %1073 = vmatpush1.bf16.msra.mxu0 %v745
  %1074 = vmatprep.subr.bf16.mxu0 0
  %1075 = vmatpush1.bf16.msra.mxu0 %v746
  %1076 = vmatprep.subr.bf16.mxu0 0
  %1077 = vmatpush1.bf16.msra.mxu0 0
  %1078 = vmatprep.subr.bf16.mxu0 0
  %1079 = vmatpush1.bf16.msra.mxu0 0
  %1080 = vmatprep.subr.bf16.mxu0 0
  %1081 = vmatpush1.bf16.msra.mxu0 0
  %1082 = vmatprep.subr.bf16.mxu0 0
  %1083 = vmatpush1.bf16.msra.mxu0 0
  %1084 = vmatprep.subr.bf16.mxu0 0
  %1085 = vmatpush1.bf16.msra.mxu0 0
  %1086 = vmatprep.subr.bf16.mxu0 0
  %1087 = vmatpush1.bf16.msra.mxu0 0
  %1088 = vmatprep.subr.bf16.mxu0 0
  %1089 = vmatpush1.bf16.msra.mxu0 0
  %1090 = vmatprep.subr.bf16.mxu0 0
  %1091 = vmatpush1.bf16.msra.mxu0 0
  %1092 = vmatprep.subr.bf16.mxu0 0
  %1093 = vmatpush1.bf16.msra.mxu0 0
  %1094 = vmatprep.subr.bf16.mxu0 0
  %1095 = vmatpush1.bf16.msra.mxu0 0
  %1096 = vmatprep.subr.bf16.mxu0 0
  %1097 = vmatpush1.bf16.msra.mxu0 0
  %1098 = vmatprep.subr.bf16.mxu0 0
  %1099 = vmatpush1.bf16.msra.mxu0 0
  %1100 = vmatprep.subr.bf16.mxu0 0
  %1101 = vmatpush1.bf16.msra.mxu0 0
  %1102 = vmatprep.subr.bf16.mxu0 0
  %1103 = vmatpush1.bf16.msra.mxu0 0
  %1104 = vmatprep.mubr.bf16.mxu0 0
  %1105 = vmatmul.mubr.bf16.gmra.mrb[0].mxu0 %v1070
  %v1106 = vpop.f32.mrb[0].mxu0
  %v1107 = vadd.f32 0.0, %v1106
  %v1108 = vpop.f32.mrb[0].mxu0
  %v1109 = vpop.f32.mrb[0].mxu0
  %v1110 = vpop.f32.mrb[0].mxu0
  %1111 = vdwg.mxu0
  %v1112 = vadd.f32 %v1064, %v1107
  %v1113 = vxor.u32 %v1112, 2147483648
  %v1114 = vmul.f32 %v1113, 1.442695
  %v1115 = vpow.pop %v1114
  %v1116 = vadd.f32 %v1115, 1.0
  %v1117 = vrcp.pop %v1116
  %v1118 = vmul.f32 1.0, %v1117
  %v1119 = vtanh.pop %v1112
  %v1120 = vmul.f32 %v1118, %v972
  %1122 = vrot.lane.b32.xlu0 %v1119, 64
  %v1123 = vpop.permute.xlu0 %1122
  %v1125 = vmul.f32 %v1118, %v1123
  %1127 = vrot.lane.b32.xlu0 %v1125, 32
  %v1128 = vpop.permute.xlu0 %1127
  %v1130 = vadd.f32 %v1120, %v1128
  %v1131 = vtanh.pop %v1130
  %1133 = vrot.lane.b32.xlu0 %v1131, 64
  %v1134 = vpop.permute.xlu0 %1133
  %v1136 = vmul.f32 %v1118, %v1134
  %1138 = vrot.lane.b32.xlu0 %v1062, 32
  %v1139 = vpop.permute.xlu0 %1138
  %v1141 = vadd.f32 %v983, %v1139
  %1143 = vrot.lane.b32.xlu0 %v1136, 32
  %v1144 = vpop.permute.xlu0 %1143
  %v1146 = vadd.f32 %v988, %v1144
  %s1147 = scalar_lea.vmem [#allocation2], 24
  %v1148 = vld [vmem:[%s1147] sm:$0xff]
  %v1149 = vpack.c.bf16 %v1062, %v1062
  %1151 = vrot.lane.b32.xlu0 %v1149, 32
  %v1152 = vpop.permute.xlu0 %1151
  %v1154 = vsel %vm159, %v1152, 0
  %1156 = vmatprep.subr.bf16.mxu0 0
  %1157 = vmatpush1.bf16.msra.mxu0 %v658
  %1158 = vmatprep.subr.bf16.mxu0 0
  %1159 = vmatpush1.bf16.msra.mxu0 %v659
  %1160 = vmatprep.subr.bf16.mxu0 0
  %1161 = vmatpush1.bf16.msra.mxu0 0
  %1162 = vmatprep.subr.bf16.mxu0 0
  %1163 = vmatpush1.bf16.msra.mxu0 0
  %1164 = vmatprep.subr.bf16.mxu0 0
  %1165 = vmatpush1.bf16.msra.mxu0 0
  %1166 = vmatprep.subr.bf16.mxu0 0
  %1167 = vmatpush1.bf16.msra.mxu0 0
  %1168 = vmatprep.subr.bf16.mxu0 0
  %1169 = vmatpush1.bf16.msra.mxu0 0
  %1170 = vmatprep.subr.bf16.mxu0 0
  %1171 = vmatpush1.bf16.msra.mxu0 0
  %1172 = vmatprep.subr.bf16.mxu0 0
  %1173 = vmatpush1.bf16.msra.mxu0 0
  %1174 = vmatprep.subr.bf16.mxu0 0
  %1175 = vmatpush1.bf16.msra.mxu0 0
  %1176 = vmatprep.subr.bf16.mxu0 0
  %1177 = vmatpush1.bf16.msra.mxu0 0
  %1178 = vmatprep.subr.bf16.mxu0 0
  %1179 = vmatpush1.bf16.msra.mxu0 0
  %1180 = vmatprep.subr.bf16.mxu0 0
  %1181 = vmatpush1.bf16.msra.mxu0 0
  %1182 = vmatprep.subr.bf16.mxu0 0
  %1183 = vmatpush1.bf16.msra.mxu0 0
  %1184 = vmatprep.subr.bf16.mxu0 0
  %1185 = vmatpush1.bf16.msra.mxu0 0
  %1186 = vmatprep.subr.bf16.mxu0 0
  %1187 = vmatpush1.bf16.msra.mxu0 0
  %1188 = vmatprep.mubr.bf16.mxu0 0
  %1189 = vmatmul.mubr.bf16.gmra.mrb[0].mxu0 %v1154
  %v1190 = vpop.f32.mrb[0].mxu0
  %v1191 = vadd.f32 0.0, %v1190
  %v1192 = vpop.f32.mrb[0].mxu0
  %v1193 = vpop.f32.mrb[0].mxu0
  %v1194 = vpop.f32.mrb[0].mxu0
  %1195 = vdwg.mxu0
  %v1196 = vadd.f32 %v1148, %v1191
  %v1197 = vxor.u32 %v1196, 2147483648
  %v1198 = vmul.f32 %v1197, 1.442695
  %v1199 = vpow.pop %v1198
  %v1200 = vadd.f32 %v1199, 1.0
  %v1201 = vrcp.pop %v1200
  %v1202 = vmul.f32 1.0, %v1201
  %v1203 = vtanh.pop %v1196
  %v1204 = vmul.f32 %v1202, %v1056
  %1206 = vrot.lane.b32.xlu0 %v1203, 64
  %v1207 = vpop.permute.xlu0 %1206
  %v1209 = vmul.f32 %v1202, %v1207
  %1211 = vrot.lane.b32.xlu0 %v1209, 32
  %v1212 = vpop.permute.xlu0 %1211
  %v1214 = vadd.f32 %v1204, %v1212
  %v1215 = vtanh.pop %v1214
  %1217 = vrot.lane.b32.xlu0 %v1215, 64
  %v1218 = vpop.permute.xlu0 %1217
  %v1220 = vmul.f32 %v1202, %v1218
  %s1221 = scalar_lea.vmem [#allocation3], 32
  %v1222 = vld [vmem:[%s1221] sm:$0xff]
  %v1223 = vpack.c.bf16 %v1136, %v1136
  %1225 = vrot.lane.b32.xlu0 %v1223, 32
  %v1226 = vpop.permute.xlu0 %1225
  %v1228 = vsel %vm159, %v1226, 0
  %1230 = vmatprep.subr.bf16.mxu0 0
  %1231 = vmatpush1.bf16.msra.mxu0 %v745
  %1232 = vmatprep.subr.bf16.mxu0 0
  %1233 = vmatpush1.bf16.msra.mxu0 %v746
  %1234 = vmatprep.subr.bf16.mxu0 0
  %1235 = vmatpush1.bf16.msra.mxu0 0
  %1236 = vmatprep.subr.bf16.mxu0 0
  %1237 = vmatpush1.bf16.msra.mxu0 0
  %1238 = vmatprep.subr.bf16.mxu0 0
  %1239 = vmatpush1.bf16.msra.mxu0 0
  %1240 = vmatprep.subr.bf16.mxu0 0
  %1241 = vmatpush1.bf16.msra.mxu0 0
  %1242 = vmatprep.subr.bf16.mxu0 0
  %1243 = vmatpush1.bf16.msra.mxu0 0
  %1244 = vmatprep.subr.bf16.mxu0 0
  %1245 = vmatpush1.bf16.msra.mxu0 0
  %1246 = vmatprep.subr.bf16.mxu0 0
  %1247 = vmatpush1.bf16.msra.mxu0 0
  %1248 = vmatprep.subr.bf16.mxu0 0
  %1249 = vmatpush1.bf16.msra.mxu0 0
  %1250 = vmatprep.subr.bf16.mxu0 0
  %1251 = vmatpush1.bf16.msra.mxu0 0
  %1252 = vmatprep.subr.bf16.mxu0 0
  %1253 = vmatpush1.bf16.msra.mxu0 0
  %1254 = vmatprep.subr.bf16.mxu0 0
  %1255 = vmatpush1.bf16.msra.mxu0 0
  %1256 = vmatprep.subr.bf16.mxu0 0
  %1257 = vmatpush1.bf16.msra.mxu0 0
  %1258 = vmatprep.subr.bf16.mxu0 0
  %1259 = vmatpush1.bf16.msra.mxu0 0
  %1260 = vmatprep.subr.bf16.mxu0 0
  %1261 = vmatpush1.bf16.msra.mxu0 0
  %1262 = vmatprep.mubr.bf16.mxu0 0
  %1263 = vmatmul.mubr.bf16.gmra.mrb[0].mxu0 %v1228
  %v1264 = vpop.f32.mrb[0].mxu0
  %v1265 = vadd.f32 0.0, %v1264
  %v1266 = vpop.f32.mrb[0].mxu0
  %v1267 = vpop.f32.mrb[0].mxu0
  %v1268 = vpop.f32.mrb[0].mxu0
  %1269 = vdwg.mxu0
  %v1270 = vadd.f32 %v1222, %v1265
  %v1271 = vxor.u32 %v1270, 2147483648
  %v1272 = vmul.f32 %v1271, 1.442695
  %v1273 = vpow.pop %v1272
  %v1274 = vadd.f32 %v1273, 1.0
  %v1275 = vrcp.pop %v1274
  %v1276 = vmul.f32 1.0, %v1275
  %v1277 = vtanh.pop %v1270
  %v1278 = vmul.f32 %v1276, %v1130
  %1280 = vrot.lane.b32.xlu0 %v1277, 64
  %v1281 = vpop.permute.xlu0 %1280
  %v1283 = vmul.f32 %v1276, %v1281
  %1285 = vrot.lane.b32.xlu0 %v1283, 32
  %v1286 = vpop.permute.xlu0 %1285
  %v1288 = vadd.f32 %v1278, %v1286
  %v1289 = vtanh.pop %v1288
  %1291 = vrot.lane.b32.xlu0 %v1289, 64
  %v1292 = vpop.permute.xlu0 %1291
  %v1294 = vmul.f32 %v1276, %v1292
  %1296 = vrot.lane.b32.xlu0 %v1220, 32
  %v1297 = vpop.permute.xlu0 %1296
  %v1299 = vadd.f32 %v1141, %v1297
  %1301 = vrot.lane.b32.xlu0 %v1294, 32
  %v1302 = vpop.permute.xlu0 %1301
  %v1304 = vadd.f32 %v1146, %v1302
  %s1305 = scalar_lea.vmem [#allocation2], 32
  %v1306 = vld [vmem:[%s1305] sm:$0xff]
  %v1307 = vpack.c.bf16 %v1220, %v1220
  %1309 = vrot.lane.b32.xlu0 %v1307, 32
  %v1310 = vpop.permute.xlu0 %1309
  %v1312 = vsel %vm159, %v1310, 0
  %1314 = vmatprep.subr.bf16.mxu0 0
  %1315 = vmatpush1.bf16.msra.mxu0 %v658
  %1316 = vmatprep.subr.bf16.mxu0 0
  %1317 = vmatpush1.bf16.msra.mxu0 %v659
  %1318 = vmatprep.subr.bf16.mxu0 0
  %1319 = vmatpush1.bf16.msra.mxu0 0
  %1320 = vmatprep.subr.bf16.mxu0 0
  %1321 = vmatpush1.bf16.msra.mxu0 0
  %1322 = vmatprep.subr.bf16.mxu0 0
  %1323 = vmatpush1.bf16.msra.mxu0 0
  %1324 = vmatprep.subr.bf16.mxu0 0
  %1325 = vmatpush1.bf16.msra.mxu0 0
  %1326 = vmatprep.subr.bf16.mxu0 0
  %1327 = vmatpush1.bf16.msra.mxu0 0
  %1328 = vmatprep.subr.bf16.mxu0 0
  %1329 = vmatpush1.bf16.msra.mxu0 0
  %1330 = vmatprep.subr.bf16.mxu0 0
  %1331 = vmatpush1.bf16.msra.mxu0 0
  %1332 = vmatprep.subr.bf16.mxu0 0
  %1333 = vmatpush1.bf16.msra.mxu0 0
  %1334 = vmatprep.subr.bf16.mxu0 0
  %1335 = vmatpush1.bf16.msra.mxu0 0
  %1336 = vmatprep.subr.bf16.mxu0 0
  %1337 = vmatpush1.bf16.msra.mxu0 0
  %1338 = vmatprep.subr.bf16.mxu0 0
  %1339 = vmatpush1.bf16.msra.mxu0 0
  %1340 = vmatprep.subr.bf16.mxu0 0
  %1341 = vmatpush1.bf16.msra.mxu0 0
  %1342 = vmatprep.subr.bf16.mxu0 0
  %1343 = vmatpush1.bf16.msra.mxu0 0
  %1344 = vmatprep.subr.bf16.mxu0 0
  %1345 = vmatpush1.bf16.msra.mxu0 0
  %1346 = vmatprep.mubr.bf16.mxu0 0
  %1347 = vmatmul.mubr.bf16.gmra.mrb[0].mxu0 %v1312
  %v1348 = vpop.f32.mrb[0].mxu0
  %v1349 = vadd.f32 0.0, %v1348
  %v1350 = vpop.f32.mrb[0].mxu0
  %v1351 = vpop.f32.mrb[0].mxu0
  %v1352 = vpop.f32.mrb[0].mxu0
  %1353 = vdwg.mxu0
  %v1354 = vadd.f32 %v1306, %v1349
  %v1355 = vxor.u32 %v1354, 2147483648
  %v1356 = vmul.f32 %v1355, 1.442695
  %v1357 = vpow.pop %v1356
  %v1358 = vadd.f32 %v1357, 1.0
  %v1359 = vrcp.pop %v1358
  %v1360 = vmul.f32 1.0, %v1359
  %v1361 = vtanh.pop %v1354
  %v1362 = vmul.f32 %v1360, %v1214
  %1364 = vrot.lane.b32.xlu0 %v1361, 64
  %v1365 = vpop.permute.xlu0 %1364
  %v1367 = vmul.f32 %v1360, %v1365
  %1369 = vrot.lane.b32.xlu0 %v1367, 32
  %v1370 = vpop.permute.xlu0 %1369
  %v1372 = vadd.f32 %v1362, %v1370
  %v1373 = vtanh.pop %v1372
  %1375 = vrot.lane.b32.xlu0 %v1373, 64
  %v1376 = vpop.permute.xlu0 %1375
  %v1378 = vmul.f32 %v1360, %v1376
  %s1379 = scalar_lea.vmem [#allocation3], 24
  %v1380 = vld [vmem:[%s1379] sm:$0xff]
  %v1381 = vpack.c.bf16 %v1294, %v1294
  %1383 = vrot.lane.b32.xlu0 %v1381, 32
  %v1384 = vpop.permute.xlu0 %1383
  %v1386 = vsel %vm159, %v1384, 0
  %1388 = vmatprep.subr.bf16.mxu0 0
  %1389 = vmatpush1.bf16.msra.mxu0 %v745
  %1390 = vmatprep.subr.bf16.mxu0 0
  %1391 = vmatpush1.bf16.msra.mxu0 %v746
  %1392 = vmatprep.subr.bf16.mxu0 0
  %1393 = vmatpush1.bf16.msra.mxu0 0
  %1394 = vmatprep.subr.bf16.mxu0 0
  %1395 = vmatpush1.bf16.msra.mxu0 0
  %1396 = vmatprep.subr.bf16.mxu0 0
  %1397 = vmatpush1.bf16.msra.mxu0 0
  %1398 = vmatprep.subr.bf16.mxu0 0
  %1399 = vmatpush1.bf16.msra.mxu0 0
  %1400 = vmatprep.subr.bf16.mxu0 0
  %1401 = vmatpush1.bf16.msra.mxu0 0
  %1402 = vmatprep.subr.bf16.mxu0 0
  %1403 = vmatpush1.bf16.msra.mxu0 0
  %1404 = vmatprep.subr.bf16.mxu0 0
  %1405 = vmatpush1.bf16.msra.mxu0 0
  %1406 = vmatprep.subr.bf16.mxu0 0
  %1407 = vmatpush1.bf16.msra.mxu0 0
  %1408 = vmatprep.subr.bf16.mxu0 0
  %1409 = vmatpush1.bf16.msra.mxu0 0
  %1410 = vmatprep.subr.bf16.mxu0 0
  %1411 = vmatpush1.bf16.msra.mxu0 0
  %1412 = vmatprep.subr.bf16.mxu0 0
  %1413 = vmatpush1.bf16.msra.mxu0 0
  %1414 = vmatprep.subr.bf16.mxu0 0
  %1415 = vmatpush1.bf16.msra.mxu0 0
  %1416 = vmatprep.subr.bf16.mxu0 0
  %1417 = vmatpush1.bf16.msra.mxu0 0
  %1418 = vmatprep.subr.bf16.mxu0 0
  %1419 = vmatpush1.bf16.msra.mxu0 0
  %1420 = vmatprep.mubr.bf16.mxu0 0
  %1421 = vmatmul.mubr.bf16.gmra.mrb[0].mxu0 %v1386
  %v1422 = vpop.f32.mrb[0].mxu0
  %v1423 = vadd.f32 0.0, %v1422
  %v1424 = vpop.f32.mrb[0].mxu0
  %v1425 = vpop.f32.mrb[0].mxu0
  %v1426 = vpop.f32.mrb[0].mxu0
  %1427 = vdwg.mxu0
  %v1428 = vadd.f32 %v1380, %v1423
  %v1429 = vxor.u32 %v1428, 2147483648
  %v1430 = vmul.f32 %v1429, 1.442695
  %v1431 = vpow.pop %v1430
  %v1432 = vadd.f32 %v1431, 1.0
  %v1433 = vrcp.pop %v1432
  %v1434 = vmul.f32 1.0, %v1433
  %v1435 = vtanh.pop %v1428
  %v1436 = vmul.f32 %v1434, %v1288
  %1438 = vrot.lane.b32.xlu0 %v1435, 64
  %v1439 = vpop.permute.xlu0 %1438
  %v1441 = vmul.f32 %v1434, %v1439
  %1443 = vrot.lane.b32.xlu0 %v1441, 32
  %v1444 = vpop.permute.xlu0 %1443
  %v1446 = vadd.f32 %v1436, %v1444
  %v1447 = vtanh.pop %v1446
  %1449 = vrot.lane.b32.xlu0 %v1447, 64
  %v1450 = vpop.permute.xlu0 %1449
  %v1452 = vmul.f32 %v1434, %v1450
  %1454 = vrot.lane.b32.xlu0 %v1378, 32
  %v1455 = vpop.permute.xlu0 %1454
  %v1457 = vadd.f32 %v1299, %v1455
  %1459 = vrot.lane.b32.xlu0 %v1452, 32
  %v1460 = vpop.permute.xlu0 %1459
  %v1462 = vadd.f32 %v1304, %v1460
  %s1463 = scalar_lea.vmem [#allocation2], 40
  %v1464 = vld [vmem:[%s1463] sm:$0xff]
  %v1465 = vpack.c.bf16 %v1378, %v1378
  %1467 = vrot.lane.b32.xlu0 %v1465, 32
  %v1468 = vpop.permute.xlu0 %1467
  %v1470 = vsel %vm159, %v1468, 0
  %1472 = vmatprep.subr.bf16.mxu0 0
  %1473 = vmatpush1.bf16.msra.mxu0 %v658
  %1474 = vmatprep.subr.bf16.mxu0 0
  %1475 = vmatpush1.bf16.msra.mxu0 %v659
  %1476 = vmatprep.subr.bf16.mxu0 0
  %1477 = vmatpush1.bf16.msra.mxu0 0
  %1478 = vmatprep.subr.bf16.mxu0 0
  %1479 = vmatpush1.bf16.msra.mxu0 0
  %1480 = vmatprep.subr.bf16.mxu0 0
  %1481 = vmatpush1.bf16.msra.mxu0 0
  %1482 = vmatprep.subr.bf16.mxu0 0
  %1483 = vmatpush1.bf16.msra.mxu0 0
  %1484 = vmatprep.subr.bf16.mxu0 0
  %1485 = vmatpush1.bf16.msra.mxu0 0
  %1486 = vmatprep.subr.bf16.mxu0 0
  %1487 = vmatpush1.bf16.msra.mxu0 0
  %1488 = vmatprep.subr.bf16.mxu0 0
  %1489 = vmatpush1.bf16.msra.mxu0 0
  %1490 = vmatprep.subr.bf16.mxu0 0
  %1491 = vmatpush1.bf16.msra.mxu0 0
  %1492 = vmatprep.subr.bf16.mxu0 0
  %1493 = vmatpush1.bf16.msra.mxu0 0
  %1494 = vmatprep.subr.bf16.mxu0 0
  %1495 = vmatpush1.bf16.msra.mxu0 0
  %1496 = vmatprep.subr.bf16.mxu0 0
  %1497 = vmatpush1.bf16.msra.mxu0 0
  %1498 = vmatprep.subr.bf16.mxu0 0
  %1499 = vmatpush1.bf16.msra.mxu0 0
  %1500 = vmatprep.subr.bf16.mxu0 0
  %1501 = vmatpush1.bf16.msra.mxu0 0
  %1502 = vmatprep.subr.bf16.mxu0 0
  %1503 = vmatpush1.bf16.msra.mxu0 0
  %1504 = vmatprep.mubr.bf16.mxu0 0
  %1505 = vmatmul.mubr.bf16.gmra.mrb[0].mxu0 %v1470
  %v1506 = vpop.f32.mrb[0].mxu0
  %v1507 = vadd.f32 0.0, %v1506
  %v1508 = vpop.f32.mrb[0].mxu0
  %v1509 = vpop.f32.mrb[0].mxu0
  %v1510 = vpop.f32.mrb[0].mxu0
  %1511 = vdwg.mxu0
  %v1512 = vadd.f32 %v1464, %v1507
  %v1513 = vxor.u32 %v1512, 2147483648
  %v1514 = vmul.f32 %v1513, 1.442695
  %v1515 = vpow.pop %v1514
  %v1516 = vadd.f32 %v1515, 1.0
  %v1517 = vrcp.pop %v1516
  %v1518 = vmul.f32 1.0, %v1517
  %v1519 = vtanh.pop %v1512
  %v1520 = vmul.f32 %v1518, %v1372
  %1522 = vrot.lane.b32.xlu0 %v1519, 64
  %v1523 = vpop.permute.xlu0 %1522
  %v1525 = vmul.f32 %v1518, %v1523
  %1527 = vrot.lane.b32.xlu0 %v1525, 32
  %v1528 = vpop.permute.xlu0 %1527
  %v1530 = vadd.f32 %v1520, %v1528
  %v1531 = vtanh.pop %v1530
  %1533 = vrot.lane.b32.xlu0 %v1531, 64
  %v1534 = vpop.permute.xlu0 %1533
  %v1536 = vmul.f32 %v1518, %v1534
  %s1537 = scalar_lea.vmem [#allocation3], 16
  %v1538 = vld [vmem:[%s1537] sm:$0xff]
  %v1539 = vpack.c.bf16 %v1452, %v1452
  %1541 = vrot.lane.b32.xlu0 %v1539, 32
  %v1542 = vpop.permute.xlu0 %1541
  %v1544 = vsel %vm159, %v1542, 0
  %1546 = vmatprep.subr.bf16.mxu0 0
  %1547 = vmatpush1.bf16.msra.mxu0 %v745
  %1548 = vmatprep.subr.bf16.mxu0 0
  %1549 = vmatpush1.bf16.msra.mxu0 %v746
  %1550 = vmatprep.subr.bf16.mxu0 0
  %1551 = vmatpush1.bf16.msra.mxu0 0
  %1552 = vmatprep.subr.bf16.mxu0 0
  %1553 = vmatpush1.bf16.msra.mxu0 0
  %1554 = vmatprep.subr.bf16.mxu0 0
  %1555 = vmatpush1.bf16.msra.mxu0 0
  %1556 = vmatprep.subr.bf16.mxu0 0
  %1557 = vmatpush1.bf16.msra.mxu0 0
  %1558 = vmatprep.subr.bf16.mxu0 0
  %1559 = vmatpush1.bf16.msra.mxu0 0
  %1560 = vmatprep.subr.bf16.mxu0 0
  %1561 = vmatpush1.bf16.msra.mxu0 0
  %1562 = vmatprep.subr.bf16.mxu0 0
  %1563 = vmatpush1.bf16.msra.mxu0 0
  %1564 = vmatprep.subr.bf16.mxu0 0
  %1565 = vmatpush1.bf16.msra.mxu0 0
  %1566 = vmatprep.subr.bf16.mxu0 0
  %1567 = vmatpush1.bf16.msra.mxu0 0
  %1568 = vmatprep.subr.bf16.mxu0 0
  %1569 = vmatpush1.bf16.msra.mxu0 0
  %1570 = vmatprep.subr.bf16.mxu0 0
  %1571 = vmatpush1.bf16.msra.mxu0 0
  %1572 = vmatprep.subr.bf16.mxu0 0
  %1573 = vmatpush1.bf16.msra.mxu0 0
  %1574 = vmatprep.subr.bf16.mxu0 0
  %1575 = vmatpush1.bf16.msra.mxu0 0
  %1576 = vmatprep.subr.bf16.mxu0 0
  %1577 = vmatpush1.bf16.msra.mxu0 0
  %1578 = vmatprep.mubr.bf16.mxu0 0
  %1579 = vmatmul.mubr.bf16.gmra.mrb[0].mxu0 %v1544
  %v1580 = vpop.f32.mrb[0].mxu0
  %v1581 = vadd.f32 0.0, %v1580
  %v1582 = vpop.f32.mrb[0].mxu0
  %v1583 = vpop.f32.mrb[0].mxu0
  %v1584 = vpop.f32.mrb[0].mxu0
  %1585 = vdwg.mxu0
  %v1586 = vadd.f32 %v1538, %v1581
  %v1587 = vxor.u32 %v1586, 2147483648
  %v1588 = vmul.f32 %v1587, 1.442695
  %v1589 = vpow.pop %v1588
  %v1590 = vadd.f32 %v1589, 1.0
  %v1591 = vrcp.pop %v1590
  %v1592 = vmul.f32 1.0, %v1591
  %v1593 = vtanh.pop %v1586
  %v1594 = vmul.f32 %v1592, %v1446
  %1596 = vrot.lane.b32.xlu0 %v1593, 64
  %v1597 = vpop.permute.xlu0 %1596
  %v1599 = vmul.f32 %v1592, %v1597
  %1601 = vrot.lane.b32.xlu0 %v1599, 32
  %v1602 = vpop.permute.xlu0 %1601
  %v1604 = vadd.f32 %v1594, %v1602
  %v1605 = vtanh.pop %v1604
  %1607 = vrot.lane.b32.xlu0 %v1605, 64
  %v1608 = vpop.permute.xlu0 %1607
  %v1610 = vmul.f32 %v1592, %v1608
  %1612 = vrot.lane.b32.xlu0 %v1536, 32
  %v1613 = vpop.permute.xlu0 %1612
  %v1615 = vadd.f32 %v1457, %v1613
  %1617 = vrot.lane.b32.xlu0 %v1610, 32
  %v1618 = vpop.permute.xlu0 %1617
  %v1620 = vadd.f32 %v1462, %v1618
  %s1621 = scalar_lea.vmem [#allocation2], 48
  %v1622 = vld [vmem:[%s1621] sm:$0xff]
  %v1623 = vpack.c.bf16 %v1536, %v1536
  %1625 = vrot.lane.b32.xlu0 %v1623, 32
  %v1626 = vpop.permute.xlu0 %1625
  %v1628 = vsel %vm159, %v1626, 0
  %1630 = vmatprep.subr.bf16.mxu0 0
  %1631 = vmatpush1.bf16.msra.mxu0 %v658
  %1632 = vmatprep.subr.bf16.mxu0 0
  %1633 = vmatpush1.bf16.msra.mxu0 %v659
  %1634 = vmatprep.subr.bf16.mxu0 0
  %1635 = vmatpush1.bf16.msra.mxu0 0
  %1636 = vmatprep.subr.bf16.mxu0 0
  %1637 = vmatpush1.bf16.msra.mxu0 0
  %1638 = vmatprep.subr.bf16.mxu0 0
  %1639 = vmatpush1.bf16.msra.mxu0 0
  %1640 = vmatprep.subr.bf16.mxu0 0
  %1641 = vmatpush1.bf16.msra.mxu0 0
  %1642 = vmatprep.subr.bf16.mxu0 0
  %1643 = vmatpush1.bf16.msra.mxu0 0
  %1644 = vmatprep.subr.bf16.mxu0 0
  %1645 = vmatpush1.bf16.msra.mxu0 0
  %1646 = vmatprep.subr.bf16.mxu0 0
  %1647 = vmatpush1.bf16.msra.mxu0 0
  %1648 = vmatprep.subr.bf16.mxu0 0
  %1649 = vmatpush1.bf16.msra.mxu0 0
  %1650 = vmatprep.subr.bf16.mxu0 0
  %1651 = vmatpush1.bf16.msra.mxu0 0
  %1652 = vmatprep.subr.bf16.mxu0 0
  %1653 = vmatpush1.bf16.msra.mxu0 0
  %1654 = vmatprep.subr.bf16.mxu0 0
  %1655 = vmatpush1.bf16.msra.mxu0 0
  %1656 = vmatprep.subr.bf16.mxu0 0
  %1657 = vmatpush1.bf16.msra.mxu0 0
  %1658 = vmatprep.subr.bf16.mxu0 0
  %1659 = vmatpush1.bf16.msra.mxu0 0
  %1660 = vmatprep.subr.bf16.mxu0 0
  %1661 = vmatpush1.bf16.msra.mxu0 0
  %1662 = vmatprep.mubr.bf16.mxu0 0
  %1663 = vmatmul.mubr.bf16.gmra.mrb[0].mxu0 %v1628
  %v1664 = vpop.f32.mrb[0].mxu0
  %v1665 = vadd.f32 0.0, %v1664
  %v1666 = vpop.f32.mrb[0].mxu0
  %v1667 = vpop.f32.mrb[0].mxu0
  %v1668 = vpop.f32.mrb[0].mxu0
  %1669 = vdwg.mxu0
  %v1670 = vadd.f32 %v1622, %v1665
  %v1671 = vxor.u32 %v1670, 2147483648
  %v1672 = vmul.f32 %v1671, 1.442695
  %v1673 = vpow.pop %v1672
  %v1674 = vadd.f32 %v1673, 1.0
  %v1675 = vrcp.pop %v1674
  %v1676 = vmul.f32 1.0, %v1675
  %v1677 = vtanh.pop %v1670
  %v1678 = vmul.f32 %v1676, %v1530
  %1680 = vrot.lane.b32.xlu0 %v1677, 64
  %v1681 = vpop.permute.xlu0 %1680
  %v1683 = vmul.f32 %v1676, %v1681
  %1685 = vrot.lane.b32.xlu0 %v1683, 32
  %v1686 = vpop.permute.xlu0 %1685
  %v1688 = vadd.f32 %v1678, %v1686
  %v1689 = vtanh.pop %v1688
  %1691 = vrot.lane.b32.xlu0 %v1689, 64
  %v1692 = vpop.permute.xlu0 %1691
  %v1694 = vmul.f32 %v1676, %v1692
  %s1695 = scalar_lea.vmem [#allocation3], 8
  %v1696 = vld [vmem:[%s1695] sm:$0xff]
  %v1697 = vpack.c.bf16 %v1610, %v1610
  %1699 = vrot.lane.b32.xlu0 %v1697, 32
  %v1700 = vpop.permute.xlu0 %1699
  %v1702 = vsel %vm159, %v1700, 0
  %1704 = vmatprep.subr.bf16.mxu0 0
  %1705 = vmatpush1.bf16.msra.mxu0 %v745
  %1706 = vmatprep.subr.bf16.mxu0 0
  %1707 = vmatpush1.bf16.msra.mxu0 %v746
  %1708 = vmatprep.subr.bf16.mxu0 0
  %1709 = vmatpush1.bf16.msra.mxu0 0
  %1710 = vmatprep.subr.bf16.mxu0 0
  %1711 = vmatpush1.bf16.msra.mxu0 0
  %1712 = vmatprep.subr.bf16.mxu0 0
  %1713 = vmatpush1.bf16.msra.mxu0 0
  %1714 = vmatprep.subr.bf16.mxu0 0
  %1715 = vmatpush1.bf16.msra.mxu0 0
  %1716 = vmatprep.subr.bf16.mxu0 0
  %1717 = vmatpush1.bf16.msra.mxu0 0
  %1718 = vmatprep.subr.bf16.mxu0 0
  %1719 = vmatpush1.bf16.msra.mxu0 0
  %1720 = vmatprep.subr.bf16.mxu0 0
  %1721 = vmatpush1.bf16.msra.mxu0 0
  %1722 = vmatprep.subr.bf16.mxu0 0
  %1723 = vmatpush1.bf16.msra.mxu0 0
  %1724 = vmatprep.subr.bf16.mxu0 0
  %1725 = vmatpush1.bf16.msra.mxu0 0
  %1726 = vmatprep.subr.bf16.mxu0 0
  %1727 = vmatpush1.bf16.msra.mxu0 0
  %1728 = vmatprep.subr.bf16.mxu0 0
  %1729 = vmatpush1.bf16.msra.mxu0 0
  %1730 = vmatprep.subr.bf16.mxu0 0
  %1731 = vmatpush1.bf16.msra.mxu0 0
  %1732 = vmatprep.subr.bf16.mxu0 0
  %1733 = vmatpush1.bf16.msra.mxu0 0
  %1734 = vmatprep.subr.bf16.mxu0 0
  %1735 = vmatpush1.bf16.msra.mxu0 0
  %1736 = vmatprep.mubr.bf16.mxu0 0
  %1737 = vmatmul.mubr.bf16.gmra.mrb[0].mxu0 %v1702
  %v1738 = vpop.f32.mrb[0].mxu0
  %v1739 = vadd.f32 0.0, %v1738
  %v1740 = vpop.f32.mrb[0].mxu0
  %v1741 = vpop.f32.mrb[0].mxu0
  %v1742 = vpop.f32.mrb[0].mxu0
  %1743 = vdwg.mxu0
  %v1744 = vadd.f32 %v1696, %v1739
  %v1745 = vxor.u32 %v1744, 2147483648
  %v1746 = vmul.f32 %v1745, 1.442695
  %v1747 = vpow.pop %v1746
  %v1748 = vadd.f32 %v1747, 1.0
  %v1749 = vrcp.pop %v1748
  %v1750 = vmul.f32 1.0, %v1749
  %v1751 = vtanh.pop %v1744
  %v1752 = vmul.f32 %v1750, %v1604
  %1754 = vrot.lane.b32.xlu0 %v1751, 64
  %v1755 = vpop.permute.xlu0 %1754
  %v1757 = vmul.f32 %v1750, %v1755
  %1759 = vrot.lane.b32.xlu0 %v1757, 32
  %v1760 = vpop.permute.xlu0 %1759
  %v1762 = vadd.f32 %v1752, %v1760
  %v1763 = vtanh.pop %v1762
  %1765 = vrot.lane.b32.xlu0 %v1763, 64
  %v1766 = vpop.permute.xlu0 %1765
  %v1768 = vmul.f32 %v1750, %v1766
  %1770 = vrot.lane.b32.xlu0 %v1694, 32
  %v1771 = vpop.permute.xlu0 %1770
  %v1773 = vadd.f32 %v1615, %v1771
  %1775 = vrot.lane.b32.xlu0 %v1768, 32
  %v1776 = vpop.permute.xlu0 %1775
  %v1778 = vadd.f32 %v1620, %v1776
  %s1779 = scalar_lea.vmem [#allocation2], 56
  %v1780 = vld [vmem:[%s1779] sm:$0xff]
  %v1781 = vpack.c.bf16 %v1694, %v1694
  %1783 = vrot.lane.b32.xlu0 %v1781, 32
  %v1784 = vpop.permute.xlu0 %1783
  %v1786 = vsel %vm159, %v1784, 0
  %1788 = vmatprep.subr.bf16.mxu0 0
  %1789 = vmatpush1.bf16.msra.mxu0 %v658
  %1790 = vmatprep.subr.bf16.mxu0 0
  %1791 = vmatpush1.bf16.msra.mxu0 %v659
  %1792 = vmatprep.subr.bf16.mxu0 0
  %1793 = vmatpush1.bf16.msra.mxu0 0
  %1794 = vmatprep.subr.bf16.mxu0 0
  %1795 = vmatpush1.bf16.msra.mxu0 0
  %1796 = vmatprep.subr.bf16.mxu0 0
  %1797 = vmatpush1.bf16.msra.mxu0 0
  %1798 = vmatprep.subr.bf16.mxu0 0
  %1799 = vmatpush1.bf16.msra.mxu0 0
  %1800 = vmatprep.subr.bf16.mxu0 0
  %1801 = vmatpush1.bf16.msra.mxu0 0
  %1802 = vmatprep.subr.bf16.mxu0 0
  %1803 = vmatpush1.bf16.msra.mxu0 0
  %1804 = vmatprep.subr.bf16.mxu0 0
  %1805 = vmatpush1.bf16.msra.mxu0 0
  %1806 = vmatprep.subr.bf16.mxu0 0
  %1807 = vmatpush1.bf16.msra.mxu0 0
  %1808 = vmatprep.subr.bf16.mxu0 0
  %1809 = vmatpush1.bf16.msra.mxu0 0
  %1810 = vmatprep.subr.bf16.mxu0 0
  %1811 = vmatpush1.bf16.msra.mxu0 0
  %1812 = vmatprep.subr.bf16.mxu0 0
  %1813 = vmatpush1.bf16.msra.mxu0 0
  %1814 = vmatprep.subr.bf16.mxu0 0
  %1815 = vmatpush1.bf16.msra.mxu0 0
  %1816 = vmatprep.subr.bf16.mxu0 0
  %1817 = vmatpush1.bf16.msra.mxu0 0
  %1818 = vmatprep.subr.bf16.mxu0 0
  %1819 = vmatpush1.bf16.msra.mxu0 0
  %1820 = vmatprep.mubr.bf16.mxu0 0
  %1821 = vmatmul.mubr.bf16.gmra.mrb[0].mxu0 %v1786
  %v1822 = vpop.f32.mrb[0].mxu0
  %v1823 = vadd.f32 0.0, %v1822
  %v1824 = vpop.f32.mrb[0].mxu0
  %v1825 = vpop.f32.mrb[0].mxu0
  %v1826 = vpop.f32.mrb[0].mxu0
  %1827 = vdwg.mxu0
  %v1828 = vadd.f32 %v1780, %v1823
  %v1829 = vxor.u32 %v1828, 2147483648
  %v1830 = vmul.f32 %v1829, 1.442695
  %v1831 = vpow.pop %v1830
  %v1832 = vadd.f32 %v1831, 1.0
  %v1833 = vrcp.pop %v1832
  %v1834 = vmul.f32 1.0, %v1833
  %v1835 = vtanh.pop %v1828
  %v1836 = vmul.f32 %v1834, %v1688
  %1838 = vrot.lane.b32.xlu0 %v1835, 64
  %v1839 = vpop.permute.xlu0 %1838
  %v1841 = vmul.f32 %v1834, %v1839
  %1843 = vrot.lane.b32.xlu0 %v1841, 32
  %v1844 = vpop.permute.xlu0 %1843
  %v1846 = vadd.f32 %v1836, %v1844
  %v1847 = vtanh.pop %v1846
  %1849 = vrot.lane.b32.xlu0 %v1847, 64
  %v1850 = vpop.permute.xlu0 %1849
  %v1852 = vmul.f32 %v1834, %v1850
  %v1853 = vld [vmem:[#allocation3] sm:$0xff]
  %v1854 = vpack.c.bf16 %v1768, %v1768
  %1856 = vrot.lane.b32.xlu0 %v1854, 32
  %v1857 = vpop.permute.xlu0 %1856
  %v1859 = vsel %vm159, %v1857, 0
  %1861 = vmatprep.subr.bf16.mxu0 0
  %1862 = vmatpush1.bf16.msra.mxu0 %v745
  %1863 = vmatprep.subr.bf16.mxu0 0
  %1864 = vmatpush1.bf16.msra.mxu0 %v746
  %1865 = vmatprep.subr.bf16.mxu0 0
  %1866 = vmatpush1.bf16.msra.mxu0 0
  %1867 = vmatprep.subr.bf16.mxu0 0
  %1868 = vmatpush1.bf16.msra.mxu0 0
  %1869 = vmatprep.subr.bf16.mxu0 0
  %1870 = vmatpush1.bf16.msra.mxu0 0
  %1871 = vmatprep.subr.bf16.mxu0 0
  %1872 = vmatpush1.bf16.msra.mxu0 0
  %1873 = vmatprep.subr.bf16.mxu0 0
  %1874 = vmatpush1.bf16.msra.mxu0 0
  %1875 = vmatprep.subr.bf16.mxu0 0
  %1876 = vmatpush1.bf16.msra.mxu0 0
  %1877 = vmatprep.subr.bf16.mxu0 0
  %1878 = vmatpush1.bf16.msra.mxu0 0
  %1879 = vmatprep.subr.bf16.mxu0 0
  %1880 = vmatpush1.bf16.msra.mxu0 0
  %1881 = vmatprep.subr.bf16.mxu0 0
  %1882 = vmatpush1.bf16.msra.mxu0 0
  %1883 = vmatprep.subr.bf16.mxu0 0
  %1884 = vmatpush1.bf16.msra.mxu0 0
  %1885 = vmatprep.subr.bf16.mxu0 0
  %1886 = vmatpush1.bf16.msra.mxu0 0
  %1887 = vmatprep.subr.bf16.mxu0 0
  %1888 = vmatpush1.bf16.msra.mxu0 0
  %1889 = vmatprep.subr.bf16.mxu0 0
  %1890 = vmatpush1.bf16.msra.mxu0 0
  %1891 = vmatprep.subr.bf16.mxu0 0
  %1892 = vmatpush1.bf16.msra.mxu0 0
  %1893 = vmatprep.mubr.bf16.mxu0 0
  %1894 = vmatmul.mubr.bf16.gmra.mrb[0].mxu0 %v1859
  %v1895 = vpop.f32.mrb[0].mxu0
  %v1896 = vadd.f32 0.0, %v1895
  %v1897 = vpop.f32.mrb[0].mxu0
  %v1898 = vpop.f32.mrb[0].mxu0
  %v1899 = vpop.f32.mrb[0].mxu0
  %1900 = vdwg.mxu0
  %v1901 = vadd.f32 %v1853, %v1896
  %v1902 = vxor.u32 %v1901, 2147483648
  %v1903 = vmul.f32 %v1902, 1.442695
  %v1904 = vpow.pop %v1903
  %v1905 = vadd.f32 %v1904, 1.0
  %v1906 = vrcp.pop %v1905
  %v1907 = vmul.f32 1.0, %v1906
  %v1908 = vtanh.pop %v1901
  %v1909 = vmul.f32 %v1907, %v1762
  %1911 = vrot.lane.b32.xlu0 %v1908, 64
  %v1912 = vpop.permute.xlu0 %1911
  %v1914 = vmul.f32 %v1907, %v1912
  %1916 = vrot.lane.b32.xlu0 %v1914, 32
  %v1917 = vpop.permute.xlu0 %1916
  %v1919 = vadd.f32 %v1909, %v1917
  %v1920 = vtanh.pop %v1919
  %1922 = vrot.lane.b32.xlu0 %v1920, 64
  %v1923 = vpop.permute.xlu0 %1922
  %v1925 = vmul.f32 %v1907, %v1923
  %1927 = vrot.lane.b32.xlu0 %v1852, 32
  %v1928 = vpop.permute.xlu0 %1927
  %v1930 = vadd.f32 %v1773, %v1928
  %1932 = vrot.lane.b32.xlu0 %v1925, 32
  %v1933 = vpop.permute.xlu0 %1932
  %v1935 = vadd.f32 %v1778, %v1933
  %1936 = vst.msk [vmem:[#allocation4] sm:$0xff] %vm159, %v1928
  %1938 = vrot.lane.b32.xlu0 %v1846, 96
  %v1939 = vpop.permute.xlu0 %1938
  %1941 = vst.msk [vmem:[#allocation5] sm:$0xff] %vm159, %v1939
  %1942 = vst.msk [vmem:[#allocation6] sm:$0xff] %vm159, %v1933
  %1944 = vrot.lane.b32.xlu0 %v1919, 96
  %v1945 = vpop.permute.xlu0 %1944
  %1947 = vst.msk [vmem:[#allocation7] sm:$0xff] %vm159, %v1945
  %1948 = vst.msk [vmem:[#allocation8] sm:$0xff] %vm159, %v1930
  %1949 = vst.msk [vmem:[#allocation9] sm:$0xff] %vm159, %v1935
  // Predicated region
  $region62: #{bilstm_softmax_forward.3} parent=0 // pred_check
    %p1950 = pneg %p92
  $region63: #{bilstm_softmax_forward.3} parent=0 // pred_check_branch
    %1952 = sbr.rel (%p1950) target = $region65
  $region64: #{bilstm_softmax_forward.3} parent=0 // pred_region
    %v1953 = vld [vmem:[#allocation8] sm:$0xff]
    %v1954 = vld [vmem:[#allocation9] sm:$0xff]
    %1956 = vrot.lane.b32.xlu0 %v1954, 32
    %v1957 = vpop.permute.xlu0 %1956
    %v1959 = vsel %vm159, %v1953, %v1957
    %v1960 = vmul.f32 %v1959, 0.125
    %v1961 = vpack.c.bf16 %v1960, %v1960
    %v1962 = vld [vmem:[%s12] sm:$0xf]
    %v1963 = vld [vmem:[%s12 + $0x4] sm:$0xf]
    %v1964 = vld [vmem:[%s12 + $0x8] sm:$0xf]
    %v1965 = vld [vmem:[%s12 + $0xc] sm:$0xf]
    %v1966 = vld [vmem:[%s12 + $0x10] sm:$0xf]
    %v1967 = vld [vmem:[%s12 + $0x14] sm:$0xf]
    %v1968 = vld [vmem:[%s12 + $0x18] sm:$0xf]
    %v1969 = vld [vmem:[%s12 + $0x1c] sm:$0xf]
    %v1970 = vld [vmem:[%s13] sm:$0x1]
    %v1972 = vlaneseq
    %v1973 = vshrl.u32 %v1972, 7
    %v1974 = vsub.s32 0, %v1973
    %v1975 = vrot.slane %v1970, %v1974
    %v1985 = vunpack.c.l.b16 %v1962
    %v1986 = vunpack.c.l.b16 %v1963
    %v1987 = vunpack.c.l.b16 %v1964
    %v1988 = vunpack.c.l.b16 %v1965
    %v1989 = vunpack.c.l.b16 %v1966
    %v1990 = vunpack.c.l.b16 %v1967
    %v1991 = vunpack.c.l.b16 %v1968
    %v1992 = vunpack.c.l.b16 %v1969
    %v1993 = vpack.c.b16 %v1986, %v1985
    %v1994 = vpack.c.b16 %v1988, %v1987
    %v1995 = vpack.c.b16 %v1990, %v1989
    %v1996 = vpack.c.b16 %v1992, %v1991
    %vm2001 = vcmask 523264
    %v2003 = vsel %vm2001, %v1961, 0
    %2005 = vmatprep.subr.bf16.mxu0 0
    %2006 = vmatpush1.bf16.msra.mxu0 %v1993
    %2007 = vmatprep.subr.bf16.mxu0 0
    %2008 = vmatpush1.bf16.msra.mxu0 %v1994
    %2009 = vmatprep.subr.bf16.mxu0 0
    %2010 = vmatpush1.bf16.msra.mxu0 %v1995
    %2011 = vmatprep.subr.bf16.mxu0 0
    %2012 = vmatpush1.bf16.msra.mxu0 %v1996
    %2013 = vmatprep.subr.bf16.mxu0 0
    %2014 = vmatpush1.bf16.msra.mxu0 0
    %2015 = vmatprep.subr.bf16.mxu0 0
    %2016 = vmatpush1.bf16.msra.mxu0 0
    %2017 = vmatprep.subr.bf16.mxu0 0
    %2018 = vmatpush1.bf16.msra.mxu0 0
    %2019 = vmatprep.subr.bf16.mxu0 0
    %2020 = vmatpush1.bf16.msra.mxu0 0
    %2021 = vmatprep.subr.bf16.mxu0 0
    %2022 = vmatpush1.bf16.msra.mxu0 0
    %2023 = vmatprep.subr.bf16.mxu0 0
    %2024 = vmatpush1.bf16.msra.mxu0 0
    %2025 = vmatprep.subr.bf16.mxu0 0
    %2026 = vmatpush1.bf16.msra.mxu0 0
    %2027 = vmatprep.subr.bf16.mxu0 0
    %2028 = vmatpush1.bf16.msra.mxu0 0
    %2029 = vmatprep.subr.bf16.mxu0 0
    %2030 = vmatpush1.bf16.msra.mxu0 0
    %2031 = vmatprep.subr.bf16.mxu0 0
    %2032 = vmatpush1.bf16.msra.mxu0 0
    %2033 = vmatprep.subr.bf16.mxu0 0
    %2034 = vmatpush1.bf16.msra.mxu0 0
    %2035 = vmatprep.subr.bf16.mxu0 0
    %2036 = vmatpush1.bf16.msra.mxu0 0
    %2037 = vmatprep.mubr.bf16.mxu0 0
    %2038 = vmatmul.mubr.bf16.gmra.mrb[0].mxu0 %v2003
    %v2039 = vpop.f32.mrb[0].mxu0
    %v2040 = vadd.f32 %v1975, %v2039
    %v2041 = vpop.f32.mrb[0].mxu0
    %v2042 = vpop.f32.mrb[0].mxu0
    %v2043 = vpop.f32.mrb[0].mxu0
    %2044 = vdwg.mxu0
    %2045 = vst [vmem:[%s14] sm:$0xff] %v2040
  $region65: #{bilstm_softmax_forward.3} parent=0 // pred_fallthru
    _
  // Predicated region
  $region66: #{bilstm_softmax_forward.3} parent=0 // pred_check
    _
  $region67: #{bilstm_softmax_forward.3} parent=0 // pred_check_branch
    %2047 = sbr.rel (0) target = $region69
  $region68: #{bilstm_softmax_forward.3} parent=0 // pred_region
    _
  $region69: #{bilstm_softmax_forward.3} parent=0 // pred_fallthru
    _
  // Predicated region
  $region70: #{bilstm_softmax_forward.3} parent=0 // pred_check
    _
  $region71: #{bilstm_softmax_forward.3} parent=0 // pred_check_branch
    %2049 = sbr.rel (0) target = $region73
  $region72: #{bilstm_softmax_forward.3} parent=0 // pred_region
    _
  $region73: #{bilstm_softmax_forward.3} parent=0 // pred_fallthru
    _

// kernel: bilstm_softmax_forward.2
$region0: #{bilstm_softmax_forward.2}
  #allocation0 [shape = 'u32[]', space=smem, size = 0x4, offset = 0x4, fixed_abs, tag = 'smem constant byte address 0x4 - core index']
  #allocation1 [shape = 'u32[144,128]{1,0:T(1,128)}', space=vmem, size = 0x12000, scoped, tag = 'internal scratch']
  #allocation2 [shape = 'f32[8,8,128]{2,1,0:T(8,128)}', space=vmem, size = 0x8000, scoped, tag = 'scratch operand']
  #allocation3 [shape = 'f32[8,8,128]{2,1,0:T(8,128)}', space=vmem, size = 0x8000, scoped, tag = 'scratch operand']
  #allocation4 [shape = 'f32[8,32]{1,0:T(8,128)}', space=vmem, size = 0x1000, scoped, tag = 'scratch operand']
  #allocation5 [shape = 'f32[8,32]{1,0:T(8,128)}', space=vmem, size = 0x1000, scoped, tag = 'scratch operand']
  #allocation6 [shape = 'f32[8,32]{1,0:T(8,128)}', space=vmem, size = 0x1000, scoped, tag = 'scratch operand']
  #allocation7 [shape = 'f32[8,32]{1,0:T(8,128)}', space=vmem, size = 0x1000, scoped, tag = 'scratch operand']
  %s0 = inlined_call_operand.vmem [shape: bf16[8,8,16], index: 0, kind: input, shape index: {}, may-alias: {0,1}]
  %s1 = inlined_call_operand.vmem [shape: bf16[8,8,16], index: 1, kind: input, shape index: {}, may-alias: {0,1}]
  %s2 = inlined_call_operand.vmem [shape: bf16[16,128], index: 2, kind: input, shape index: {}]
  %s3 = inlined_call_operand.vmem [shape: bf16[16,128], index: 3, kind: input, shape index: {}]
  %s4 = inlined_call_operand.vmem [shape: f32[1,128], index: 4, kind: input, shape index: {}]
  %s5 = inlined_call_operand.vmem [shape: f32[1,128], index: 5, kind: input, shape index: {}]
  %s6 = inlined_call_operand.vmem [shape: bf16[32,128], index: 6, kind: input, shape index: {}]
  %s7 = inlined_call_operand.vmem [shape: bf16[32,128], index: 7, kind: input, shape index: {}]
  %s8 = inlined_call_operand.vmem [shape: bf16[8,8,32], index: 8, kind: output, shape index: {0}]
  %s9 = inlined_call_operand.vmem [shape: bf16[8,8,32], index: 9, kind: output, shape index: {1}]
  %10 = xla_tuple %s8, %s9
  %s11 = sld [smem:[#allocation0]]
  $region54: #{bilstm_softmax_forward.2} parent=0
    _
  %s13 = ssub.s32 1, %s11
  %s14 = scalar_select 0, %s13, %s11
  // Predicated region
  $region2: #{bilstm_softmax_forward.2} parent=0 // pred_check
    _
  $region3: #{bilstm_softmax_forward.2} parent=0 // pred_check_branch
    %16 = sbr.rel (0) target = $region5
  $region4: #{bilstm_softmax_forward.2} parent=0 // pred_region
    _
  $region5: #{bilstm_softmax_forward.2} parent=0 // pred_fallthru
    _
  // Predicated region
  $region6: #{bilstm_softmax_forward.2} parent=0 // pred_check
    _
  $region7: #{bilstm_softmax_forward.2} parent=0 // pred_check_branch
    %18 = sbr.rel (0) target = $region9
  $region8: #{bilstm_softmax_forward.2} parent=0 // pred_region
    %s19 = ssub.s32 0, 0
    %s20 = smul.u32 8, %s19
    %p21 = scmp.lt.s32.totalorder %s20, 7
    %s22 = scalar_select %p21, %s20, 7
    %s23 = smul.addr %s22, 4
    %s24 = scalar_lea.vmem %s1, %s23
    %s25 = ssub.s32 0, 0
    %s26 = smul.u32 8, %s25
  $region9: #{bilstm_softmax_forward.2} parent=0 // pred_fallthru
    _
  // Predicated region
  $region10: #{bilstm_softmax_forward.2} parent=0 // pred_check
    _
  $region11: #{bilstm_softmax_forward.2} parent=0 // pred_check_branch
    %28 = sbr.rel (0) target = $region13
  $region12: #{bilstm_softmax_forward.2} parent=0 // pred_region
    _
  $region13: #{bilstm_softmax_forward.2} parent=0 // pred_fallthru
    _
  // Predicated region
  $region14: #{bilstm_softmax_forward.2} parent=0 // pred_check
    _
  $region15: #{bilstm_softmax_forward.2} parent=0 // pred_check_branch
    %30 = sbr.rel (0) target = $region17
  $region16: #{bilstm_softmax_forward.2} parent=0 // pred_region
    _
  $region17: #{bilstm_softmax_forward.2} parent=0 // pred_fallthru
    _
  // Predicated region
  $region18: #{bilstm_softmax_forward.2} parent=0 // pred_check
    _
  $region19: #{bilstm_softmax_forward.2} parent=0 // pred_check_branch
    %32 = sbr.rel (0) target = $region21
  $region20: #{bilstm_softmax_forward.2} parent=0 // pred_region
    _
  $region21: #{bilstm_softmax_forward.2} parent=0 // pred_fallthru
    _
  // Predicated region
  $region22: #{bilstm_softmax_forward.2} parent=0 // pred_check
    _
  $region23: #{bilstm_softmax_forward.2} parent=0 // pred_check_branch
    %34 = sbr.rel (0) target = $region25
  $region24: #{bilstm_softmax_forward.2} parent=0 // pred_region
    _
  $region25: #{bilstm_softmax_forward.2} parent=0 // pred_fallthru
    _
  // Predicated region
  $region26: #{bilstm_softmax_forward.2} parent=0 // pred_check
    _
  $region27: #{bilstm_softmax_forward.2} parent=0 // pred_check_branch
    %36 = sbr.rel (0) target = $region29
  $region28: #{bilstm_softmax_forward.2} parent=0 // pred_region
    _
  $region29: #{bilstm_softmax_forward.2} parent=0 // pred_fallthru
    _
  // Predicated region
  $region30: #{bilstm_softmax_forward.2} parent=0 // pred_check
    _
  $region31: #{bilstm_softmax_forward.2} parent=0 // pred_check_branch
    %38 = sbr.rel (0) target = $region33
  $region32: #{bilstm_softmax_forward.2} parent=0 // pred_region
    _
  $region33: #{bilstm_softmax_forward.2} parent=0 // pred_fallthru
    _
  %s39 = ssub.s32 0, 0
  %s40 = smul.u32 8, %s39
  %p41 = scmp.lt.s32.totalorder %s40, 7
  %s42 = scalar_select %p41, %s40, 7
  %s43 = smul.addr %s42, 4
  %s44 = scalar_lea.vmem %s1, %s43
  %s45 = ssub.s32 0, 0
  %s46 = smul.u32 8, %s45
  %p47 = scmp.lt.s32.totalorder %s46, 7
  %s48 = scalar_select %p47, %s46, 7
  %s49 = smul.addr %s48, 4
  %s50 = scalar_lea.vmem %s9, %s49
  %s51 = ssub.s32 0, 0
  %s52 = smul.u32 8, %s51
  %p53 = scmp.lt.s32.totalorder %s52, 7
  %s54 = scalar_select %p53, %s52, 7
  %s55 = smul.addr %s54, 4
  %s56 = scalar_lea.vmem %s1, %s55
  %s57 = ssub.s32 0, 0
  %s58 = smul.u32 8, %s57
  %s59 = ssub.s32 0, 0
  %s60 = smul.u32 8, %s59
  %p61 = scmp.lt.s32.totalorder %s60, 7
  %s62 = scalar_select %p61, %s60, 7
  %s63 = smul.addr %s62, 4
  %s64 = scalar_lea.vmem %s9, %s63
  %s65 = ssub.s32 0, 0
  %s66 = smul.u32 8, %s65
  %p68 = scmp.eq.s32.totalorder 0, 0
  // Predicated region
  $region34: #{bilstm_softmax_forward.2} parent=0 // pred_check
    %p69 = pneg %p68
  $region35: #{bilstm_softmax_forward.2} parent=0 // pred_check_branch
    %71 = sbr.rel (%p69) target = $region37
  $region36: #{bilstm_softmax_forward.2} parent=0 // pred_region
    %vm72 = vcmask 261120
    %73 = vst.msk [vmem:[#allocation4] sm:$0xff] %vm72, 0.0
    %74 = vst.msk [vmem:[#allocation5] sm:$0xff] %vm72, 0.0
    %75 = vst.msk [vmem:[#allocation6] sm:$0xff] %vm72, 0.0
    %76 = vst.msk [vmem:[#allocation7] sm:$0xff] %vm72, 0.0
  $region37: #{bilstm_softmax_forward.2} parent=0 // pred_fallthru
    _
  %v77 = vld [vmem:[%s0] sm:$0xf]
  %v78 = vld [vmem:[%s0 + $0x4] sm:$0xf]
  %v79 = vld [vmem:[%s0 + $0x8] sm:$0xf]
  %v80 = vld [vmem:[%s0 + $0xc] sm:$0xf]
  %v81 = vld [vmem:[%s0 + $0x10] sm:$0xf]
  %v82 = vld [vmem:[%s0 + $0x14] sm:$0xf]
  %v83 = vld [vmem:[%s0 + $0x18] sm:$0xf]
  %v84 = vld [vmem:[%s0 + $0x1c] sm:$0xf]
  %v85 = vld [vmem:[%s2] sm:$0xf]
  %v86 = vld [vmem:[%s2 + $0x4] sm:$0xf]
  %v87 = vld [vmem:[%s4] sm:$0x1]
  %v89 = vlaneseq
  %v90 = vshrl.u32 %v89, 7
  %v91 = vsub.s32 0, %v90
  %v92 = vrot.slane %v87, %v91
  %v102 = vunpack.c.l.b16 %v77
  %v103 = vunpack.c.l.b16 %v78
  %v104 = vunpack.c.l.b16 %v79
  %v105 = vunpack.c.l.b16 %v80
  %v106 = vunpack.c.l.b16 %v81
  %v107 = vunpack.c.l.b16 %v82
  %v108 = vunpack.c.l.b16 %v83
  %v109 = vunpack.c.l.b16 %v84
  %v110 = vpack.c.b16 %v103, %v102
  %v111 = vpack.c.b16 %v105, %v104
  %v112 = vpack.c.b16 %v107, %v106
  %v113 = vpack.c.b16 %v109, %v108
  %v116 = vunpack.c.l.b16 %v85
  %v117 = vunpack.c.l.b16 %v86
  %v118 = vpack.c.b16 %v117, %v116
  %vm120 = vcmask 130048
  %v122 = vsel %vm120, %v110, 0
  %v125 = vsel %vm120, %v111, 0
  %v128 = vsel %vm120, %v112, 0
  %v131 = vsel %vm120, %v113, 0
  %133 = vmatprep.subr.bf16.mxu0 0
  %134 = vmatpush1.bf16.msra.mxu0 %v118
  %135 = vmatprep.subr.bf16.mxu0 0
  %136 = vmatpush1.bf16.msra.mxu0 0
  %137 = vmatprep.subr.bf16.mxu0 0
  %138 = vmatpush1.bf16.msra.mxu0 0
  %139 = vmatprep.subr.bf16.mxu0 0
  %140 = vmatpush1.bf16.msra.mxu0 0
  %141 = vmatprep.subr.bf16.mxu0 0
  %142 = vmatpush1.bf16.msra.mxu0 0
  %143 = vmatprep.subr.bf16.mxu0 0
  %144 = vmatpush1.bf16.msra.mxu0 0
  %145 = vmatprep.subr.bf16.mxu0 0
  %146 = vmatpush1.bf16.msra.mxu0 0
  %147 = vmatprep.subr.bf16.mxu0 0
  %148 = vmatpush1.bf16.msra.mxu0 0
  %149 = vmatprep.subr.bf16.mxu0 0
  %150 = vmatpush1.bf16.msra.mxu0 0
  %151 = vmatprep.subr.bf16.mxu0 0
  %152 = vmatpush1.bf16.msra.mxu0 0
  %153 = vmatprep.subr.bf16.mxu0 0
  %154 = vmatpush1.bf16.msra.mxu0 0
  %155 = vmatprep.subr.bf16.mxu0 0
  %156 = vmatpush1.bf16.msra.mxu0 0
  %157 = vmatprep.subr.bf16.mxu0 0
  %158 = vmatpush1.bf16.msra.mxu0 0
  %159 = vmatprep.subr.bf16.mxu0 0
  %160 = vmatpush1.bf16.msra.mxu0 0
  %161 = vmatprep.subr.bf16.mxu0 0
  %162 = vmatpush1.bf16.msra.mxu0 0
  %163 = vmatprep.subr.bf16.mxu0 0
  %164 = vmatpush1.bf16.msra.mxu0 0
  %165 = vmatprep.mubr.bf16.mxu0 0
  %166 = vmatmul.mubr.bf16.gmra.mrb[0].mxu0 %v122
  %v167 = vpop.f32.mrb[0].mxu0
  %v168 = vadd.f32 %v92, %v167
  %v169 = vpop.f32.mrb[0].mxu0
  %v170 = vpop.f32.mrb[0].mxu0
  %v171 = vadd.f32 %v92, %v170
  %v172 = vpop.f32.mrb[0].mxu0
  %173 = vmatprep.mubr.bf16.mxu0 0
  %174 = vmatmul.mubr.bf16.gmra.mrb[0].mxu0 %v125
  %v175 = vpop.f32.mrb[0].mxu0
  %v176 = vadd.f32 %v92, %v175
  %v177 = vpop.f32.mrb[0].mxu0
  %v178 = vpop.f32.mrb[0].mxu0
  %v179 = vadd.f32 %v92, %v178
  %v180 = vpop.f32.mrb[0].mxu0
  %181 = vmatprep.mubr.bf16.mxu0 0
  %182 = vmatmul.mubr.bf16.gmra.mrb[0].mxu0 %v128
  %v183 = vpop.f32.mrb[0].mxu0
  %v184 = vadd.f32 %v92, %v183
  %v185 = vpop.f32.mrb[0].mxu0
  %v186 = vpop.f32.mrb[0].mxu0
  %v187 = vadd.f32 %v92, %v186
  %v188 = vpop.f32.mrb[0].mxu0
  %189 = vmatprep.mubr.bf16.mxu0 0
  %190 = vmatmul.mubr.bf16.gmra.mrb[0].mxu0 %v131
  %v191 = vpop.f32.mrb[0].mxu0
  %v192 = vadd.f32 %v92, %v191
  %v193 = vpop.f32.mrb[0].mxu0
  %v194 = vpop.f32.mrb[0].mxu0
  %v195 = vadd.f32 %v92, %v194
  %v196 = vpop.f32.mrb[0].mxu0
  %197 = vdwg.mxu0
  %198 = vst [vmem:[#allocation2] sm:$0xff] %v168
  %199 = vst [vmem:[#allocation2 + $0x8] sm:$0xff] %v171
  %200 = vst [vmem:[#allocation2 + $0x10] sm:$0xff] %v176
  %201 = vst [vmem:[#allocation2 + $0x18] sm:$0xff] %v179
  %202 = vst [vmem:[#allocation2 + $0x20] sm:$0xff] %v184
  %203 = vst [vmem:[#allocation2 + $0x28] sm:$0xff] %v187
  %204 = vst [vmem:[#allocation2 + $0x30] sm:$0xff] %v192
  %205 = vst [vmem:[#allocation2 + $0x38] sm:$0xff] %v195
  %v206 = vld [vmem:[%s56] sm:$0xf]
  %v207 = vld [vmem:[%s56 + $0x4] sm:$0xf]
  %v208 = vld [vmem:[%s56 + $0x8] sm:$0xf]
  %v209 = vld [vmem:[%s56 + $0xc] sm:$0xf]
  %v210 = vld [vmem:[%s56 + $0x10] sm:$0xf]
  %v211 = vld [vmem:[%s56 + $0x14] sm:$0xf]
  %v212 = vld [vmem:[%s56 + $0x18] sm:$0xf]
  %v213 = vld [vmem:[%s56 + $0x1c] sm:$0xf]
  %v214 = vld [vmem:[%s3] sm:$0xf]
  %v215 = vld [vmem:[%s3 + $0x4] sm:$0xf]
  %v216 = vld [vmem:[%s5] sm:$0x1]
  %v218 = vlaneseq
  %v219 = vshrl.u32 %v218, 7
  %v220 = vsub.s32 0, %v219
  %v221 = vrot.slane %v216, %v220
  %v231 = vunpack.c.l.b16 %v206
  %v232 = vunpack.c.l.b16 %v207
  %v233 = vunpack.c.l.b16 %v208
  %v234 = vunpack.c.l.b16 %v209
  %v235 = vunpack.c.l.b16 %v210
  %v236 = vunpack.c.l.b16 %v211
  %v237 = vunpack.c.l.b16 %v212
  %v238 = vunpack.c.l.b16 %v213
  %v239 = vpack.c.b16 %v232, %v231
  %v240 = vpack.c.b16 %v234, %v233
  %v241 = vpack.c.b16 %v236, %v235
  %v242 = vpack.c.b16 %v238, %v237
  %v245 = vunpack.c.l.b16 %v214
  %v246 = vunpack.c.l.b16 %v215
  %v247 = vpack.c.b16 %v246, %v245
  %v250 = vsel %vm120, %v239, 0
  %v253 = vsel %vm120, %v240, 0
  %v256 = vsel %vm120, %v241, 0
  %v259 = vsel %vm120, %v242, 0
  %261 = vmatprep.subr.bf16.mxu0 0
  %262 = vmatpush1.bf16.msra.mxu0 %v247
  %263 = vmatprep.subr.bf16.mxu0 0
  %264 = vmatpush1.bf16.msra.mxu0 0
  %265 = vmatprep.subr.bf16.mxu0 0
  %266 = vmatpush1.bf16.msra.mxu0 0
  %267 = vmatprep.subr.bf16.mxu0 0
  %268 = vmatpush1.bf16.msra.mxu0 0
  %269 = vmatprep.subr.bf16.mxu0 0
  %270 = vmatpush1.bf16.msra.mxu0 0
  %271 = vmatprep.subr.bf16.mxu0 0
  %272 = vmatpush1.bf16.msra.mxu0 0
  %273 = vmatprep.subr.bf16.mxu0 0
  %274 = vmatpush1.bf16.msra.mxu0 0
  %275 = vmatprep.subr.bf16.mxu0 0
  %276 = vmatpush1.bf16.msra.mxu0 0
  %277 = vmatprep.subr.bf16.mxu0 0
  %278 = vmatpush1.bf16.msra.mxu0 0
  %279 = vmatprep.subr.bf16.mxu0 0
  %280 = vmatpush1.bf16.msra.mxu0 0
  %281 = vmatprep.subr.bf16.mxu0 0
  %282 = vmatpush1.bf16.msra.mxu0 0
  %283 = vmatprep.subr.bf16.mxu0 0
  %284 = vmatpush1.bf16.msra.mxu0 0
  %285 = vmatprep.subr.bf16.mxu0 0
  %286 = vmatpush1.bf16.msra.mxu0 0
  %287 = vmatprep.subr.bf16.mxu0 0
  %288 = vmatpush1.bf16.msra.mxu0 0
  %289 = vmatprep.subr.bf16.mxu0 0
  %290 = vmatpush1.bf16.msra.mxu0 0
  %291 = vmatprep.subr.bf16.mxu0 0
  %292 = vmatpush1.bf16.msra.mxu0 0
  %293 = vmatprep.mubr.bf16.mxu0 0
  %294 = vmatmul.mubr.bf16.gmra.mrb[0].mxu0 %v250
  %v295 = vpop.f32.mrb[0].mxu0
  %v296 = vadd.f32 %v221, %v295
  %v297 = vpop.f32.mrb[0].mxu0
  %v298 = vpop.f32.mrb[0].mxu0
  %v299 = vadd.f32 %v221, %v298
  %v300 = vpop.f32.mrb[0].mxu0
  %301 = vmatprep.mubr.bf16.mxu0 0
  %302 = vmatmul.mubr.bf16.gmra.mrb[0].mxu0 %v253
  %v303 = vpop.f32.mrb[0].mxu0
  %v304 = vadd.f32 %v221, %v303
  %v305 = vpop.f32.mrb[0].mxu0
  %v306 = vpop.f32.mrb[0].mxu0
  %v307 = vadd.f32 %v221, %v306
  %v308 = vpop.f32.mrb[0].mxu0
  %309 = vmatprep.mubr.bf16.mxu0 0
  %310 = vmatmul.mubr.bf16.gmra.mrb[0].mxu0 %v256
  %v311 = vpop.f32.mrb[0].mxu0
  %v312 = vadd.f32 %v221, %v311
  %v313 = vpop.f32.mrb[0].mxu0
  %v314 = vpop.f32.mrb[0].mxu0
  %v315 = vadd.f32 %v221, %v314
  %v316 = vpop.f32.mrb[0].mxu0
  %317 = vmatprep.mubr.bf16.mxu0 0
  %318 = vmatmul.mubr.bf16.gmra.mrb[0].mxu0 %v259
  %v319 = vpop.f32.mrb[0].mxu0
  %v320 = vadd.f32 %v221, %v319
  %v321 = vpop.f32.mrb[0].mxu0
  %v322 = vpop.f32.mrb[0].mxu0
  %v323 = vadd.f32 %v221, %v322
  %v324 = vpop.f32.mrb[0].mxu0
  %325 = vdwg.mxu0
  %326 = vst [vmem:[#allocation3] sm:$0xff] %v296
  %327 = vst [vmem:[#allocation3 + $0x8] sm:$0xff] %v299
  %328 = vst [vmem:[#allocation3 + $0x10] sm:$0xff] %v304
  %329 = vst [vmem:[#allocation3 + $0x18] sm:$0xff] %v307
  %330 = vst [vmem:[#allocation3 + $0x20] sm:$0xff] %v312
  %331 = vst [vmem:[#allocation3 + $0x28] sm:$0xff] %v315
  %332 = vst [vmem:[#allocation3 + $0x30] sm:$0xff] %v320
  %333 = vst [vmem:[#allocation3 + $0x38] sm:$0xff] %v323
  %v334 = vld [vmem:[%s6] sm:$0xf]
  %v335 = vld [vmem:[%s6 + $0x4] sm:$0xf]
  %v336 = vld [vmem:[%s6 + $0x8] sm:$0xf]
  %v337 = vld [vmem:[%s6 + $0xc] sm:$0xf]
  %v338 = vld [vmem:[%s7] sm:$0xf]
  %v339 = vld [vmem:[%s7 + $0x4] sm:$0xf]
  %v340 = vld [vmem:[%s7 + $0x8] sm:$0xf]
  %v341 = vld [vmem:[%s7 + $0xc] sm:$0xf]
  %v342 = vld [vmem:[#allocation4] sm:$0xff]
  %v343 = vld [vmem:[#allocation5] sm:$0xff]
  %v344 = vld [vmem:[#allocation6] sm:$0xff]
  %v345 = vld [vmem:[#allocation7] sm:$0xff]
  %v346 = vld [vmem:[#allocation2] sm:$0xff]
  %v347 = vpack.c.bf16 %v342, %v342
  %v352 = vunpack.c.l.b16 %v334
  %v353 = vunpack.c.l.b16 %v335
  %v354 = vunpack.c.l.b16 %v336
  %v355 = vunpack.c.l.b16 %v337
  %v356 = vpack.c.b16 %v353, %v352
  %v357 = vpack.c.b16 %v355, %v354
  %vm360 = vcmask 261120
  %v362 = vsel %vm360, %v347, 0
  %364 = vmatprep.subr.bf16.mxu0 0
  %365 = vmatpush1.bf16.msra.mxu0 %v356
  %366 = vmatprep.subr.bf16.mxu0 0
  %367 = vmatpush1.bf16.msra.mxu0 %v357
  %368 = vmatprep.subr.bf16.mxu0 0
  %369 = vmatpush1.bf16.msra.mxu0 0
  %370 = vmatprep.subr.bf16.mxu0 0
  %371 = vmatpush1.bf16.msra.mxu0 0
  %372 = vmatprep.subr.bf16.mxu0 0
  %373 = vmatpush1.bf16.msra.mxu0 0
  %374 = vmatprep.subr.bf16.mxu0 0
  %375 = vmatpush1.bf16.msra.mxu0 0
  %376 = vmatprep.subr.bf16.mxu0 0
  %377 = vmatpush1.bf16.msra.mxu0 0
  %378 = vmatprep.subr.bf16.mxu0 0
  %379 = vmatpush1.bf16.msra.mxu0 0
  %380 = vmatprep.subr.bf16.mxu0 0
  %381 = vmatpush1.bf16.msra.mxu0 0
  %382 = vmatprep.subr.bf16.mxu0 0
  %383 = vmatpush1.bf16.msra.mxu0 0
  %384 = vmatprep.subr.bf16.mxu0 0
  %385 = vmatpush1.bf16.msra.mxu0 0
  %386 = vmatprep.subr.bf16.mxu0 0
  %387 = vmatpush1.bf16.msra.mxu0 0
  %388 = vmatprep.subr.bf16.mxu0 0
  %389 = vmatpush1.bf16.msra.mxu0 0
  %390 = vmatprep.subr.bf16.mxu0 0
  %391 = vmatpush1.bf16.msra.mxu0 0
  %392 = vmatprep.subr.bf16.mxu0 0
  %393 = vmatpush1.bf16.msra.mxu0 0
  %394 = vmatprep.subr.bf16.mxu0 0
  %395 = vmatpush1.bf16.msra.mxu0 0
  %396 = vmatprep.mubr.bf16.mxu0 0
  %397 = vmatmul.mubr.bf16.gmra.mrb[0].mxu0 %v362
  %v398 = vpop.f32.mrb[0].mxu0
  %v399 = vadd.f32 0.0, %v398
  %v400 = vpop.f32.mrb[0].mxu0
  %v401 = vpop.f32.mrb[0].mxu0
  %v402 = vpop.f32.mrb[0].mxu0
  %403 = vdwg.mxu0
  %v404 = vadd.f32 %v346, %v399
  %v405 = vxor.u32 %v404, 2147483648
  %v406 = vmul.f32 %v405, 1.442695
  %v407 = vpow.pop %v406
  %v408 = vadd.f32 %v407, 1.0
  %v409 = vrcp.pop %v408
  %v410 = vmul.f32 1.0, %v409
  %v411 = vtanh.pop %v404
  %413 = vrot.lane.b32.xlu0 %v343, 32
  %v414 = vpop.permute.xlu0 %413
  %v416 = vmul.f32 %v410, %v414
  %418 = vrot.lane.b32.xlu0 %v411, 64
  %v419 = vpop.permute.xlu0 %418
  %v421 = vmul.f32 %v410, %v419
  %423 = vrot.lane.b32.xlu0 %v421, 32
  %v424 = vpop.permute.xlu0 %423
  %v426 = vadd.f32 %v416, %v424
  %v427 = vtanh.pop %v426
  %429 = vrot.lane.b32.xlu0 %v427, 64
  %v430 = vpop.permute.xlu0 %429
  %v432 = vmul.f32 %v410, %v430
  %s433 = scalar_lea.vmem [#allocation3], 56
  %v434 = vld [vmem:[%s433] sm:$0xff]
  %v435 = vpack.c.bf16 %v344, %v344
  %v440 = vunpack.c.l.b16 %v338
  %v441 = vunpack.c.l.b16 %v339
  %v442 = vunpack.c.l.b16 %v340
  %v443 = vunpack.c.l.b16 %v341
  %v444 = vpack.c.b16 %v441, %v440
  %v445 = vpack.c.b16 %v443, %v442
  %v449 = vsel %vm360, %v435, 0
  %451 = vmatprep.subr.bf16.mxu0 0
  %452 = vmatpush1.bf16.msra.mxu0 %v444
  %453 = vmatprep.subr.bf16.mxu0 0
  %454 = vmatpush1.bf16.msra.mxu0 %v445
  %455 = vmatprep.subr.bf16.mxu0 0
  %456 = vmatpush1.bf16.msra.mxu0 0
  %457 = vmatprep.subr.bf16.mxu0 0
  %458 = vmatpush1.bf16.msra.mxu0 0
  %459 = vmatprep.subr.bf16.mxu0 0
  %460 = vmatpush1.bf16.msra.mxu0 0
  %461 = vmatprep.subr.bf16.mxu0 0
  %462 = vmatpush1.bf16.msra.mxu0 0
  %463 = vmatprep.subr.bf16.mxu0 0
  %464 = vmatpush1.bf16.msra.mxu0 0
  %465 = vmatprep.subr.bf16.mxu0 0
  %466 = vmatpush1.bf16.msra.mxu0 0
  %467 = vmatprep.subr.bf16.mxu0 0
  %468 = vmatpush1.bf16.msra.mxu0 0
  %469 = vmatprep.subr.bf16.mxu0 0
  %470 = vmatpush1.bf16.msra.mxu0 0
  %471 = vmatprep.subr.bf16.mxu0 0
  %472 = vmatpush1.bf16.msra.mxu0 0
  %473 = vmatprep.subr.bf16.mxu0 0
  %474 = vmatpush1.bf16.msra.mxu0 0
  %475 = vmatprep.subr.bf16.mxu0 0
  %476 = vmatpush1.bf16.msra.mxu0 0
  %477 = vmatprep.subr.bf16.mxu0 0
  %478 = vmatpush1.bf16.msra.mxu0 0
  %479 = vmatprep.subr.bf16.mxu0 0
  %480 = vmatpush1.bf16.msra.mxu0 0
  %481 = vmatprep.subr.bf16.mxu0 0
  %482 = vmatpush1.bf16.msra.mxu0 0
  %483 = vmatprep.mubr.bf16.mxu0 0
  %484 = vmatmul.mubr.bf16.gmra.mrb[0].mxu0 %v449
  %v485 = vpop.f32.mrb[0].mxu0
  %v486 = vadd.f32 0.0, %v485
  %v487 = vpop.f32.mrb[0].mxu0
  %v488 = vpop.f32.mrb[0].mxu0
  %v489 = vpop.f32.mrb[0].mxu0
  %490 = vdwg.mxu0
  %v491 = vadd.f32 %v434, %v486
  %v492 = vxor.u32 %v491, 2147483648
  %v493 = vmul.f32 %v492, 1.442695
  %v494 = vpow.pop %v493
  %v495 = vadd.f32 %v494, 1.0
  %v496 = vrcp.pop %v495
  %v497 = vmul.f32 1.0, %v496
  %v498 = vtanh.pop %v491
  %500 = vrot.lane.b32.xlu0 %v345, 32
  %v501 = vpop.permute.xlu0 %500
  %v503 = vmul.f32 %v497, %v501
  %505 = vrot.lane.b32.xlu0 %v498, 64
  %v506 = vpop.permute.xlu0 %505
  %v508 = vmul.f32 %v497, %v506
  %510 = vrot.lane.b32.xlu0 %v508, 32
  %v511 = vpop.permute.xlu0 %510
  %v513 = vadd.f32 %v503, %v511
  %v514 = vtanh.pop %v513
  %516 = vrot.lane.b32.xlu0 %v514, 64
  %v517 = vpop.permute.xlu0 %516
  %v519 = vmul.f32 %v497, %v517
  %v520 = vpack.c.bf16 %v432, %v432
  %v522 = vunpack.c.l.b16 %v520
  %v523 = vpack.c.b16 %v522, %v522
  %524 = vrot.lane.b32.xlu0 %v523, 32
  %v525 = vpop.permute.xlu0 %524
  %vm527 = vcmask 257024
  %528 = vst.msk [vmem:[%s8] sm:$0xf] %vm527, %v525
  %v529 = vpack.c.bf16 %v519, %v519
  %v531 = vunpack.c.l.b16 %v529
  %v532 = vpack.c.b16 %v531, %v531
  %533 = vrot.lane.b32.xlu0 %v532, 32
  %v534 = vpop.permute.xlu0 %533
  %s536 = scalar_lea.vmem %s64, 28
  %537 = vst.msk [vmem:[%s536] sm:$0xf] %vm527, %v534
  %s538 = scalar_lea.vmem [#allocation2], 8
  %v539 = vld [vmem:[%s538] sm:$0xff]
  %540 = vrot.lane.b32.xlu0 %v520, 32
  %v541 = vpop.permute.xlu0 %540
  %v543 = vsel %vm360, %v541, 0
  %545 = vmatprep.subr.bf16.mxu0 0
  %546 = vmatpush1.bf16.msra.mxu0 %v356
  %547 = vmatprep.subr.bf16.mxu0 0
  %548 = vmatpush1.bf16.msra.mxu0 %v357
  %549 = vmatprep.subr.bf16.mxu0 0
  %550 = vmatpush1.bf16.msra.mxu0 0
  %551 = vmatprep.subr.bf16.mxu0 0
  %552 = vmatpush1.bf16.msra.mxu0 0
  %553 = vmatprep.subr.bf16.mxu0 0
  %554 = vmatpush1.bf16.msra.mxu0 0
  %555 = vmatprep.subr.bf16.mxu0 0
  %556 = vmatpush1.bf16.msra.mxu0 0
  %557 = vmatprep.subr.bf16.mxu0 0
  %558 = vmatpush1.bf16.msra.mxu0 0
  %559 = vmatprep.subr.bf16.mxu0 0
  %560 = vmatpush1.bf16.msra.mxu0 0
  %561 = vmatprep.subr.bf16.mxu0 0
  %562 = vmatpush1.bf16.msra.mxu0 0
  %563 = vmatprep.subr.bf16.mxu0 0
  %564 = vmatpush1.bf16.msra.mxu0 0
  %565 = vmatprep.subr.bf16.mxu0 0
  %566 = vmatpush1.bf16.msra.mxu0 0
  %567 = vmatprep.subr.bf16.mxu0 0
  %568 = vmatpush1.bf16.msra.mxu0 0
  %569 = vmatprep.subr.bf16.mxu0 0
  %570 = vmatpush1.bf16.msra.mxu0 0
  %571 = vmatprep.subr.bf16.mxu0 0
  %572 = vmatpush1.bf16.msra.mxu0 0
  %573 = vmatprep.subr.bf16.mxu0 0
  %574 = vmatpush1.bf16.msra.mxu0 0
  %575 = vmatprep.subr.bf16.mxu0 0
  %576 = vmatpush1.bf16.msra.mxu0 0
  %577 = vmatprep.mubr.bf16.mxu0 0
  %578 = vmatmul.mubr.bf16.gmra.mrb[0].mxu0 %v543
  %v579 = vpop.f32.mrb[0].mxu0
  %v580 = vadd.f32 0.0, %v579
  %v581 = vpop.f32.mrb[0].mxu0
  %v582 = vpop.f32.mrb[0].mxu0
  %v583 = vpop.f32.mrb[0].mxu0
  %584 = vdwg.mxu0
  %v585 = vadd.f32 %v539, %v580
  %v586 = vxor.u32 %v585, 2147483648
  %v587 = vmul.f32 %v586, 1.442695
  %v588 = vpow.pop %v587
  %v589 = vadd.f32 %v588, 1.0
  %v590 = vrcp.pop %v589
  %v591 = vmul.f32 1.0, %v590
  %v592 = vtanh.pop %v585
  %v593 = vmul.f32 %v591, %v426
  %595 = vrot.lane.b32.xlu0 %v592, 64
  %v596 = vpop.permute.xlu0 %595
  %v598 = vmul.f32 %v591, %v596
  %600 = vrot.lane.b32.xlu0 %v598, 32
  %v601 = vpop.permute.xlu0 %600
  %v603 = vadd.f32 %v593, %v601
  %v604 = vtanh.pop %v603
  %606 = vrot.lane.b32.xlu0 %v604, 64
  %v607 = vpop.permute.xlu0 %606
  %v609 = vmul.f32 %v591, %v607
  %s610 = scalar_lea.vmem [#allocation3], 48
  %v611 = vld [vmem:[%s610] sm:$0xff]
  %612 = vrot.lane.b32.xlu0 %v529, 32
  %v613 = vpop.permute.xlu0 %612
  %v615 = vsel %vm360, %v613, 0
  %617 = vmatprep.subr.bf16.mxu0 0
  %618 = vmatpush1.bf16.msra.mxu0 %v444
  %619 = vmatprep.subr.bf16.mxu0 0
  %620 = vmatpush1.bf16.msra.mxu0 %v445
  %621 = vmatprep.subr.bf16.mxu0 0
  %622 = vmatpush1.bf16.msra.mxu0 0
  %623 = vmatprep.subr.bf16.mxu0 0
  %624 = vmatpush1.bf16.msra.mxu0 0
  %625 = vmatprep.subr.bf16.mxu0 0
  %626 = vmatpush1.bf16.msra.mxu0 0
  %627 = vmatprep.subr.bf16.mxu0 0
  %628 = vmatpush1.bf16.msra.mxu0 0
  %629 = vmatprep.subr.bf16.mxu0 0
  %630 = vmatpush1.bf16.msra.mxu0 0
  %631 = vmatprep.subr.bf16.mxu0 0
  %632 = vmatpush1.bf16.msra.mxu0 0
  %633 = vmatprep.subr.bf16.mxu0 0
  %634 = vmatpush1.bf16.msra.mxu0 0
  %635 = vmatprep.subr.bf16.mxu0 0
  %636 = vmatpush1.bf16.msra.mxu0 0
  %637 = vmatprep.subr.bf16.mxu0 0
  %638 = vmatpush1.bf16.msra.mxu0 0
  %639 = vmatprep.subr.bf16.mxu0 0
  %640 = vmatpush1.bf16.msra.mxu0 0
  %641 = vmatprep.subr.bf16.mxu0 0
  %642 = vmatpush1.bf16.msra.mxu0 0
  %643 = vmatprep.subr.bf16.mxu0 0
  %644 = vmatpush1.bf16.msra.mxu0 0
  %645 = vmatprep.subr.bf16.mxu0 0
  %646 = vmatpush1.bf16.msra.mxu0 0
  %647 = vmatprep.subr.bf16.mxu0 0
  %648 = vmatpush1.bf16.msra.mxu0 0
  %649 = vmatprep.mubr.bf16.mxu0 0
  %650 = vmatmul.mubr.bf16.gmra.mrb[0].mxu0 %v615
  %v651 = vpop.f32.mrb[0].mxu0
  %v652 = vadd.f32 0.0, %v651
  %v653 = vpop.f32.mrb[0].mxu0
  %v654 = vpop.f32.mrb[0].mxu0
  %v655 = vpop.f32.mrb[0].mxu0
  %656 = vdwg.mxu0
  %v657 = vadd.f32 %v611, %v652
  %v658 = vxor.u32 %v657, 2147483648
  %v659 = vmul.f32 %v658, 1.442695
  %v660 = vpow.pop %v659
  %v661 = vadd.f32 %v660, 1.0
  %v662 = vrcp.pop %v661
  %v663 = vmul.f32 1.0, %v662
  %v664 = vtanh.pop %v657
  %v665 = vmul.f32 %v663, %v513
  %667 = vrot.lane.b32.xlu0 %v664, 64
  %v668 = vpop.permute.xlu0 %667
  %v670 = vmul.f32 %v663, %v668
  %672 = vrot.lane.b32.xlu0 %v670, 32
  %v673 = vpop.permute.xlu0 %672
  %v675 = vadd.f32 %v665, %v673
  %v676 = vtanh.pop %v675
  %678 = vrot.lane.b32.xlu0 %v676, 64
  %v679 = vpop.permute.xlu0 %678
  %v681 = vmul.f32 %v663, %v679
  %v682 = vpack.c.bf16 %v609, %v609
  %v684 = vunpack.c.l.b16 %v682
  %v685 = vpack.c.b16 %v684, %v684
  %686 = vrot.lane.b32.xlu0 %v685, 32
  %v687 = vpop.permute.xlu0 %686
  %s689 = scalar_lea.vmem %s8, 4
  %690 = vst.msk [vmem:[%s689] sm:$0xf] %vm527, %v687
  %v691 = vpack.c.bf16 %v681, %v681
  %v693 = vunpack.c.l.b16 %v691
  %v694 = vpack.c.b16 %v693, %v693
  %695 = vrot.lane.b32.xlu0 %v694, 32
  %v696 = vpop.permute.xlu0 %695
  %s698 = scalar_lea.vmem %s64, 24
  %699 = vst.msk [vmem:[%s698] sm:$0xf] %vm527, %v696
  %s700 = scalar_lea.vmem [#allocation2], 16
  %v701 = vld [vmem:[%s700] sm:$0xff]
  %702 = vrot.lane.b32.xlu0 %v682, 32
  %v703 = vpop.permute.xlu0 %702
  %v705 = vsel %vm360, %v703, 0
  %707 = vmatprep.subr.bf16.mxu0 0
  %708 = vmatpush1.bf16.msra.mxu0 %v356
  %709 = vmatprep.subr.bf16.mxu0 0
  %710 = vmatpush1.bf16.msra.mxu0 %v357
  %711 = vmatprep.subr.bf16.mxu0 0
  %712 = vmatpush1.bf16.msra.mxu0 0
  %713 = vmatprep.subr.bf16.mxu0 0
  %714 = vmatpush1.bf16.msra.mxu0 0
  %715 = vmatprep.subr.bf16.mxu0 0
  %716 = vmatpush1.bf16.msra.mxu0 0
  %717 = vmatprep.subr.bf16.mxu0 0
  %718 = vmatpush1.bf16.msra.mxu0 0
  %719 = vmatprep.subr.bf16.mxu0 0
  %720 = vmatpush1.bf16.msra.mxu0 0
  %721 = vmatprep.subr.bf16.mxu0 0
  %722 = vmatpush1.bf16.msra.mxu0 0
  %723 = vmatprep.subr.bf16.mxu0 0
  %724 = vmatpush1.bf16.msra.mxu0 0
  %725 = vmatprep.subr.bf16.mxu0 0
  %726 = vmatpush1.bf16.msra.mxu0 0
  %727 = vmatprep.subr.bf16.mxu0 0
  %728 = vmatpush1.bf16.msra.mxu0 0
  %729 = vmatprep.subr.bf16.mxu0 0
  %730 = vmatpush1.bf16.msra.mxu0 0
  %731 = vmatprep.subr.bf16.mxu0 0
  %732 = vmatpush1.bf16.msra.mxu0 0
  %733 = vmatprep.subr.bf16.mxu0 0
  %734 = vmatpush1.bf16.msra.mxu0 0
  %735 = vmatprep.subr.bf16.mxu0 0
  %736 = vmatpush1.bf16.msra.mxu0 0
  %737 = vmatprep.subr.bf16.mxu0 0
  %738 = vmatpush1.bf16.msra.mxu0 0
  %739 = vmatprep.mubr.bf16.mxu0 0
  %740 = vmatmul.mubr.bf16.gmra.mrb[0].mxu0 %v705
  %v741 = vpop.f32.mrb[0].mxu0
  %v742 = vadd.f32 0.0, %v741
  %v743 = vpop.f32.mrb[0].mxu0
  %v744 = vpop.f32.mrb[0].mxu0
  %v745 = vpop.f32.mrb[0].mxu0
  %746 = vdwg.mxu0
  %v747 = vadd.f32 %v701, %v742
  %v748 = vxor.u32 %v747, 2147483648
  %v749 = vmul.f32 %v748, 1.442695
  %v750 = vpow.pop %v749
  %v751 = vadd.f32 %v750, 1.0
  %v752 = vrcp.pop %v751
  %v753 = vmul.f32 1.0, %v752
  %v754 = vtanh.pop %v747
  %v755 = vmul.f32 %v753, %v603
  %757 = vrot.lane.b32.xlu0 %v754, 64
  %v758 = vpop.permute.xlu0 %757
  %v760 = vmul.f32 %v753, %v758
  %762 = vrot.lane.b32.xlu0 %v760, 32
  %v763 = vpop.permute.xlu0 %762
  %v765 = vadd.f32 %v755, %v763
  %v766 = vtanh.pop %v765
  %768 = vrot.lane.b32.xlu0 %v766, 64
  %v769 = vpop.permute.xlu0 %768
  %v771 = vmul.f32 %v753, %v769
  %s772 = scalar_lea.vmem [#allocation3], 40
  %v773 = vld [vmem:[%s772] sm:$0xff]
  %774 = vrot.lane.b32.xlu0 %v691, 32
  %v775 = vpop.permute.xlu0 %774
  %v777 = vsel %vm360, %v775, 0
  %779 = vmatprep.subr.bf16.mxu0 0
  %780 = vmatpush1.bf16.msra.mxu0 %v444
  %781 = vmatprep.subr.bf16.mxu0 0
  %782 = vmatpush1.bf16.msra.mxu0 %v445
  %783 = vmatprep.subr.bf16.mxu0 0
  %784 = vmatpush1.bf16.msra.mxu0 0
  %785 = vmatprep.subr.bf16.mxu0 0
  %786 = vmatpush1.bf16.msra.mxu0 0
  %787 = vmatprep.subr.bf16.mxu0 0
  %788 = vmatpush1.bf16.msra.mxu0 0
  %789 = vmatprep.subr.bf16.mxu0 0
  %790 = vmatpush1.bf16.msra.mxu0 0
  %791 = vmatprep.subr.bf16.mxu0 0
  %792 = vmatpush1.bf16.msra.mxu0 0
  %793 = vmatprep.subr.bf16.mxu0 0
  %794 = vmatpush1.bf16.msra.mxu0 0
  %795 = vmatprep.subr.bf16.mxu0 0
  %796 = vmatpush1.bf16.msra.mxu0 0
  %797 = vmatprep.subr.bf16.mxu0 0
  %798 = vmatpush1.bf16.msra.mxu0 0
  %799 = vmatprep.subr.bf16.mxu0 0
  %800 = vmatpush1.bf16.msra.mxu0 0
  %801 = vmatprep.subr.bf16.mxu0 0
  %802 = vmatpush1.bf16.msra.mxu0 0
  %803 = vmatprep.subr.bf16.mxu0 0
  %804 = vmatpush1.bf16.msra.mxu0 0
  %805 = vmatprep.subr.bf16.mxu0 0
  %806 = vmatpush1.bf16.msra.mxu0 0
  %807 = vmatprep.subr.bf16.mxu0 0
  %808 = vmatpush1.bf16.msra.mxu0 0
  %809 = vmatprep.subr.bf16.mxu0 0
  %810 = vmatpush1.bf16.msra.mxu0 0
  %811 = vmatprep.mubr.bf16.mxu0 0
  %812 = vmatmul.mubr.bf16.gmra.mrb[0].mxu0 %v777
  %v813 = vpop.f32.mrb[0].mxu0
  %v814 = vadd.f32 0.0, %v813
  %v815 = vpop.f32.mrb[0].mxu0
  %v816 = vpop.f32.mrb[0].mxu0
  %v817 = vpop.f32.mrb[0].mxu0
  %818 = vdwg.mxu0
  %v819 = vadd.f32 %v773, %v814
  %v820 = vxor.u32 %v819, 2147483648
  %v821 = vmul.f32 %v820, 1.442695
  %v822 = vpow.pop %v821
  %v823 = vadd.f32 %v822, 1.0
  %v824 = vrcp.pop %v823
  %v825 = vmul.f32 1.0, %v824
  %v826 = vtanh.pop %v819
  %v827 = vmul.f32 %v825, %v675
  %829 = vrot.lane.b32.xlu0 %v826, 64
  %v830 = vpop.permute.xlu0 %829
  %v832 = vmul.f32 %v825, %v830
  %834 = vrot.lane.b32.xlu0 %v832, 32
  %v835 = vpop.permute.xlu0 %834
  %v837 = vadd.f32 %v827, %v835
  %v838 = vtanh.pop %v837
  %840 = vrot.lane.b32.xlu0 %v838, 64
  %v841 = vpop.permute.xlu0 %840
  %v843 = vmul.f32 %v825, %v841
  %v844 = vpack.c.bf16 %v771, %v771
  %v846 = vunpack.c.l.b16 %v844
  %v847 = vpack.c.b16 %v846, %v846
  %848 = vrot.lane.b32.xlu0 %v847, 32
  %v849 = vpop.permute.xlu0 %848
  %s851 = scalar_lea.vmem %s8, 8
  %852 = vst.msk [vmem:[%s851] sm:$0xf] %vm527, %v849
  %v853 = vpack.c.bf16 %v843, %v843
  %v855 = vunpack.c.l.b16 %v853
  %v856 = vpack.c.b16 %v855, %v855
  %857 = vrot.lane.b32.xlu0 %v856, 32
  %v858 = vpop.permute.xlu0 %857
  %s860 = scalar_lea.vmem %s64, 20
  %861 = vst.msk [vmem:[%s860] sm:$0xf] %vm527, %v858
  %s862 = scalar_lea.vmem [#allocation2], 24
  %v863 = vld [vmem:[%s862] sm:$0xff]
  %864 = vrot.lane.b32.xlu0 %v844, 32
  %v865 = vpop.permute.xlu0 %864
  %v867 = vsel %vm360, %v865, 0
  %869 = vmatprep.subr.bf16.mxu0 0
  %870 = vmatpush1.bf16.msra.mxu0 %v356
  %871 = vmatprep.subr.bf16.mxu0 0
  %872 = vmatpush1.bf16.msra.mxu0 %v357
  %873 = vmatprep.subr.bf16.mxu0 0
  %874 = vmatpush1.bf16.msra.mxu0 0
  %875 = vmatprep.subr.bf16.mxu0 0
  %876 = vmatpush1.bf16.msra.mxu0 0
  %877 = vmatprep.subr.bf16.mxu0 0
  %878 = vmatpush1.bf16.msra.mxu0 0
  %879 = vmatprep.subr.bf16.mxu0 0
  %880 = vmatpush1.bf16.msra.mxu0 0
  %881 = vmatprep.subr.bf16.mxu0 0
  %882 = vmatpush1.bf16.msra.mxu0 0
  %883 = vmatprep.subr.bf16.mxu0 0
  %884 = vmatpush1.bf16.msra.mxu0 0
  %885 = vmatprep.subr.bf16.mxu0 0
  %886 = vmatpush1.bf16.msra.mxu0 0
  %887 = vmatprep.subr.bf16.mxu0 0
  %888 = vmatpush1.bf16.msra.mxu0 0
  %889 = vmatprep.subr.bf16.mxu0 0
  %890 = vmatpush1.bf16.msra.mxu0 0
  %891 = vmatprep.subr.bf16.mxu0 0
  %892 = vmatpush1.bf16.msra.mxu0 0
  %893 = vmatprep.subr.bf16.mxu0 0
  %894 = vmatpush1.bf16.msra.mxu0 0
  %895 = vmatprep.subr.bf16.mxu0 0
  %896 = vmatpush1.bf16.msra.mxu0 0
  %897 = vmatprep.subr.bf16.mxu0 0
  %898 = vmatpush1.bf16.msra.mxu0 0
  %899 = vmatprep.subr.bf16.mxu0 0
  %900 = vmatpush1.bf16.msra.mxu0 0
  %901 = vmatprep.mubr.bf16.mxu0 0
  %902 = vmatmul.mubr.bf16.gmra.mrb[0].mxu0 %v867
  %v903 = vpop.f32.mrb[0].mxu0
  %v904 = vadd.f32 0.0, %v903
  %v905 = vpop.f32.mrb[0].mxu0
  %v906 = vpop.f32.mrb[0].mxu0
  %v907 = vpop.f32.mrb[0].mxu0
  %908 = vdwg.mxu0
  %v909 = vadd.f32 %v863, %v904
  %v910 = vxor.u32 %v909, 2147483648
  %v911 = vmul.f32 %v910, 1.442695
  %v912 = vpow.pop %v911
  %v913 = vadd.f32 %v912, 1.0
  %v914 = vrcp.pop %v913
  %v915 = vmul.f32 1.0, %v914
  %v916 = vtanh.pop %v909
  %v917 = vmul.f32 %v915, %v765
  %919 = vrot.lane.b32.xlu0 %v916, 64
  %v920 = vpop.permute.xlu0 %919
  %v922 = vmul.f32 %v915, %v920
  %924 = vrot.lane.b32.xlu0 %v922, 32
  %v925 = vpop.permute.xlu0 %924
  %v927 = vadd.f32 %v917, %v925
  %v928 = vtanh.pop %v927
  %930 = vrot.lane.b32.xlu0 %v928, 64
  %v931 = vpop.permute.xlu0 %930
  %v933 = vmul.f32 %v915, %v931
  %s934 = scalar_lea.vmem [#allocation3], 32
  %v935 = vld [vmem:[%s934] sm:$0xff]
  %936 = vrot.lane.b32.xlu0 %v853, 32
  %v937 = vpop.permute.xlu0 %936
  %v939 = vsel %vm360, %v937, 0
  %941 = vmatprep.subr.bf16.mxu0 0
  %942 = vmatpush1.bf16.msra.mxu0 %v444
  %943 = vmatprep.subr.bf16.mxu0 0
  %944 = vmatpush1.bf16.msra.mxu0 %v445
  %945 = vmatprep.subr.bf16.mxu0 0
  %946 = vmatpush1.bf16.msra.mxu0 0
  %947 = vmatprep.subr.bf16.mxu0 0
  %948 = vmatpush1.bf16.msra.mxu0 0
  %949 = vmatprep.subr.bf16.mxu0 0
  %950 = vmatpush1.bf16.msra.mxu0 0
  %951 = vmatprep.subr.bf16.mxu0 0
  %952 = vmatpush1.bf16.msra.mxu0 0
  %953 = vmatprep.subr.bf16.mxu0 0
  %954 = vmatpush1.bf16.msra.mxu0 0
  %955 = vmatprep.subr.bf16.mxu0 0
  %956 = vmatpush1.bf16.msra.mxu0 0
  %957 = vmatprep.subr.bf16.mxu0 0
  %958 = vmatpush1.bf16.msra.mxu0 0
  %959 = vmatprep.subr.bf16.mxu0 0
  %960 = vmatpush1.bf16.msra.mxu0 0
  %961 = vmatprep.subr.bf16.mxu0 0
  %962 = vmatpush1.bf16.msra.mxu0 0
  %963 = vmatprep.subr.bf16.mxu0 0
  %964 = vmatpush1.bf16.msra.mxu0 0
  %965 = vmatprep.subr.bf16.mxu0 0
  %966 = vmatpush1.bf16.msra.mxu0 0
  %967 = vmatprep.subr.bf16.mxu0 0
  %968 = vmatpush1.bf16.msra.mxu0 0
  %969 = vmatprep.subr.bf16.mxu0 0
  %970 = vmatpush1.bf16.msra.mxu0 0
  %971 = vmatprep.subr.bf16.mxu0 0
  %972 = vmatpush1.bf16.msra.mxu0 0
  %973 = vmatprep.mubr.bf16.mxu0 0
  %974 = vmatmul.mubr.bf16.gmra.mrb[0].mxu0 %v939
  %v975 = vpop.f32.mrb[0].mxu0
  %v976 = vadd.f32 0.0, %v975
  %v977 = vpop.f32.mrb[0].mxu0
  %v978 = vpop.f32.mrb[0].mxu0
  %v979 = vpop.f32.mrb[0].mxu0
  %980 = vdwg.mxu0
  %v981 = vadd.f32 %v935, %v976
  %v982 = vxor.u32 %v981, 2147483648
  %v983 = vmul.f32 %v982, 1.442695
  %v984 = vpow.pop %v983
  %v985 = vadd.f32 %v984, 1.0
  %v986 = vrcp.pop %v985
  %v987 = vmul.f32 1.0, %v986
  %v988 = vtanh.pop %v981
  %v989 = vmul.f32 %v987, %v837
  %991 = vrot.lane.b32.xlu0 %v988, 64
  %v992 = vpop.permute.xlu0 %991
  %v994 = vmul.f32 %v987, %v992
  %996 = vrot.lane.b32.xlu0 %v994, 32
  %v997 = vpop.permute.xlu0 %996
  %v999 = vadd.f32 %v989, %v997
  %v1000 = vtanh.pop %v999
  %1002 = vrot.lane.b32.xlu0 %v1000, 64
  %v1003 = vpop.permute.xlu0 %1002
  %v1005 = vmul.f32 %v987, %v1003
  %v1006 = vpack.c.bf16 %v933, %v933
  %v1008 = vunpack.c.l.b16 %v1006
  %v1009 = vpack.c.b16 %v1008, %v1008
  %1010 = vrot.lane.b32.xlu0 %v1009, 32
  %v1011 = vpop.permute.xlu0 %1010
  %s1013 = scalar_lea.vmem %s8, 12
  %1014 = vst.msk [vmem:[%s1013] sm:$0xf] %vm527, %v1011
  %v1015 = vpack.c.bf16 %v1005, %v1005
  %v1017 = vunpack.c.l.b16 %v1015
  %v1018 = vpack.c.b16 %v1017, %v1017
  %1019 = vrot.lane.b32.xlu0 %v1018, 32
  %v1020 = vpop.permute.xlu0 %1019
  %s1022 = scalar_lea.vmem %s64, 16
  %1023 = vst.msk [vmem:[%s1022] sm:$0xf] %vm527, %v1020
  %s1024 = scalar_lea.vmem [#allocation2], 32
  %v1025 = vld [vmem:[%s1024] sm:$0xff]
  %1026 = vrot.lane.b32.xlu0 %v1006, 32
  %v1027 = vpop.permute.xlu0 %1026
  %v1029 = vsel %vm360, %v1027, 0
  %1031 = vmatprep.subr.bf16.mxu0 0
  %1032 = vmatpush1.bf16.msra.mxu0 %v356
  %1033 = vmatprep.subr.bf16.mxu0 0
  %1034 = vmatpush1.bf16.msra.mxu0 %v357
  %1035 = vmatprep.subr.bf16.mxu0 0
  %1036 = vmatpush1.bf16.msra.mxu0 0
  %1037 = vmatprep.subr.bf16.mxu0 0
  %1038 = vmatpush1.bf16.msra.mxu0 0
  %1039 = vmatprep.subr.bf16.mxu0 0
  %1040 = vmatpush1.bf16.msra.mxu0 0
  %1041 = vmatprep.subr.bf16.mxu0 0
  %1042 = vmatpush1.bf16.msra.mxu0 0
  %1043 = vmatprep.subr.bf16.mxu0 0
  %1044 = vmatpush1.bf16.msra.mxu0 0
  %1045 = vmatprep.subr.bf16.mxu0 0
  %1046 = vmatpush1.bf16.msra.mxu0 0
  %1047 = vmatprep.subr.bf16.mxu0 0
  %1048 = vmatpush1.bf16.msra.mxu0 0
  %1049 = vmatprep.subr.bf16.mxu0 0
  %1050 = vmatpush1.bf16.msra.mxu0 0
  %1051 = vmatprep.subr.bf16.mxu0 0
  %1052 = vmatpush1.bf16.msra.mxu0 0
  %1053 = vmatprep.subr.bf16.mxu0 0
  %1054 = vmatpush1.bf16.msra.mxu0 0
  %1055 = vmatprep.subr.bf16.mxu0 0
  %1056 = vmatpush1.bf16.msra.mxu0 0
  %1057 = vmatprep.subr.bf16.mxu0 0
  %1058 = vmatpush1.bf16.msra.mxu0 0
  %1059 = vmatprep.subr.bf16.mxu0 0
  %1060 = vmatpush1.bf16.msra.mxu0 0
  %1061 = vmatprep.subr.bf16.mxu0 0
  %1062 = vmatpush1.bf16.msra.mxu0 0
  %1063 = vmatprep.mubr.bf16.mxu0 0
  %1064 = vmatmul.mubr.bf16.gmra.mrb[0].mxu0 %v1029
  %v1065 = vpop.f32.mrb[0].mxu0
  %v1066 = vadd.f32 0.0, %v1065
  %v1067 = vpop.f32.mrb[0].mxu0
  %v1068 = vpop.f32.mrb[0].mxu0
  %v1069 = vpop.f32.mrb[0].mxu0
  %1070 = vdwg.mxu0
  %v1071 = vadd.f32 %v1025, %v1066
  %v1072 = vxor.u32 %v1071, 2147483648
  %v1073 = vmul.f32 %v1072, 1.442695
  %v1074 = vpow.pop %v1073
  %v1075 = vadd.f32 %v1074, 1.0
  %v1076 = vrcp.pop %v1075
  %v1077 = vmul.f32 1.0, %v1076
  %v1078 = vtanh.pop %v1071
  %v1079 = vmul.f32 %v1077, %v927
  %1081 = vrot.lane.b32.xlu0 %v1078, 64
  %v1082 = vpop.permute.xlu0 %1081
  %v1084 = vmul.f32 %v1077, %v1082
  %1086 = vrot.lane.b32.xlu0 %v1084, 32
  %v1087 = vpop.permute.xlu0 %1086
  %v1089 = vadd.f32 %v1079, %v1087
  %v1090 = vtanh.pop %v1089
  %1092 = vrot.lane.b32.xlu0 %v1090, 64
  %v1093 = vpop.permute.xlu0 %1092
  %v1095 = vmul.f32 %v1077, %v1093
  %s1096 = scalar_lea.vmem [#allocation3], 24
  %v1097 = vld [vmem:[%s1096] sm:$0xff]
  %1098 = vrot.lane.b32.xlu0 %v1015, 32
  %v1099 = vpop.permute.xlu0 %1098
  %v1101 = vsel %vm360, %v1099, 0
  %1103 = vmatprep.subr.bf16.mxu0 0
  %1104 = vmatpush1.bf16.msra.mxu0 %v444
  %1105 = vmatprep.subr.bf16.mxu0 0
  %1106 = vmatpush1.bf16.msra.mxu0 %v445
  %1107 = vmatprep.subr.bf16.mxu0 0
  %1108 = vmatpush1.bf16.msra.mxu0 0
  %1109 = vmatprep.subr.bf16.mxu0 0
  %1110 = vmatpush1.bf16.msra.mxu0 0
  %1111 = vmatprep.subr.bf16.mxu0 0
  %1112 = vmatpush1.bf16.msra.mxu0 0
  %1113 = vmatprep.subr.bf16.mxu0 0
  %1114 = vmatpush1.bf16.msra.mxu0 0
  %1115 = vmatprep.subr.bf16.mxu0 0
  %1116 = vmatpush1.bf16.msra.mxu0 0
  %1117 = vmatprep.subr.bf16.mxu0 0
  %1118 = vmatpush1.bf16.msra.mxu0 0
  %1119 = vmatprep.subr.bf16.mxu0 0
  %1120 = vmatpush1.bf16.msra.mxu0 0
  %1121 = vmatprep.subr.bf16.mxu0 0
  %1122 = vmatpush1.bf16.msra.mxu0 0
  %1123 = vmatprep.subr.bf16.mxu0 0
  %1124 = vmatpush1.bf16.msra.mxu0 0
  %1125 = vmatprep.subr.bf16.mxu0 0
  %1126 = vmatpush1.bf16.msra.mxu0 0
  %1127 = vmatprep.subr.bf16.mxu0 0
  %1128 = vmatpush1.bf16.msra.mxu0 0
  %1129 = vmatprep.subr.bf16.mxu0 0
  %1130 = vmatpush1.bf16.msra.mxu0 0
  %1131 = vmatprep.subr.bf16.mxu0 0
  %1132 = vmatpush1.bf16.msra.mxu0 0
  %1133 = vmatprep.subr.bf16.mxu0 0
  %1134 = vmatpush1.bf16.msra.mxu0 0
  %1135 = vmatprep.mubr.bf16.mxu0 0
  %1136 = vmatmul.mubr.bf16.gmra.mrb[0].mxu0 %v1101
  %v1137 = vpop.f32.mrb[0].mxu0
  %v1138 = vadd.f32 0.0, %v1137
  %v1139 = vpop.f32.mrb[0].mxu0
  %v1140 = vpop.f32.mrb[0].mxu0
  %v1141 = vpop.f32.mrb[0].mxu0
  %1142 = vdwg.mxu0
  %v1143 = vadd.f32 %v1097, %v1138
  %v1144 = vxor.u32 %v1143, 2147483648
  %v1145 = vmul.f32 %v1144, 1.442695
  %v1146 = vpow.pop %v1145
  %v1147 = vadd.f32 %v1146, 1.0
  %v1148 = vrcp.pop %v1147
  %v1149 = vmul.f32 1.0, %v1148
  %v1150 = vtanh.pop %v1143
  %v1151 = vmul.f32 %v1149, %v999
  %1153 = vrot.lane.b32.xlu0 %v1150, 64
  %v1154 = vpop.permute.xlu0 %1153
  %v1156 = vmul.f32 %v1149, %v1154
  %1158 = vrot.lane.b32.xlu0 %v1156, 32
  %v1159 = vpop.permute.xlu0 %1158
  %v1161 = vadd.f32 %v1151, %v1159
  %v1162 = vtanh.pop %v1161
  %1164 = vrot.lane.b32.xlu0 %v1162, 64
  %v1165 = vpop.permute.xlu0 %1164
  %v1167 = vmul.f32 %v1149, %v1165
  %v1168 = vpack.c.bf16 %v1095, %v1095
  %v1170 = vunpack.c.l.b16 %v1168
  %v1171 = vpack.c.b16 %v1170, %v1170
  %1172 = vrot.lane.b32.xlu0 %v1171, 32
  %v1173 = vpop.permute.xlu0 %1172
  %s1175 = scalar_lea.vmem %s8, 16
  %1176 = vst.msk [vmem:[%s1175] sm:$0xf] %vm527, %v1173
  %v1177 = vpack.c.bf16 %v1167, %v1167
  %v1179 = vunpack.c.l.b16 %v1177
  %v1180 = vpack.c.b16 %v1179, %v1179
  %1181 = vrot.lane.b32.xlu0 %v1180, 32
  %v1182 = vpop.permute.xlu0 %1181
  %s1184 = scalar_lea.vmem %s64, 12
  %1185 = vst.msk [vmem:[%s1184] sm:$0xf] %vm527, %v1182
  %s1186 = scalar_lea.vmem [#allocation2], 40
  %v1187 = vld [vmem:[%s1186] sm:$0xff]
  %1188 = vrot.lane.b32.xlu0 %v1168, 32
  %v1189 = vpop.permute.xlu0 %1188
  %v1191 = vsel %vm360, %v1189, 0
  %1193 = vmatprep.subr.bf16.mxu0 0
  %1194 = vmatpush1.bf16.msra.mxu0 %v356
  %1195 = vmatprep.subr.bf16.mxu0 0
  %1196 = vmatpush1.bf16.msra.mxu0 %v357
  %1197 = vmatprep.subr.bf16.mxu0 0
  %1198 = vmatpush1.bf16.msra.mxu0 0
  %1199 = vmatprep.subr.bf16.mxu0 0
  %1200 = vmatpush1.bf16.msra.mxu0 0
  %1201 = vmatprep.subr.bf16.mxu0 0
  %1202 = vmatpush1.bf16.msra.mxu0 0
  %1203 = vmatprep.subr.bf16.mxu0 0
  %1204 = vmatpush1.bf16.msra.mxu0 0
  %1205 = vmatprep.subr.bf16.mxu0 0
  %1206 = vmatpush1.bf16.msra.mxu0 0
  %1207 = vmatprep.subr.bf16.mxu0 0
  %1208 = vmatpush1.bf16.msra.mxu0 0
  %1209 = vmatprep.subr.bf16.mxu0 0
  %1210 = vmatpush1.bf16.msra.mxu0 0
  %1211 = vmatprep.subr.bf16.mxu0 0
  %1212 = vmatpush1.bf16.msra.mxu0 0
  %1213 = vmatprep.subr.bf16.mxu0 0
  %1214 = vmatpush1.bf16.msra.mxu0 0
  %1215 = vmatprep.subr.bf16.mxu0 0
  %1216 = vmatpush1.bf16.msra.mxu0 0
  %1217 = vmatprep.subr.bf16.mxu0 0
  %1218 = vmatpush1.bf16.msra.mxu0 0
  %1219 = vmatprep.subr.bf16.mxu0 0
  %1220 = vmatpush1.bf16.msra.mxu0 0
  %1221 = vmatprep.subr.bf16.mxu0 0
  %1222 = vmatpush1.bf16.msra.mxu0 0
  %1223 = vmatprep.subr.bf16.mxu0 0
  %1224 = vmatpush1.bf16.msra.mxu0 0
  %1225 = vmatprep.mubr.bf16.mxu0 0
  %1226 = vmatmul.mubr.bf16.gmra.mrb[0].mxu0 %v1191
  %v1227 = vpop.f32.mrb[0].mxu0
  %v1228 = vadd.f32 0.0, %v1227
  %v1229 = vpop.f32.mrb[0].mxu0
  %v1230 = vpop.f32.mrb[0].mxu0
  %v1231 = vpop.f32.mrb[0].mxu0
  %1232 = vdwg.mxu0
  %v1233 = vadd.f32 %v1187, %v1228
  %v1234 = vxor.u32 %v1233, 2147483648
  %v1235 = vmul.f32 %v1234, 1.442695
  %v1236 = vpow.pop %v1235
  %v1237 = vadd.f32 %v1236, 1.0
  %v1238 = vrcp.pop %v1237
  %v1239 = vmul.f32 1.0, %v1238
  %v1240 = vtanh.pop %v1233
  %v1241 = vmul.f32 %v1239, %v1089
  %1243 = vrot.lane.b32.xlu0 %v1240, 64
  %v1244 = vpop.permute.xlu0 %1243
  %v1246 = vmul.f32 %v1239, %v1244
  %1248 = vrot.lane.b32.xlu0 %v1246, 32
  %v1249 = vpop.permute.xlu0 %1248
  %v1251 = vadd.f32 %v1241, %v1249
  %v1252 = vtanh.pop %v1251
  %1254 = vrot.lane.b32.xlu0 %v1252, 64
  %v1255 = vpop.permute.xlu0 %1254
  %v1257 = vmul.f32 %v1239, %v1255
  %s1258 = scalar_lea.vmem [#allocation3], 16
  %v1259 = vld [vmem:[%s1258] sm:$0xff]
  %1260 = vrot.lane.b32.xlu0 %v1177, 32
  %v1261 = vpop.permute.xlu0 %1260
  %v1263 = vsel %vm360, %v1261, 0
  %1265 = vmatprep.subr.bf16.mxu0 0
  %1266 = vmatpush1.bf16.msra.mxu0 %v444
  %1267 = vmatprep.subr.bf16.mxu0 0
  %1268 = vmatpush1.bf16.msra.mxu0 %v445
  %1269 = vmatprep.subr.bf16.mxu0 0
  %1270 = vmatpush1.bf16.msra.mxu0 0
  %1271 = vmatprep.subr.bf16.mxu0 0
  %1272 = vmatpush1.bf16.msra.mxu0 0
  %1273 = vmatprep.subr.bf16.mxu0 0
  %1274 = vmatpush1.bf16.msra.mxu0 0
  %1275 = vmatprep.subr.bf16.mxu0 0
  %1276 = vmatpush1.bf16.msra.mxu0 0
  %1277 = vmatprep.subr.bf16.mxu0 0
  %1278 = vmatpush1.bf16.msra.mxu0 0
  %1279 = vmatprep.subr.bf16.mxu0 0
  %1280 = vmatpush1.bf16.msra.mxu0 0
  %1281 = vmatprep.subr.bf16.mxu0 0
  %1282 = vmatpush1.bf16.msra.mxu0 0
  %1283 = vmatprep.subr.bf16.mxu0 0
  %1284 = vmatpush1.bf16.msra.mxu0 0
  %1285 = vmatprep.subr.bf16.mxu0 0
  %1286 = vmatpush1.bf16.msra.mxu0 0
  %1287 = vmatprep.subr.bf16.mxu0 0
  %1288 = vmatpush1.bf16.msra.mxu0 0
  %1289 = vmatprep.subr.bf16.mxu0 0
  %1290 = vmatpush1.bf16.msra.mxu0 0
  %1291 = vmatprep.subr.bf16.mxu0 0
  %1292 = vmatpush1.bf16.msra.mxu0 0
  %1293 = vmatprep.subr.bf16.mxu0 0
  %1294 = vmatpush1.bf16.msra.mxu0 0
  %1295 = vmatprep.subr.bf16.mxu0 0
  %1296 = vmatpush1.bf16.msra.mxu0 0
  %1297 = vmatprep.mubr.bf16.mxu0 0
  %1298 = vmatmul.mubr.bf16.gmra.mrb[0].mxu0 %v1263
  %v1299 = vpop.f32.mrb[0].mxu0
  %v1300 = vadd.f32 0.0, %v1299
  %v1301 = vpop.f32.mrb[0].mxu0
  %v1302 = vpop.f32.mrb[0].mxu0
  %v1303 = vpop.f32.mrb[0].mxu0
  %1304 = vdwg.mxu0
  %v1305 = vadd.f32 %v1259, %v1300
  %v1306 = vxor.u32 %v1305, 2147483648
  %v1307 = vmul.f32 %v1306, 1.442695
  %v1308 = vpow.pop %v1307
  %v1309 = vadd.f32 %v1308, 1.0
  %v1310 = vrcp.pop %v1309
  %v1311 = vmul.f32 1.0, %v1310
  %v1312 = vtanh.pop %v1305
  %v1313 = vmul.f32 %v1311, %v1161
  %1315 = vrot.lane.b32.xlu0 %v1312, 64
  %v1316 = vpop.permute.xlu0 %1315
  %v1318 = vmul.f32 %v1311, %v1316
  %1320 = vrot.lane.b32.xlu0 %v1318, 32
  %v1321 = vpop.permute.xlu0 %1320
  %v1323 = vadd.f32 %v1313, %v1321
  %v1324 = vtanh.pop %v1323
  %1326 = vrot.lane.b32.xlu0 %v1324, 64
  %v1327 = vpop.permute.xlu0 %1326
  %v1329 = vmul.f32 %v1311, %v1327
  %v1330 = vpack.c.bf16 %v1257, %v1257
  %v1332 = vunpack.c.l.b16 %v1330
  %v1333 = vpack.c.b16 %v1332, %v1332
  %1334 = vrot.lane.b32.xlu0 %v1333, 32
  %v1335 = vpop.permute.xlu0 %1334
  %s1337 = scalar_lea.vmem %s8, 20
  %1338 = vst.msk [vmem:[%s1337] sm:$0xf] %vm527, %v1335
  %v1339 = vpack.c.bf16 %v1329, %v1329
  %v1341 = vunpack.c.l.b16 %v1339
  %v1342 = vpack.c.b16 %v1341, %v1341
  %1343 = vrot.lane.b32.xlu0 %v1342, 32
  %v1344 = vpop.permute.xlu0 %1343
  %s1346 = scalar_lea.vmem %s64, 8
  %1347 = vst.msk [vmem:[%s1346] sm:$0xf] %vm527, %v1344
  %s1348 = scalar_lea.vmem [#allocation2], 48
  %v1349 = vld [vmem:[%s1348] sm:$0xff]
  %1350 = vrot.lane.b32.xlu0 %v1330, 32
  %v1351 = vpop.permute.xlu0 %1350
  %v1353 = vsel %vm360, %v1351, 0
  %1355 = vmatprep.subr.bf16.mxu0 0
  %1356 = vmatpush1.bf16.msra.mxu0 %v356
  %1357 = vmatprep.subr.bf16.mxu0 0
  %1358 = vmatpush1.bf16.msra.mxu0 %v357
  %1359 = vmatprep.subr.bf16.mxu0 0
  %1360 = vmatpush1.bf16.msra.mxu0 0
  %1361 = vmatprep.subr.bf16.mxu0 0
  %1362 = vmatpush1.bf16.msra.mxu0 0
  %1363 = vmatprep.subr.bf16.mxu0 0
  %1364 = vmatpush1.bf16.msra.mxu0 0
  %1365 = vmatprep.subr.bf16.mxu0 0
  %1366 = vmatpush1.bf16.msra.mxu0 0
  %1367 = vmatprep.subr.bf16.mxu0 0
  %1368 = vmatpush1.bf16.msra.mxu0 0
  %1369 = vmatprep.subr.bf16.mxu0 0
  %1370 = vmatpush1.bf16.msra.mxu0 0
  %1371 = vmatprep.subr.bf16.mxu0 0
  %1372 = vmatpush1.bf16.msra.mxu0 0
  %1373 = vmatprep.subr.bf16.mxu0 0
  %1374 = vmatpush1.bf16.msra.mxu0 0
  %1375 = vmatprep.subr.bf16.mxu0 0
  %1376 = vmatpush1.bf16.msra.mxu0 0
  %1377 = vmatprep.subr.bf16.mxu0 0
  %1378 = vmatpush1.bf16.msra.mxu0 0
  %1379 = vmatprep.subr.bf16.mxu0 0
  %1380 = vmatpush1.bf16.msra.mxu0 0
  %1381 = vmatprep.subr.bf16.mxu0 0
  %1382 = vmatpush1.bf16.msra.mxu0 0
  %1383 = vmatprep.subr.bf16.mxu0 0
  %1384 = vmatpush1.bf16.msra.mxu0 0
  %1385 = vmatprep.subr.bf16.mxu0 0
  %1386 = vmatpush1.bf16.msra.mxu0 0
  %1387 = vmatprep.mubr.bf16.mxu0 0
  %1388 = vmatmul.mubr.bf16.gmra.mrb[0].mxu0 %v1353
  %v1389 = vpop.f32.mrb[0].mxu0
  %v1390 = vadd.f32 0.0, %v1389
  %v1391 = vpop.f32.mrb[0].mxu0
  %v1392 = vpop.f32.mrb[0].mxu0
  %v1393 = vpop.f32.mrb[0].mxu0
  %1394 = vdwg.mxu0
  %v1395 = vadd.f32 %v1349, %v1390
  %v1396 = vxor.u32 %v1395, 2147483648
  %v1397 = vmul.f32 %v1396, 1.442695
  %v1398 = vpow.pop %v1397
  %v1399 = vadd.f32 %v1398, 1.0
  %v1400 = vrcp.pop %v1399
  %v1401 = vmul.f32 1.0, %v1400
  %v1402 = vtanh.pop %v1395
  %v1403 = vmul.f32 %v1401, %v1251
  %1405 = vrot.lane.b32.xlu0 %v1402, 64
  %v1406 = vpop.permute.xlu0 %1405
  %v1408 = vmul.f32 %v1401, %v1406
  %1410 = vrot.lane.b32.xlu0 %v1408, 32
  %v1411 = vpop.permute.xlu0 %1410
  %v1413 = vadd.f32 %v1403, %v1411
  %v1414 = vtanh.pop %v1413
  %1416 = vrot.lane.b32.xlu0 %v1414, 64
  %v1417 = vpop.permute.xlu0 %1416
  %v1419 = vmul.f32 %v1401, %v1417
  %s1420 = scalar_lea.vmem [#allocation3], 8
  %v1421 = vld [vmem:[%s1420] sm:$0xff]
  %1422 = vrot.lane.b32.xlu0 %v1339, 32
  %v1423 = vpop.permute.xlu0 %1422
  %v1425 = vsel %vm360, %v1423, 0
  %1427 = vmatprep.subr.bf16.mxu0 0
  %1428 = vmatpush1.bf16.msra.mxu0 %v444
  %1429 = vmatprep.subr.bf16.mxu0 0
  %1430 = vmatpush1.bf16.msra.mxu0 %v445
  %1431 = vmatprep.subr.bf16.mxu0 0
  %1432 = vmatpush1.bf16.msra.mxu0 0
  %1433 = vmatprep.subr.bf16.mxu0 0
  %1434 = vmatpush1.bf16.msra.mxu0 0
  %1435 = vmatprep.subr.bf16.mxu0 0
  %1436 = vmatpush1.bf16.msra.mxu0 0
  %1437 = vmatprep.subr.bf16.mxu0 0
  %1438 = vmatpush1.bf16.msra.mxu0 0
  %1439 = vmatprep.subr.bf16.mxu0 0
  %1440 = vmatpush1.bf16.msra.mxu0 0
  %1441 = vmatprep.subr.bf16.mxu0 0
  %1442 = vmatpush1.bf16.msra.mxu0 0
  %1443 = vmatprep.subr.bf16.mxu0 0
  %1444 = vmatpush1.bf16.msra.mxu0 0
  %1445 = vmatprep.subr.bf16.mxu0 0
  %1446 = vmatpush1.bf16.msra.mxu0 0
  %1447 = vmatprep.subr.bf16.mxu0 0
  %1448 = vmatpush1.bf16.msra.mxu0 0
  %1449 = vmatprep.subr.bf16.mxu0 0
  %1450 = vmatpush1.bf16.msra.mxu0 0
  %1451 = vmatprep.subr.bf16.mxu0 0
  %1452 = vmatpush1.bf16.msra.mxu0 0
  %1453 = vmatprep.subr.bf16.mxu0 0
  %1454 = vmatpush1.bf16.msra.mxu0 0
  %1455 = vmatprep.subr.bf16.mxu0 0
  %1456 = vmatpush1.bf16.msra.mxu0 0
  %1457 = vmatprep.subr.bf16.mxu0 0
  %1458 = vmatpush1.bf16.msra.mxu0 0
  %1459 = vmatprep.mubr.bf16.mxu0 0
  %1460 = vmatmul.mubr.bf16.gmra.mrb[0].mxu0 %v1425
  %v1461 = vpop.f32.mrb[0].mxu0
  %v1462 = vadd.f32 0.0, %v1461
  %v1463 = vpop.f32.mrb[0].mxu0
  %v1464 = vpop.f32.mrb[0].mxu0
  %v1465 = vpop.f32.mrb[0].mxu0
  %1466 = vdwg.mxu0
  %v1467 = vadd.f32 %v1421, %v1462
  %v1468 = vxor.u32 %v1467, 2147483648
  %v1469 = vmul.f32 %v1468, 1.442695
  %v1470 = vpow.pop %v1469
  %v1471 = vadd.f32 %v1470, 1.0
  %v1472 = vrcp.pop %v1471
  %v1473 = vmul.f32 1.0, %v1472
  %v1474 = vtanh.pop %v1467
  %v1475 = vmul.f32 %v1473, %v1323
  %1477 = vrot.lane.b32.xlu0 %v1474, 64
  %v1478 = vpop.permute.xlu0 %1477
  %v1480 = vmul.f32 %v1473, %v1478
  %1482 = vrot.lane.b32.xlu0 %v1480, 32
  %v1483 = vpop.permute.xlu0 %1482
  %v1485 = vadd.f32 %v1475, %v1483
  %v1486 = vtanh.pop %v1485
  %1488 = vrot.lane.b32.xlu0 %v1486, 64
  %v1489 = vpop.permute.xlu0 %1488
  %v1491 = vmul.f32 %v1473, %v1489
  %v1492 = vpack.c.bf16 %v1419, %v1419
  %v1494 = vunpack.c.l.b16 %v1492
  %v1495 = vpack.c.b16 %v1494, %v1494
  %1496 = vrot.lane.b32.xlu0 %v1495, 32
  %v1497 = vpop.permute.xlu0 %1496
  %s1499 = scalar_lea.vmem %s8, 24
  %1500 = vst.msk [vmem:[%s1499] sm:$0xf] %vm527, %v1497
  %v1501 = vpack.c.bf16 %v1491, %v1491
  %v1503 = vunpack.c.l.b16 %v1501
  %v1504 = vpack.c.b16 %v1503, %v1503
  %1505 = vrot.lane.b32.xlu0 %v1504, 32
  %v1506 = vpop.permute.xlu0 %1505
  %s1508 = scalar_lea.vmem %s64, 4
  %1509 = vst.msk [vmem:[%s1508] sm:$0xf] %vm527, %v1506
  %s1510 = scalar_lea.vmem [#allocation2], 56
  %v1511 = vld [vmem:[%s1510] sm:$0xff]
  %1512 = vrot.lane.b32.xlu0 %v1492, 32
  %v1513 = vpop.permute.xlu0 %1512
  %v1515 = vsel %vm360, %v1513, 0
  %1517 = vmatprep.subr.bf16.mxu0 0
  %1518 = vmatpush1.bf16.msra.mxu0 %v356
  %1519 = vmatprep.subr.bf16.mxu0 0
  %1520 = vmatpush1.bf16.msra.mxu0 %v357
  %1521 = vmatprep.subr.bf16.mxu0 0
  %1522 = vmatpush1.bf16.msra.mxu0 0
  %1523 = vmatprep.subr.bf16.mxu0 0
  %1524 = vmatpush1.bf16.msra.mxu0 0
  %1525 = vmatprep.subr.bf16.mxu0 0
  %1526 = vmatpush1.bf16.msra.mxu0 0
  %1527 = vmatprep.subr.bf16.mxu0 0
  %1528 = vmatpush1.bf16.msra.mxu0 0
  %1529 = vmatprep.subr.bf16.mxu0 0
  %1530 = vmatpush1.bf16.msra.mxu0 0
  %1531 = vmatprep.subr.bf16.mxu0 0
  %1532 = vmatpush1.bf16.msra.mxu0 0
  %1533 = vmatprep.subr.bf16.mxu0 0
  %1534 = vmatpush1.bf16.msra.mxu0 0
  %1535 = vmatprep.subr.bf16.mxu0 0
  %1536 = vmatpush1.bf16.msra.mxu0 0
  %1537 = vmatprep.subr.bf16.mxu0 0
  %1538 = vmatpush1.bf16.msra.mxu0 0
  %1539 = vmatprep.subr.bf16.mxu0 0
  %1540 = vmatpush1.bf16.msra.mxu0 0
  %1541 = vmatprep.subr.bf16.mxu0 0
  %1542 = vmatpush1.bf16.msra.mxu0 0
  %1543 = vmatprep.subr.bf16.mxu0 0
  %1544 = vmatpush1.bf16.msra.mxu0 0
  %1545 = vmatprep.subr.bf16.mxu0 0
  %1546 = vmatpush1.bf16.msra.mxu0 0
  %1547 = vmatprep.subr.bf16.mxu0 0
  %1548 = vmatpush1.bf16.msra.mxu0 0
  %1549 = vmatprep.mubr.bf16.mxu0 0
  %1550 = vmatmul.mubr.bf16.gmra.mrb[0].mxu0 %v1515
  %v1551 = vpop.f32.mrb[0].mxu0
  %v1552 = vadd.f32 0.0, %v1551
  %v1553 = vpop.f32.mrb[0].mxu0
  %v1554 = vpop.f32.mrb[0].mxu0
  %v1555 = vpop.f32.mrb[0].mxu0
  %1556 = vdwg.mxu0
  %v1557 = vadd.f32 %v1511, %v1552
  %v1558 = vxor.u32 %v1557, 2147483648
  %v1559 = vmul.f32 %v1558, 1.442695
  %v1560 = vpow.pop %v1559
  %v1561 = vadd.f32 %v1560, 1.0
  %v1562 = vrcp.pop %v1561
  %v1563 = vmul.f32 1.0, %v1562
  %v1564 = vtanh.pop %v1557
  %v1565 = vmul.f32 %v1563, %v1413
  %1567 = vrot.lane.b32.xlu0 %v1564, 64
  %v1568 = vpop.permute.xlu0 %1567
  %v1570 = vmul.f32 %v1563, %v1568
  %1572 = vrot.lane.b32.xlu0 %v1570, 32
  %v1573 = vpop.permute.xlu0 %1572
  %v1575 = vadd.f32 %v1565, %v1573
  %v1576 = vtanh.pop %v1575
  %1578 = vrot.lane.b32.xlu0 %v1576, 64
  %v1579 = vpop.permute.xlu0 %1578
  %v1581 = vmul.f32 %v1563, %v1579
  %v1582 = vld [vmem:[#allocation3] sm:$0xff]
  %1583 = vrot.lane.b32.xlu0 %v1501, 32
  %v1584 = vpop.permute.xlu0 %1583
  %v1586 = vsel %vm360, %v1584, 0
  %1588 = vmatprep.subr.bf16.mxu0 0
  %1589 = vmatpush1.bf16.msra.mxu0 %v444
  %1590 = vmatprep.subr.bf16.mxu0 0
  %1591 = vmatpush1.bf16.msra.mxu0 %v445
  %1592 = vmatprep.subr.bf16.mxu0 0
  %1593 = vmatpush1.bf16.msra.mxu0 0
  %1594 = vmatprep.subr.bf16.mxu0 0
  %1595 = vmatpush1.bf16.msra.mxu0 0
  %1596 = vmatprep.subr.bf16.mxu0 0
  %1597 = vmatpush1.bf16.msra.mxu0 0
  %1598 = vmatprep.subr.bf16.mxu0 0
  %1599 = vmatpush1.bf16.msra.mxu0 0
  %1600 = vmatprep.subr.bf16.mxu0 0
  %1601 = vmatpush1.bf16.msra.mxu0 0
  %1602 = vmatprep.subr.bf16.mxu0 0
  %1603 = vmatpush1.bf16.msra.mxu0 0
  %1604 = vmatprep.subr.bf16.mxu0 0
  %1605 = vmatpush1.bf16.msra.mxu0 0
  %1606 = vmatprep.subr.bf16.mxu0 0
  %1607 = vmatpush1.bf16.msra.mxu0 0
  %1608 = vmatprep.subr.bf16.mxu0 0
  %1609 = vmatpush1.bf16.msra.mxu0 0
  %1610 = vmatprep.subr.bf16.mxu0 0
  %1611 = vmatpush1.bf16.msra.mxu0 0
  %1612 = vmatprep.subr.bf16.mxu0 0
  %1613 = vmatpush1.bf16.msra.mxu0 0
  %1614 = vmatprep.subr.bf16.mxu0 0
  %1615 = vmatpush1.bf16.msra.mxu0 0
  %1616 = vmatprep.subr.bf16.mxu0 0
  %1617 = vmatpush1.bf16.msra.mxu0 0
  %1618 = vmatprep.subr.bf16.mxu0 0
  %1619 = vmatpush1.bf16.msra.mxu0 0
  %1620 = vmatprep.mubr.bf16.mxu0 0
  %1621 = vmatmul.mubr.bf16.gmra.mrb[0].mxu0 %v1586
  %v1622 = vpop.f32.mrb[0].mxu0
  %v1623 = vadd.f32 0.0, %v1622
  %v1624 = vpop.f32.mrb[0].mxu0
  %v1625 = vpop.f32.mrb[0].mxu0
  %v1626 = vpop.f32.mrb[0].mxu0
  %1627 = vdwg.mxu0
  %v1628 = vadd.f32 %v1582, %v1623
  %v1629 = vxor.u32 %v1628, 2147483648
  %v1630 = vmul.f32 %v1629, 1.442695
  %v1631 = vpow.pop %v1630
  %v1632 = vadd.f32 %v1631, 1.0
  %v1633 = vrcp.pop %v1632
  %v1634 = vmul.f32 1.0, %v1633
  %v1635 = vtanh.pop %v1628
  %v1636 = vmul.f32 %v1634, %v1485
  %1638 = vrot.lane.b32.xlu0 %v1635, 64
  %v1639 = vpop.permute.xlu0 %1638
  %v1641 = vmul.f32 %v1634, %v1639
  %1643 = vrot.lane.b32.xlu0 %v1641, 32
  %v1644 = vpop.permute.xlu0 %1643
  %v1646 = vadd.f32 %v1636, %v1644
  %v1647 = vtanh.pop %v1646
  %1649 = vrot.lane.b32.xlu0 %v1647, 64
  %v1650 = vpop.permute.xlu0 %1649
  %v1652 = vmul.f32 %v1634, %v1650
  %v1653 = vpack.c.bf16 %v1581, %v1581
  %v1655 = vunpack.c.l.b16 %v1653
  %v1656 = vpack.c.b16 %v1655, %v1655
  %1657 = vrot.lane.b32.xlu0 %v1656, 32
  %v1658 = vpop.permute.xlu0 %1657
  %s1660 = scalar_lea.vmem %s8, 28
  %1661 = vst.msk [vmem:[%s1660] sm:$0xf] %vm527, %v1658
  %v1662 = vpack.c.bf16 %v1652, %v1652
  %v1664 = vunpack.c.l.b16 %v1662
  %v1665 = vpack.c.b16 %v1664, %v1664
  %1666 = vrot.lane.b32.xlu0 %v1665, 32
  %v1667 = vpop.permute.xlu0 %1666
  %1669 = vst.msk [vmem:[%s64] sm:$0xf] %vm527, %v1667
  %1671 = vrot.lane.b32.xlu0 %v1581, 32
  %v1672 = vpop.permute.xlu0 %1671
  %1674 = vst.msk [vmem:[#allocation4] sm:$0xff] %vm360, %v1672
  %1676 = vrot.lane.b32.xlu0 %v1575, 96
  %v1677 = vpop.permute.xlu0 %1676
  %1679 = vst.msk [vmem:[#allocation5] sm:$0xff] %vm360, %v1677
  %1681 = vrot.lane.b32.xlu0 %v1652, 32
  %v1682 = vpop.permute.xlu0 %1681
  %1684 = vst.msk [vmem:[#allocation6] sm:$0xff] %vm360, %v1682
  %1686 = vrot.lane.b32.xlu0 %v1646, 96
  %v1687 = vpop.permute.xlu0 %1686
  %1689 = vst.msk [vmem:[#allocation7] sm:$0xff] %vm360, %v1687
  %s1690 = ssub.s32 0, 0
  %s1691 = smul.u32 8, %s1690
  %p1692 = scmp.lt.s32.totalorder %s1691, 7
  %s1693 = scalar_select %p1692, %s1691, 7
  %s1694 = smul.addr %s1693, 4
  %s1695 = scalar_lea.vmem %s9, %s1694
  // Predicated region
  $region38: #{bilstm_softmax_forward.2} parent=0 // pred_check
    _
  $region39: #{bilstm_softmax_forward.2} parent=0 // pred_check_branch
    %1697 = sbr.rel (0) target = $region41
  $region40: #{bilstm_softmax_forward.2} parent=0 // pred_region
    _
  $region41: #{bilstm_softmax_forward.2} parent=0 // pred_fallthru
    _
  // Predicated region
  $region42: #{bilstm_softmax_forward.2} parent=0 // pred_check
    _
  $region43: #{bilstm_softmax_forward.2} parent=0 // pred_check_branch
    %1699 = sbr.rel (0) target = $region45
  $region44: #{bilstm_softmax_forward.2} parent=0 // pred_region
    %s1700 = ssub.s32 0, 0
    %s1701 = smul.u32 8, %s1700
  $region45: #{bilstm_softmax_forward.2} parent=0 // pred_fallthru
    _
  // Predicated region
  $region46: #{bilstm_softmax_forward.2} parent=0 // pred_check
    _
  $region47: #{bilstm_softmax_forward.2} parent=0 // pred_check_branch
    %1703 = sbr.rel (0) target = $region49
  $region48: #{bilstm_softmax_forward.2} parent=0 // pred_region
    _
  $region49: #{bilstm_softmax_forward.2} parent=0 // pred_fallthru
    _
  // Predicated region
  $region50: #{bilstm_softmax_forward.2} parent=0 // pred_check
    _
  $region51: #{bilstm_softmax_forward.2} parent=0 // pred_check_branch
    %1705 = sbr.rel (0) target = $region53
  $region52: #{bilstm_softmax_forward.2} parent=0 // pred_region
    %s1706 = ssub.s32 0, 0
    %s1707 = smul.u32 8, %s1706
    %p1708 = scmp.lt.s32.totalorder %s1707, 7
    %s1709 = scalar_select %p1708, %s1707, 7
    %s1710 = smul.addr %s1709, 4
    %s1711 = scalar_lea.vmem %s9, %s1710
  $region53: #{bilstm_softmax_forward.2} parent=0 // pred_fallthru
    _

</llo_original>
